<compile_context>
chip_gen: v5e
topology: v5e:2x2
jax: 0.10.0
libtpu: 0.0.40
codegen_flags: <defaults>
</compile_context>

<pallas_src>
import numpy as np
import jax
import jax.numpy as jnp
from jax import lax
from jax.experimental import pallas as pl
from jax.experimental.pallas import tpu as pltpu

K_ENSEMBLE = 8      # tabm k
D_BLOCK = 32        # MLP hidden width
N_FEAT = 78         # n_num_features == n_classes
KD = K_ENSEMBLE * D_BLOCK          # 256 (ensemble folded into lanes)

# conv-chain geometry (flat channels-last widths)
L1, C1, P1 = 75, 16, 25            # conv1 out positions/channels, pool1 windows
L2, C2, P2 = 22, 16, 7             # conv2 out, pool2 windows
C3 = 16                            # conv3 channels
BANK1 = 512                        # pool1 bank stride (>= P1*C1=400, 128-aligned)
BANK2 = 128                        # pool2 bank stride (>= P2*C2=112, 128-aligned)
W1FULL = 3 * BANK1                 # 1536 : conv1 output width (bank layout)
W2FULL = 3 * BANK2                 # 384  : conv2 output width (bank layout)
MERGE_K = 512                      # merged conv1 operand width [x|0|y|0|h2]


def _sigmoid(v):
    # numerically stable sigmoid (elementwise only)
    e = jnp.exp(-jnp.abs(v))
    return jnp.where(v >= 0, 1.0 / (1.0 + e), e / (1.0 + e))


# --------------------------------- fused kernel -------------------------------

def fused_kernel(x_ref,
                 w1b_ref, b1b_ref,      # (78,256), (1,256)   TabM layer 1 (k folded)
                 w2b_ref, b2b_ref,      # (256,256), (1,256)  TabM layer 2 (block-diag)
                 aw_ref,                # (1,78)               attention weights (row)
                 w1c_ref, bz_ref,       # (512,1536), (1,1536) merged conv1 expansion + bias
                 g2_ref, b2c_ref,       # (512,384), (1,384)   pool1-select @ conv2 expansion
                 g3_ref, b3c_ref,       # (128,48), (1,48)     pool2-select @ conv3 expansion
                 wf1_ref, bf1_ref,      # (16,32), (1,32)
                 wf2_ref, bf2_ref,      # (32,1), (1,1)
                 o_ref,                 # (Bt,1)
                 xyh_s):                # VMEM scratch (Bt,512) merged conv1 operand
    f32 = jnp.float32
    x = x_ref[...]                                                     # (Bt, 78)

    # attention branch (VPU/XLU reduction -- no MXU pass): y = x * sigmoid(x . aw)
    att = _sigmoid(jnp.sum(x * aw_ref[...], axis=-1, keepdims=True))   # (Bt, 1)
    y = x * att                                                        # (Bt, 78)

    # TabM ensemble, k folded into lanes (r/s/bias pre-folded into the weights)
    h1 = jnp.maximum(jnp.dot(x, w1b_ref[...], preferred_element_type=f32) + b1b_ref[...], 0.0)
    h2 = jnp.maximum(jnp.dot(h1, w2b_ref[...], preferred_element_type=f32) + b2b_ref[...], 0.0)

    # assemble merged conv1 operand [x | 0 | y | 0 | h2] at 128-aligned lane offsets
    bt = x.shape[0]
    zpad = jnp.zeros((bt, 128 - N_FEAT), f32)
    xyh_s[:, 0:N_FEAT] = x
    xyh_s[:, N_FEAT:128] = zpad
    xyh_s[:, 128:128 + N_FEAT] = y
    xyh_s[:, 128 + N_FEAT:256] = zpad
    xyh_s[:, 256:MERGE_K] = h2

    # conv1 as ONE dense matmul; output lanes are pre-arranged in 3 pool-window banks
    pre1 = jnp.dot(xyh_s[...], w1c_ref[...], preferred_element_type=f32) + bz_ref[...]  # (Bt,1536)
    # MaxPool1d(3): max over the three 512-lane-aligned banks; tanh after max (monotonic)
    m1 = jnp.tanh(jnp.maximum(jnp.maximum(pre1[:, 0:BANK1], pre1[:, BANK1:2 * BANK1]),
                              pre1[:, 2 * BANK1:3 * BANK1]))           # (Bt, 512)

    pre2 = jnp.dot(m1, g2_ref[...], preferred_element_type=f32) + b2c_ref[...]          # (Bt, 384)
    m2 = jnp.tanh(jnp.maximum(jnp.maximum(pre2[:, 0:BANK2], pre2[:, BANK2:2 * BANK2]),
                              pre2[:, 2 * BANK2:3 * BANK2]))           # (Bt, 128)

    pre3 = jnp.dot(m2, g3_ref[...], preferred_element_type=f32) + b3c_ref[...]          # (Bt, 48)
    feat = jnp.tanh(jnp.maximum(jnp.maximum(pre3[:, 0:C3], pre3[:, C3:2 * C3]),
                                pre3[:, 2 * C3:3 * C3]))               # (Bt, 16)

    f = jnp.tanh(jnp.dot(feat, wf1_ref[...], preferred_element_type=f32) + bf1_ref[...])
    o_ref[...] = _sigmoid(jnp.dot(f, wf2_ref[...], preferred_element_type=f32) + bf2_ref[...])


# ------------------------------- parameter prep -------------------------------
# One-time folding of PyTorch-layout params into lane-dense matrices (outside jit).

def _conv_dense(w, lin):
    """Dense block-Toeplitz matrix for a VALID Conv1d, flat channels-last layout."""
    cout, cin, kw = w.shape
    lout = lin - kw + 1
    G = np.zeros((lin * cin, lout * cout), np.float32)
    for l in range(lout):
        for j in range(kw):
            G[(l + j) * cin:(l + j) * cin + cin, l * cout:(l + 1) * cout] = w[:, :, j].T
    return G


def _pool_bank_reorder(M, lout, cout, n_keep, bank_pad):
    """Reorder flat channels-last output columns (l*cout + c) into 3 MaxPool1d(3)
    window banks: bank j holds positions l = 3i + j (i < n_keep) at column
    j*bank_pad + i*cout + c.  Positions >= 3*n_keep are dropped; padding cols are 0."""
    out = np.zeros(M.shape[:-1] + (3 * bank_pad,), np.float32)
    for l in range(3 * n_keep):
        j, i = l % 3, l // 3
        out[..., j * bank_pad + i * cout:j * bank_pad + (i + 1) * cout] = \
            M[..., l * cout:(l + 1) * cout]
    return out


def prepare_params(p):
    g = lambda a: np.asarray(a, dtype=np.float32)
    W1, r1, s1, b1 = g(p['W1']), g(p['r1']), g(p['s1']), g(p['b1'])
    W2, r2, s2, b2 = g(p['W2']), g(p['r2']), g(p['s2']), g(p['b2'])
    Wout, bout = g(p['Wout']), g(p['bout'])
    C1_w, C1_b = g(p['C1_w']), g(p['C1_b'])
    C2_w, C2_b = g(p['C2_w']), g(p['C2_b'])
    C3_w, C3_b = g(p['C3_w']), g(p['C3_b'])

    # --- TabM: fold per-member r/s/bias into lane-concatenated weights ---
    w1b = np.zeros((N_FEAT, KD), np.float32)
    b1b = np.zeros((1, KD), np.float32)
    w2b = np.zeros((KD, KD), np.float32)
    b2b = np.zeros((1, KD), np.float32)
    for k in range(K_ENSEMBLE):
        sl = slice(k * D_BLOCK, (k + 1) * D_BLOCK)
        w1b[:, sl] = (r1[k][:, None] * W1.T) * s1[k][None, :]
        b1b[0, sl] = b1[k]
        w2b[sl, sl] = (r2[k][:, None] * W2.T) * s2[k][None, :]
        b2b[0, sl] = b2[k]

    # --- conv1: dense expansion, bank-reordered for pool1, merged over input channels ---
    G1 = _pool_bank_reorder(_conv_dense(C1_w, N_FEAT), L1, C1, P1, BANK1)   # (780, 1536)
    A = [G1[c::10, :] for c in range(10)]                                   # per in-channel (78,1536)
    # fold TabM output head (Wout, bout) into conv1's t-channel expansions
    at = np.concatenate([Wout[k] @ A[2 + k] for k in range(K_ENSEMBLE)], axis=0)  # (256, 1536)
    bz = (_pool_bank_reorder(np.tile(C1_b, L1)[None, :], L1, C1, P1, BANK1)
          + sum(bout[k][None, :] @ A[2 + k] for k in range(K_ENSEMBLE)))          # (1, 1536)
    w1c = np.zeros((MERGE_K, W1FULL), np.float32)          # merged [x | 0 | y | 0 | h2] weight
    w1c[0:N_FEAT] = A[0]
    w1c[128:128 + N_FEAT] = A[1]
    w1c[256:MERGE_K] = at

    # --- conv2: bank-reordered dense expansion; K padded to pool1 bank width ---
    G2 = _pool_bank_reorder(_conv_dense(C2_w, P1), L2, C2, P2, BANK2)       # (400, 384)
    g2 = np.zeros((BANK1, W2FULL), np.float32)
    g2[0:P1 * C1] = G2
    b2c = _pool_bank_reorder(np.tile(C2_b, L2)[None, :], L2, C2, P2, BANK2) # (1, 384)

    # --- conv3: only pooled positions 0..2 are ever used by MaxPool1d(3) on length 4 ---
    G3 = _conv_dense(C3_w, P2)                                              # (112, 64)
    g3 = np.zeros((BANK2, 3 * C3), np.float32)
    g3[0:P2 * C2] = G3[:, 0:3 * C3]
    b3c = np.tile(C3_b, 3)[None, :]                                         # (1, 48)

    prepped = dict(
        w1b=w1b, b1b=b1b, w2b=w2b, b2b=b2b,
        aw=g(p['attn_w']).reshape(1, N_FEAT),
        w1c=w1c, bz=bz.astype(np.float32),
        g2=g2, b2c=b2c, g3=g3, b3c=b3c,
        wf1=g(p['F1_w']).T, bf1=g(p['F1_b'])[None, :],
        wf2=g(p['F2_w']).T, bf2=g(p['F2_b'])[None, :],
    )
    return {k: jnp.asarray(v) for k, v in prepped.items()}


# ----------------------------------- wrapper ----------------------------------

def _round_up(v, m):
    return (v + m - 1) // m * m


_WEIGHT_NAMES = ['w1b', 'b1b', 'w2b', 'b2b', 'aw', 'w1c', 'bz',
                 'g2', 'b2c', 'g3', 'b3c', 'wf1', 'bf1', 'wf2', 'bf2']


@jax.jit
def model_forward(x, prepped):
    B = x.shape[0]
    bt = min(512, _round_up(B, 8))                 # batch tile (multiple of 8, up to 512)
    if B > 64 and _round_up(B, 8) == bt:
        # would be a single grid step: split in two so both v7x cores get work
        bt = _round_up((B + 1) // 2, 8)
    bpad = _round_up(B, bt)
    if bpad != B:
        x = jnp.pad(x, ((0, bpad - B), (0, 0)))

    ins = [x] + [prepped[n] for n in _WEIGHT_NAMES]
    in_specs = [pl.BlockSpec((bt, N_FEAT), lambda i: (i, 0))]
    in_specs += [pl.BlockSpec(prepped[n].shape, lambda i: (0, 0))  # constant block -> DMA'd once
                 for n in _WEIGHT_NAMES]

    out = pl.pallas_call(
        fused_kernel,
        out_shape=jax.ShapeDtypeStruct((bpad, 1), jnp.float32),
        grid=(bpad // bt,),
        in_specs=in_specs,
        out_specs=pl.BlockSpec((bt, 1), lambda i: (i, 0)),
        scratch_shapes=[pltpu.VMEM((bt, MERGE_K), jnp.float32)],
        compiler_params=pltpu.CompilerParams(
            dimension_semantics=("parallel",),
            vmem_limit_bytes=48 * 1024 * 1024),
    )(*ins)
    return out[:B, 0]


# ------------------------------ pure-JAX reference ---------------------------

def reference_forward(x, p):
    B = x.shape[0]
    xe = jnp.broadcast_to(x[:, None, :], (B, K_ENSEMBLE, N_FEAT))
    h = jnp.einsum('bkd,od->bko', xe * p['r1'][None], p['W1']) * p['s1'][None] + p['b1'][None]
    h = jnp.maximum(h, 0.0)
    h = jnp.einsum('bko,po->bkp', h * p['r2'][None], p['W2']) * p['s2'][None] + p['b2'][None]
    h = jnp.maximum(h, 0.0)
    t = jnp.einsum('bko,koc->bkc', h, p['Wout']) + p['bout'][None]

    att = jax.nn.sigmoid(x @ p['attn_w'])[:, None]
    y = x * att
    z = jnp.concatenate([x[:, None, :], y[:, None, :], t], axis=1)    # (B, 10, 78) NCW

    def conv(v, w, b):
        o = lax.conv_general_dilated(v, w, window_strides=(1,), padding='VALID',
                                     dimension_numbers=('NCH', 'OIH', 'NCH'))
        return o + b[None, :, None]

    def pool(v):
        return lax.reduce_window(v, -jnp.inf, lax.max, (1, 1, 3), (1, 1, 3), 'VALID')

    v = pool(jnp.tanh(conv(z, p['C1_w'], p['C1_b'])))
    v = pool(jnp.tanh(conv(v, p['C2_w'], p['C2_b'])))
    v = pool(jnp.tanh(conv(v, p['C3_w'], p['C3_b'])))[:, :, 0]
    v = jnp.tanh(v @ p['F1_w'].T + p['F1_b'])
    v = jax.nn.sigmoid(v @ p['F2_w'].T + p['F2_b'])
    return v[:, 0]


# --------------------------------- params ------------------------------------

def init_params(key):
    ks = jax.random.split(key, 21)

    def nrm(k, shape, scale=0.1):
        return (scale * jax.random.normal(k, shape)).astype(jnp.float32)

    return {
        'attn_w': nrm(ks[0], (N_FEAT,), 1.0),
        # TabM (arch_type='tabm', k=8): shared Linear weights + per-member r/s/bias
        'r1': jnp.where(jax.random.bernoulli(ks[1], 0.5, (K_ENSEMBLE, N_FEAT)), 1.0, -1.0).astype(jnp.float32),
        'W1': nrm(ks[2], (D_BLOCK, N_FEAT)),
        's1': (1.0 + nrm(ks[3], (K_ENSEMBLE, D_BLOCK))).astype(jnp.float32),
        'b1': nrm(ks[4], (K_ENSEMBLE, D_BLOCK)),
        'r2': (1.0 + nrm(ks[5], (K_ENSEMBLE, D_BLOCK))).astype(jnp.float32),
        'W2': nrm(ks[6], (D_BLOCK, D_BLOCK)),
        's2': (1.0 + nrm(ks[7], (K_ENSEMBLE, D_BLOCK))).astype(jnp.float32),
        'b2': nrm(ks[8], (K_ENSEMBLE, D_BLOCK)),
        'Wout': nrm(ks[9], (K_ENSEMBLE, D_BLOCK, N_FEAT)),
        'bout': nrm(ks[10], (K_ENSEMBLE, N_FEAT)),
        # CNN head (PyTorch layouts: Conv1d (Cout, Cin, K), Linear (out, in))
        'C1_w': nrm(ks[11], (16, 10, 4)),
        'C1_b': nrm(ks[12], (16,)),
        'C2_w': nrm(ks[13], (16, 16, 4)),
        'C2_b': nrm(ks[14], (16,)),
        'C3_w': nrm(ks[15], (16, 16, 4)),
        'C3_b': nrm(ks[16], (16,)),
        'F1_w': nrm(ks[17], (32, 16)),
        'F1_b': nrm(ks[18], (32,)),
        'F2_w': nrm(ks[19], (1, 32)),
        'F2_b': nrm(ks[20], (1,)),
    }


# ----------------------------------- main -------------------------------------

if __name__ == "__main__":
    key = jax.random.PRNGKey(0)
    k_x, k_p = jax.random.split(key)
    B = 4
    x = jax.random.normal(k_x, (B, N_FEAT), dtype=jnp.float32)
    params = init_params(k_p)
    prepped = prepare_params(params)          # one-time param folding (outside jit)

    out = jax.block_until_ready(model_forward(x, prepped))
    ref = jax.block_until_ready(reference_forward(x, params))

    err = float(jnp.max(jnp.abs(out - ref)))
    assert out.shape == (B,), out.shape
    assert err < 5e-4, f"max abs diff vs reference: {err}"

    print("KERNEL_OK")
</pallas_src>

<mosaic_0001>
module attributes {stable_mosaic.version = 11 : i64} {
  func.func @fused_kernel(%arg0: i32, %arg1: memref<8x78xf32, #tpu.memory_space<vmem>>, %arg2: memref<78x256xf32, #tpu.memory_space<vmem>>, %arg3: memref<1x256xf32, #tpu.memory_space<vmem>>, %arg4: memref<256x256xf32, #tpu.memory_space<vmem>>, %arg5: memref<1x256xf32, #tpu.memory_space<vmem>>, %arg6: memref<1x78xf32, #tpu.memory_space<vmem>>, %arg7: memref<512x1536xf32, #tpu.memory_space<vmem>>, %arg8: memref<1x1536xf32, #tpu.memory_space<vmem>>, %arg9: memref<512x384xf32, #tpu.memory_space<vmem>>, %arg10: memref<1x384xf32, #tpu.memory_space<vmem>>, %arg11: memref<128x48xf32, #tpu.memory_space<vmem>>, %arg12: memref<1x48xf32, #tpu.memory_space<vmem>>, %arg13: memref<16x32xf32, #tpu.memory_space<vmem>>, %arg14: memref<1x32xf32, #tpu.memory_space<vmem>>, %arg15: memref<32x1xf32, #tpu.memory_space<vmem>>, %arg16: memref<1x1xf32, #tpu.memory_space<vmem>>, %arg17: memref<8x1xf32, #tpu.memory_space<vmem>>, %arg18: memref<8x512xf32, #tpu.memory_space<vmem>>) attributes {dimension_semantics = [#tpu.dimension_semantics<parallel>], iteration_bounds = array<i64: 1>, scalar_prefetch = 0 : i64, scratch_operands = 1 : i64, tpu.core_type = #tpu.core_type<tc>, window_params = [{transform_indices = @transform_0, window_bounds = array<i64: 8, 78>}, {pipeline_mode = #tpu.pipeline_mode<synchronous>, transform_indices = @transform_1, window_bounds = array<i64: 78, 256>}, {pipeline_mode = #tpu.pipeline_mode<synchronous>, transform_indices = @transform_2, window_bounds = array<i64: 1, 256>}, {pipeline_mode = #tpu.pipeline_mode<synchronous>, transform_indices = @transform_3, window_bounds = array<i64: 256, 256>}, {pipeline_mode = #tpu.pipeline_mode<synchronous>, transform_indices = @transform_4, window_bounds = array<i64: 1, 256>}, {pipeline_mode = #tpu.pipeline_mode<synchronous>, transform_indices = @transform_5, window_bounds = array<i64: 1, 78>}, {pipeline_mode = #tpu.pipeline_mode<synchronous>, transform_indices = @transform_6, window_bounds = array<i64: 512, 1536>}, {pipeline_mode = #tpu.pipeline_mode<synchronous>, transform_indices = @transform_7, window_bounds = array<i64: 1, 1536>}, {pipeline_mode = #tpu.pipeline_mode<synchronous>, transform_indices = @transform_8, window_bounds = array<i64: 512, 384>}, {pipeline_mode = #tpu.pipeline_mode<synchronous>, transform_indices = @transform_9, window_bounds = array<i64: 1, 384>}, {pipeline_mode = #tpu.pipeline_mode<synchronous>, transform_indices = @transform_10, window_bounds = array<i64: 128, 48>}, {pipeline_mode = #tpu.pipeline_mode<synchronous>, transform_indices = @transform_11, window_bounds = array<i64: 1, 48>}, {pipeline_mode = #tpu.pipeline_mode<synchronous>, transform_indices = @transform_12, window_bounds = array<i64: 16, 32>}, {pipeline_mode = #tpu.pipeline_mode<synchronous>, transform_indices = @transform_13, window_bounds = array<i64: 1, 32>}, {pipeline_mode = #tpu.pipeline_mode<synchronous>, transform_indices = @transform_14, window_bounds = array<i64: 32, 1>}, {pipeline_mode = #tpu.pipeline_mode<synchronous>, transform_indices = @transform_15, window_bounds = array<i64: 1, 1>}, {transform_indices = @transform_16, window_bounds = array<i64: 8, 1>}]} {
    %c0 = arith.constant 0 : index
    %c0_0 = arith.constant 0 : index
    %0 = vector.load %arg1[%c0, %c0_0] : memref<8x78xf32, #tpu.memory_space<vmem>>, vector<8x78xf32>
    %c0_1 = arith.constant 0 : index
    %c0_2 = arith.constant 0 : index
    %1 = vector.load %arg6[%c0_1, %c0_2] : memref<1x78xf32, #tpu.memory_space<vmem>>, vector<1x78xf32>
    %2 = vector.broadcast %1 : vector<1x78xf32> to vector<8x78xf32>
    %3 = arith.mulf %0, %2 : vector<8x78xf32>
    %cst = arith.constant dense<0.000000e+00> : vector<8xf32>
    %4 = vector.multi_reduction <add>, %3, %cst [1] : vector<8x78xf32> to vector<8xf32>
    %5 = vector.shape_cast %4 : vector<8xf32> to vector<8x1xf32>
    %6 = math.absf %5 : vector<8x1xf32>
    %cst_3 = arith.constant 0.000000e+00 : f32
    %7 = vector.broadcast %cst_3 : f32 to vector<8x1xf32>
    %8 = arith.subf %7, %6 : vector<8x1xf32>
    %9 = math.exp %8 : vector<8x1xf32>
    %cst_4 = arith.constant 0.000000e+00 : f32
    %10 = vector.broadcast %cst_4 : f32 to vector<8x1xf32>
    %11 = arith.cmpf oge, %5, %10 : vector<8x1xf32>
    %cst_5 = arith.constant 1.000000e+00 : f32
    %12 = vector.broadcast %cst_5 : f32 to vector<8x1xf32>
    %13 = arith.addf %12, %9 : vector<8x1xf32>
    %cst_6 = arith.constant 1.000000e+00 : f32
    %14 = vector.broadcast %cst_6 : f32 to vector<8x1xf32>
    %15 = arith.divf %14, %13 : vector<8x1xf32>
    %cst_7 = arith.constant 1.000000e+00 : f32
    %16 = vector.broadcast %cst_7 : f32 to vector<8x1xf32>
    %17 = arith.addf %16, %9 : vector<8x1xf32>
    %18 = arith.divf %9, %17 : vector<8x1xf32>
    %19 = arith.select %11, %15, %18 : vector<8x1xi1>, vector<8x1xf32>
    %20 = vector.broadcast %19 : vector<8x1xf32> to vector<8x78xf32>
    %21 = arith.mulf %0, %20 : vector<8x78xf32>
    %c0_8 = arith.constant 0 : index
    %c0_9 = arith.constant 0 : index
    %22 = vector.load %arg2[%c0_8, %c0_9] : memref<78x256xf32, #tpu.memory_space<vmem>>, vector<78x256xf32>
    %cst_10 = arith.constant dense<0.000000e+00> : vector<8x256xf32>
    %23 = tpu.matmul %0, %22, %cst_10 {dimension_numbers = #tpu.dot_dimension_numbers<[1], [0], [0], [1], [0, 0, 1, 1], [], []>} : vector<8x78xf32>, vector<78x256xf32>, vector<8x256xf32> -> vector<8x256xf32>
    %c0_11 = arith.constant 0 : index
    %c0_12 = arith.constant 0 : index
    %24 = vector.load %arg3[%c0_11, %c0_12] : memref<1x256xf32, #tpu.memory_space<vmem>>, vector<1x256xf32>
    %25 = vector.broadcast %24 : vector<1x256xf32> to vector<8x256xf32>
    %26 = arith.addf %23, %25 : vector<8x256xf32>
    %cst_13 = arith.constant 0.000000e+00 : f32
    %27 = vector.broadcast %cst_13 : f32 to vector<8x256xf32>
    %28 = arith.maximumf %26, %27 : vector<8x256xf32>
    %c0_14 = arith.constant 0 : index
    %c0_15 = arith.constant 0 : index
    %29 = vector.load %arg4[%c0_14, %c0_15] : memref<256x256xf32, #tpu.memory_space<vmem>>, vector<256x256xf32>
    %cst_16 = arith.constant dense<0.000000e+00> : vector<8x256xf32>
    %30 = tpu.matmul %28, %29, %cst_16 {dimension_numbers = #tpu.dot_dimension_numbers<[1], [0], [0], [1], [0, 0, 1, 1], [], []>} : vector<8x256xf32>, vector<256x256xf32>, vector<8x256xf32> -> vector<8x256xf32>
    %c0_17 = arith.constant 0 : index
    %c0_18 = arith.constant 0 : index
    %31 = vector.load %arg5[%c0_17, %c0_18] : memref<1x256xf32, #tpu.memory_space<vmem>>, vector<1x256xf32>
    %32 = vector.broadcast %31 : vector<1x256xf32> to vector<8x256xf32>
    %33 = arith.addf %30, %32 : vector<8x256xf32>
    %cst_19 = arith.constant 0.000000e+00 : f32
    %34 = vector.broadcast %cst_19 : f32 to vector<8x256xf32>
    %35 = arith.maximumf %33, %34 : vector<8x256xf32>
    %cst_20 = arith.constant 0.000000e+00 : f32
    %36 = vector.broadcast %cst_20 : f32 to vector<8x50xf32>
    %c0_21 = arith.constant 0 : index
    %c0_22 = arith.constant 0 : index
    %37 = vector.load %arg18[%c0_21, %c0_22] : memref<8x512xf32, #tpu.memory_space<vmem>>, vector<8x78xf32>
    tpu.vector_store %arg18[%c0_21, %c0_22], %0 {strides = array<i32>} : memref<8x512xf32, #tpu.memory_space<vmem>>, vector<8x78xf32>,
    %c0_23 = arith.constant 0 : index
    %c78 = arith.constant 78 : index
    %38 = vector.load %arg18[%c0_23, %c78] : memref<8x512xf32, #tpu.memory_space<vmem>>, vector<8x50xf32>
    tpu.vector_store %arg18[%c0_23, %c78], %36 {strides = array<i32>} : memref<8x512xf32, #tpu.memory_space<vmem>>, vector<8x50xf32>,
    %c0_24 = arith.constant 0 : index
    %c128 = arith.constant 128 : index
    %39 = vector.load %arg18[%c0_24, %c128] : memref<8x512xf32, #tpu.memory_space<vmem>>, vector<8x78xf32>
    tpu.vector_store %arg18[%c0_24, %c128], %21 {strides = array<i32>} : memref<8x512xf32, #tpu.memory_space<vmem>>, vector<8x78xf32>,
    %c0_25 = arith.constant 0 : index
    %c206 = arith.constant 206 : index
    %40 = vector.load %arg18[%c0_25, %c206] : memref<8x512xf32, #tpu.memory_space<vmem>>, vector<8x50xf32>
    tpu.vector_store %arg18[%c0_25, %c206], %36 {strides = array<i32>} : memref<8x512xf32, #tpu.memory_space<vmem>>, vector<8x50xf32>,
    %c0_26 = arith.constant 0 : index
    %c256 = arith.constant 256 : index
    %41 = vector.load %arg18[%c0_26, %c256] : memref<8x512xf32, #tpu.memory_space<vmem>>, vector<8x256xf32>
    tpu.vector_store %arg18[%c0_26, %c256], %35 {strides = array<i32>} : memref<8x512xf32, #tpu.memory_space<vmem>>, vector<8x256xf32>,
    %c0_27 = arith.constant 0 : index
    %c0_28 = arith.constant 0 : index
    %42 = vector.load %arg18[%c0_27, %c0_28] : memref<8x512xf32, #tpu.memory_space<vmem>>, vector<8x512xf32>
    %c0_29 = arith.constant 0 : index
    %c0_30 = arith.constant 0 : index
    %43 = vector.load %arg7[%c0_29, %c0_30] : memref<512x1536xf32, #tpu.memory_space<vmem>>, vector<512x1536xf32>
    %cst_31 = arith.constant dense<0.000000e+00> : vector<8x1536xf32>
    %44 = tpu.matmul %42, %43, %cst_31 {dimension_numbers = #tpu.dot_dimension_numbers<[1], [0], [0], [1], [0, 0, 1, 1], [], []>} : vector<8x512xf32>, vector<512x1536xf32>, vector<8x1536xf32> -> vector<8x1536xf32>
    %c0_32 = arith.constant 0 : index
    %c0_33 = arith.constant 0 : index
    %45 = vector.load %arg8[%c0_32, %c0_33] : memref<1x1536xf32, #tpu.memory_space<vmem>>, vector<1x1536xf32>
    %46 = vector.broadcast %45 : vector<1x1536xf32> to vector<8x1536xf32>
    %47 = arith.addf %44, %46 : vector<8x1536xf32>
    %48 = vector.extract_strided_slice %47 {offsets = [0, 0], sizes = [8, 512], strides = [1, 1]} : vector<8x1536xf32> to vector<8x512xf32>
    %49 = vector.extract_strided_slice %47 {offsets = [0, 512], sizes = [8, 512], strides = [1, 1]} : vector<8x1536xf32> to vector<8x512xf32>
    %50 = arith.maximumf %48, %49 : vector<8x512xf32>
    %51 = vector.extract_strided_slice %47 {offsets = [0, 1024], sizes = [8, 512], strides = [1, 1]} : vector<8x1536xf32> to vector<8x512xf32>
    %52 = arith.maximumf %50, %51 : vector<8x512xf32>
    %53 = math.tanh %52 : vector<8x512xf32>
    %c0_34 = arith.constant 0 : index
    %c0_35 = arith.constant 0 : index
    %54 = vector.load %arg9[%c0_34, %c0_35] : memref<512x384xf32, #tpu.memory_space<vmem>>, vector<512x384xf32>
    %cst_36 = arith.constant dense<0.000000e+00> : vector<8x384xf32>
    %55 = tpu.matmul %53, %54, %cst_36 {dimension_numbers = #tpu.dot_dimension_numbers<[1], [0], [0], [1], [0, 0, 1, 1], [], []>} : vector<8x512xf32>, vector<512x384xf32>, vector<8x384xf32> -> vector<8x384xf32>
    %c0_37 = arith.constant 0 : index
    %c0_38 = arith.constant 0 : index
    %56 = vector.load %arg10[%c0_37, %c0_38] : memref<1x384xf32, #tpu.memory_space<vmem>>, vector<1x384xf32>
    %57 = vector.broadcast %56 : vector<1x384xf32> to vector<8x384xf32>
    %58 = arith.addf %55, %57 : vector<8x384xf32>
    %59 = vector.extract_strided_slice %58 {offsets = [0, 0], sizes = [8, 128], strides = [1, 1]} : vector<8x384xf32> to vector<8x128xf32>
    %60 = vector.extract_strided_slice %58 {offsets = [0, 128], sizes = [8, 128], strides = [1, 1]} : vector<8x384xf32> to vector<8x128xf32>
    %61 = arith.maximumf %59, %60 : vector<8x128xf32>
    %62 = vector.extract_strided_slice %58 {offsets = [0, 256], sizes = [8, 128], strides = [1, 1]} : vector<8x384xf32> to vector<8x128xf32>
    %63 = arith.maximumf %61, %62 : vector<8x128xf32>
    %64 = math.tanh %63 : vector<8x128xf32>
    %c0_39 = arith.constant 0 : index
    %c0_40 = arith.constant 0 : index
    %65 = vector.load %arg11[%c0_39, %c0_40] : memref<128x48xf32, #tpu.memory_space<vmem>>, vector<128x48xf32>
    %cst_41 = arith.constant dense<0.000000e+00> : vector<8x48xf32>
    %66 = tpu.matmul %64, %65, %cst_41 {dimension_numbers = #tpu.dot_dimension_numbers<[1], [0], [0], [1], [0, 0, 1, 1], [], []>} : vector<8x128xf32>, vector<128x48xf32>, vector<8x48xf32> -> vector<8x48xf32>
    %c0_42 = arith.constant 0 : index
    %c0_43 = arith.constant 0 : index
    %67 = vector.load %arg12[%c0_42, %c0_43] : memref<1x48xf32, #tpu.memory_space<vmem>>, vector<1x48xf32>
    %68 = vector.broadcast %67 : vector<1x48xf32> to vector<8x48xf32>
    %69 = arith.addf %66, %68 : vector<8x48xf32>
    %70 = vector.extract_strided_slice %69 {offsets = [0, 0], sizes = [8, 16], strides = [1, 1]} : vector<8x48xf32> to vector<8x16xf32>
    %71 = vector.extract_strided_slice %69 {offsets = [0, 16], sizes = [8, 16], strides = [1, 1]} : vector<8x48xf32> to vector<8x16xf32>
    %72 = arith.maximumf %70, %71 : vector<8x16xf32>
    %73 = vector.extract_strided_slice %69 {offsets = [0, 32], sizes = [8, 16], strides = [1, 1]} : vector<8x48xf32> to vector<8x16xf32>
    %74 = arith.maximumf %72, %73 : vector<8x16xf32>
    %75 = math.tanh %74 : vector<8x16xf32>
    %c0_44 = arith.constant 0 : index
    %c0_45 = arith.constant 0 : index
    %76 = vector.load %arg13[%c0_44, %c0_45] : memref<16x32xf32, #tpu.memory_space<vmem>>, vector<16x32xf32>
    %cst_46 = arith.constant dense<0.000000e+00> : vector<8x32xf32>
    %77 = tpu.matmul %75, %76, %cst_46 {dimension_numbers = #tpu.dot_dimension_numbers<[1], [0], [0], [1], [0, 0, 1, 1], [], []>} : vector<8x16xf32>, vector<16x32xf32>, vector<8x32xf32> -> vector<8x32xf32>
    %c0_47 = arith.constant 0 : index
    %c0_48 = arith.constant 0 : index
    %78 = vector.load %arg14[%c0_47, %c0_48] : memref<1x32xf32, #tpu.memory_space<vmem>>, vector<1x32xf32>
    %79 = vector.broadcast %78 : vector<1x32xf32> to vector<8x32xf32>
    %80 = arith.addf %77, %79 : vector<8x32xf32>
    %81 = math.tanh %80 : vector<8x32xf32>
    %c0_49 = arith.constant 0 : index
    %c0_50 = arith.constant 0 : index
    %82 = vector.load %arg15[%c0_49, %c0_50] : memref<32x1xf32, #tpu.memory_space<vmem>>, vector<32x1xf32>
    %cst_51 = arith.constant dense<0.000000e+00> : vector<8x1xf32>
    %83 = tpu.matmul %81, %82, %cst_51 {dimension_numbers = #tpu.dot_dimension_numbers<[1], [0], [0], [1], [0, 0, 1, 1], [], []>} : vector<8x32xf32>, vector<32x1xf32>, vector<8x1xf32> -> vector<8x1xf32>
    %c0_52 = arith.constant 0 : index
    %c0_53 = arith.constant 0 : index
    %84 = vector.load %arg16[%c0_52, %c0_53] : memref<1x1xf32, #tpu.memory_space<vmem>>, vector<1x1xf32>
    %85 = vector.broadcast %84 : vector<1x1xf32> to vector<8x1xf32>
    %86 = arith.addf %83, %85 : vector<8x1xf32>
    %87 = math.absf %86 : vector<8x1xf32>
    %cst_54 = arith.constant 0.000000e+00 : f32
    %88 = vector.broadcast %cst_54 : f32 to vector<8x1xf32>
    %89 = arith.subf %88, %87 : vector<8x1xf32>
    %90 = math.exp %89 : vector<8x1xf32>
    %cst_55 = arith.constant 0.000000e+00 : f32
    %91 = vector.broadcast %cst_55 : f32 to vector<8x1xf32>
    %92 = arith.cmpf oge, %86, %91 : vector<8x1xf32>
    %cst_56 = arith.constant 1.000000e+00 : f32
    %93 = vector.broadcast %cst_56 : f32 to vector<8x1xf32>
    %94 = arith.addf %93, %90 : vector<8x1xf32>
    %cst_57 = arith.constant 1.000000e+00 : f32
    %95 = vector.broadcast %cst_57 : f32 to vector<8x1xf32>
    %96 = arith.divf %95, %94 : vector<8x1xf32>
    %cst_58 = arith.constant 1.000000e+00 : f32
    %97 = vector.broadcast %cst_58 : f32 to vector<8x1xf32>
    %98 = arith.addf %97, %90 : vector<8x1xf32>
    %99 = arith.divf %90, %98 : vector<8x1xf32>
    %100 = arith.select %92, %96, %99 : vector<8x1xi1>, vector<8x1xf32>
    %c0_59 = arith.constant 0 : index
    %c0_60 = arith.constant 0 : index
    %101 = vector.load %arg17[%c0_59, %c0_60] : memref<8x1xf32, #tpu.memory_space<vmem>>, vector<8x1xf32>
    tpu.vector_store %arg17[%c0_59, %c0_60], %100 {strides = array<i32>} : memref<8x1xf32, #tpu.memory_space<vmem>>, vector<8x1xf32>,
    return
  }
  func.func @transform_0(%arg0: i32) -> (i32, i32) {
    %c0_i32 = arith.constant 0 : i32
    %c0_i32_0 = arith.constant 0 : i32
    return %arg0, %c0_i32 : i32, i32
  }
  func.func @transform_1(%arg0: i32) -> (i32, i32) {
    %c0_i32 = arith.constant 0 : i32
    %c0_i32_0 = arith.constant 0 : i32
    %c0_i32_1 = arith.constant 0 : i32
    return %c0_i32, %c0_i32_0 : i32, i32
  }
  func.func @transform_2(%arg0: i32) -> (i32, i32) {
    %c0_i32 = arith.constant 0 : i32
    %c0_i32_0 = arith.constant 0 : i32
    %c0_i32_1 = arith.constant 0 : i32
    return %c0_i32, %c0_i32_0 : i32, i32
  }
  func.func @transform_3(%arg0: i32) -> (i32, i32) {
    %c0_i32 = arith.constant 0 : i32
    %c0_i32_0 = arith.constant 0 : i32
    %c0_i32_1 = arith.constant 0 : i32
    return %c0_i32, %c0_i32_0 : i32, i32
  }
  func.func @transform_4(%arg0: i32) -> (i32, i32) {
    %c0_i32 = arith.constant 0 : i32
    %c0_i32_0 = arith.constant 0 : i32
    %c0_i32_1 = arith.constant 0 : i32
    return %c0_i32, %c0_i32_0 : i32, i32
  }
  func.func @transform_5(%arg0: i32) -> (i32, i32) {
    %c0_i32 = arith.constant 0 : i32
    %c0_i32_0 = arith.constant 0 : i32
    %c0_i32_1 = arith.constant 0 : i32
    return %c0_i32, %c0_i32_0 : i32, i32
  }
  func.func @transform_6(%arg0: i32) -> (i32, i32) {
    %c0_i32 = arith.constant 0 : i32
    %c0_i32_0 = arith.constant 0 : i32
    %c0_i32_1 = arith.constant 0 : i32
    return %c0_i32, %c0_i32_0 : i32, i32
  }
  func.func @transform_7(%arg0: i32) -> (i32, i32) {
    %c0_i32 = arith.constant 0 : i32
    %c0_i32_0 = arith.constant 0 : i32
    %c0_i32_1 = arith.constant 0 : i32
    return %c0_i32, %c0_i32_0 : i32, i32
  }
  func.func @transform_8(%arg0: i32) -> (i32, i32) {
    %c0_i32 = arith.constant 0 : i32
    %c0_i32_0 = arith.constant 0 : i32
    %c0_i32_1 = arith.constant 0 : i32
    return %c0_i32, %c0_i32_0 : i32, i32
  }
  func.func @transform_9(%arg0: i32) -> (i32, i32) {
    %c0_i32 = arith.constant 0 : i32
    %c0_i32_0 = arith.constant 0 : i32
    %c0_i32_1 = arith.constant 0 : i32
    return %c0_i32, %c0_i32_0 : i32, i32
  }
  func.func @transform_10(%arg0: i32) -> (i32, i32) {
    %c0_i32 = arith.constant 0 : i32
    %c0_i32_0 = arith.constant 0 : i32
    %c0_i32_1 = arith.constant 0 : i32
    return %c0_i32, %c0_i32_0 : i32, i32
  }
  func.func @transform_11(%arg0: i32) -> (i32, i32) {
    %c0_i32 = arith.constant 0 : i32
    %c0_i32_0 = arith.constant 0 : i32
    %c0_i32_1 = arith.constant 0 : i32
    return %c0_i32, %c0_i32_0 : i32, i32
  }
  func.func @transform_12(%arg0: i32) -> (i32, i32) {
    %c0_i32 = arith.constant 0 : i32
    %c0_i32_0 = arith.constant 0 : i32
    %c0_i32_1 = arith.constant 0 : i32
    return %c0_i32, %c0_i32_0 : i32, i32
  }
  func.func @transform_13(%arg0: i32) -> (i32, i32) {
    %c0_i32 = arith.constant 0 : i32
    %c0_i32_0 = arith.constant 0 : i32
    %c0_i32_1 = arith.constant 0 : i32
    return %c0_i32, %c0_i32_0 : i32, i32
  }
  func.func @transform_14(%arg0: i32) -> (i32, i32) {
    %c0_i32 = arith.constant 0 : i32
    %c0_i32_0 = arith.constant 0 : i32
    %c0_i32_1 = arith.constant 0 : i32
    return %c0_i32, %c0_i32_0 : i32, i32
  }
  func.func @transform_15(%arg0: i32) -> (i32, i32) {
    %c0_i32 = arith.constant 0 : i32
    %c0_i32_0 = arith.constant 0 : i32
    %c0_i32_1 = arith.constant 0 : i32
    return %c0_i32, %c0_i32_0 : i32, i32
  }
  func.func @transform_16(%arg0: i32) -> (i32, i32) {
    %c0_i32 = arith.constant 0 : i32
    %c0_i32_0 = arith.constant 0 : i32
    return %arg0, %c0_i32 : i32, i32
  }
}

</mosaic_0001>

<llo_original>
// kernel: model_forward.1
$region0: #{model_forward.1}
  #allocation0 [shape = 'u32[]', space=smem, size = 0x4, offset = 0x4, fixed_abs, tag = 'smem constant byte address 0x4 - core index']
  #allocation1 [shape = 'u32[72,128]{1,0:T(1,128)}', space=vmem, size = 0x9000, scoped, tag = 'internal scratch']
  #allocation2 [shape = 'f32[8,512]{1,0:T(8,128)}', space=vmem, size = 0x4000, scoped, tag = 'scratch operand']
  #allocation3 [shape = 'f32[1,1]{1,0:T(1,128)S(1)}', space=vmem, size = 0x200, scoped, tag = 'scoped memory for model_forward.1']
  %s0 = inlined_call_operand.vmem [shape: f32[8,78], index: 0, kind: input, shape index: {}]
  %s1 = inlined_call_operand.hbm [shape: f32[78,256], index: 1, kind: input, shape index: {}]
  %s2 = inlined_call_operand.hbm [shape: f32[1,256], index: 2, kind: input, shape index: {}]
  %s3 = inlined_call_operand.hbm [shape: f32[256,256], index: 3, kind: input, shape index: {}]
  %s4 = inlined_call_operand.hbm [shape: f32[1,256], index: 4, kind: input, shape index: {}]
  %s5 = inlined_call_operand.hbm [shape: f32[1,78], index: 5, kind: input, shape index: {}]
  %s6 = inlined_call_operand.hbm [shape: f32[512,1536], index: 6, kind: input, shape index: {}]
  %s7 = inlined_call_operand.hbm [shape: f32[1,1536], index: 7, kind: input, shape index: {}]
  %s8 = inlined_call_operand.hbm [shape: f32[512,384], index: 8, kind: input, shape index: {}]
  %s9 = inlined_call_operand.hbm [shape: f32[1,384], index: 9, kind: input, shape index: {}]
  %s10 = inlined_call_operand.vmem [shape: f32[128,48], index: 10, kind: input, shape index: {}]
  %s11 = inlined_call_operand.hbm [shape: f32[1,48], index: 11, kind: input, shape index: {}]
  %s12 = inlined_call_operand.hbm [shape: f32[16,32], index: 12, kind: input, shape index: {}]
  %s13 = inlined_call_operand.hbm [shape: f32[1,32], index: 13, kind: input, shape index: {}]
  %s14 = inlined_call_operand.vmem [shape: f32[32,1], index: 14, kind: input, shape index: {}]
  %s15 = inlined_call_operand.<no memory space> [shape: f32[1,1], index: 15, kind: input, shape index: {}]
  %s16 = inlined_call_operand.vmem [shape: f32[8,1], index: 16, kind: output, shape index: {}]
  %s17 = sld [smem:[#allocation0]]
  $region122: #{model_forward.1} parent=0
    _
  %s19 = ssub.s32 1, %s17
  %s20 = scalar_select 0, %s19, %s17
  %v21 = vstv %s15
  %22 = vst [vmem:[#allocation3] sm:$0x1] %v21
  $region1: #{model_forward.1} parent=0
    #allocation4 [shape = 'u8[81920]{0}', space=vmem, size = 0x14000, scoped, tag = 'input window, operand 1, single buffered']
    #allocation5 [shape = 's32[1]{0}', space=sflag, size = 0x4, scoped, tag = 'scoped memory for model_forward.1']
    #allocation6 [shape = 'u8[1024]{0}', space=vmem, size = 0x400, scoped, tag = 'input window, operand 2, single buffered']
    #allocation7 [shape = 's32[1]{0}', space=sflag, size = 0x4, scoped, tag = 'scoped memory for model_forward.1']
    #allocation8 [shape = 'u8[262144]{0}', space=vmem, size = 0x40000, scoped, tag = 'input window, operand 3, single buffered']
    #allocation9 [shape = 'u8[1024]{0}', space=vmem, size = 0x400, scoped, tag = 'input window, operand 4, single buffered']
    #allocation10 [shape = 's32[1]{0}', space=sflag, size = 0x4, scoped, tag = 'scoped memory for model_forward.1']
    #allocation11 [shape = 'u8[512]{0}', space=vmem, size = 0x400, scoped, tag = 'input window, operand 5, single buffered']
    #allocation12 [shape = 'u8[3145728]{0}', space=vmem, size = 0x300000, scoped, tag = 'input window, operand 6, single buffered']
    #allocation13 [shape = 's32[1]{0}', space=sflag, size = 0x4, scoped, tag = 'scoped memory for model_forward.1']
    #allocation14 [shape = 'u8[6144]{0}', space=vmem, size = 0x1800, scoped, tag = 'input window, operand 7, single buffered']
    #allocation15 [shape = 'u8[786432]{0}', space=vmem, size = 0xc0000, scoped, tag = 'input window, operand 8, single buffered']
    #allocation16 [shape = 's32[1]{0}', space=sflag, size = 0x4, scoped, tag = 'scoped memory for model_forward.1']
    #allocation17 [shape = 'u8[1536]{0}', space=vmem, size = 0x800, scoped, tag = 'input window, operand 9, single buffered']
    #allocation18 [shape = 'u8[512]{0}', space=vmem, size = 0x400, scoped, tag = 'input window, operand 11, single buffered']
    #allocation19 [shape = 's32[1]{0}', space=sflag, size = 0x4, scoped, tag = 'scoped memory for model_forward.1']
    #allocation20 [shape = 'u8[8192]{0}', space=vmem, size = 0x2000, scoped, tag = 'input window, operand 12, single buffered']
    #allocation21 [shape = 'u8[512]{0}', space=vmem, size = 0x400, scoped, tag = 'input window, operand 13, single buffered']
    #allocation22 [shape = 's32[1]{0}', space=sflag, size = 0x4, scoped, tag = 'scoped memory for model_forward.1']
    %23 = vsyncpa [#allocation5], 0
    %24 = vsyncpa [#allocation7], 0
    %25 = vsyncpa [#allocation10], 0
    %26 = vsyncpa [#allocation13], 0
    %27 = vsyncpa [#allocation16], 0
    %28 = vsyncpa [#allocation19], 0
    %29 = vsyncpa [#allocation22], 0
    // Predicated region
    $region2: #{model_forward.1} parent=1 // pred_check
      _
    $region3: #{model_forward.1} parent=1 // pred_check_branch
      %31 = sbr.rel (0) target = $region5
    $region4: #{model_forward.1} parent=1 // pred_region
      _
    $region5: #{model_forward.1} parent=1 // pred_fallthru
      _
    // Predicated region
    $region6: #{model_forward.1} parent=1 // pred_check
      _
    $region7: #{model_forward.1} parent=1 // pred_check_branch
      %33 = sbr.rel (0) target = $region9
    $region8: #{model_forward.1} parent=1 // pred_region
      %35 = vsyncadd [#allocation5], 0
      %s36 = sshll.u32 %s1, 4
      %s37 = int_to_ptr.hbm [resolvable:$true] %s36
      %s38 = sshll.u32 [#allocation4], 4
      %s39 = int_to_ptr.vmem [resolvable:$true] %s38
      %44 = dma.hbm_to_vmem [thread:$0]  %s37, 2560, %s39, [#allocation5], 256, 256, 16
    $region9: #{model_forward.1} parent=1 // pred_fallthru
      _
    // Predicated region
    $region10: #{model_forward.1} parent=1 // pred_check
      _
    $region11: #{model_forward.1} parent=1 // pred_check_branch
      %46 = sbr.rel (0) target = $region13
    $region12: #{model_forward.1} parent=1 // pred_region
      %48 = vsyncadd [#allocation7], 0
      %s50 = sshll.u32 %s2, 4
      %s51 = int_to_ptr.hbm [resolvable:$true] %s50
      %s52 = sshll.u32 [#allocation6], 4
      %s53 = int_to_ptr.vmem [resolvable:$true] %s52
      %55 = dma.hbm_to_vmem [thread:$0]  %s51, 32, %s53, [#allocation7]
    $region13: #{model_forward.1} parent=1 // pred_fallthru
      _
    // Predicated region
    $region14: #{model_forward.1} parent=1 // pred_check
      _
    $region15: #{model_forward.1} parent=1 // pred_check_branch
      %57 = sbr.rel (0) target = $region17
    $region16: #{model_forward.1} parent=1 // pred_region
      %59 = vsyncadd [#allocation7], 0
      %s60 = sshll.u32 %s3, 4
      %s61 = int_to_ptr.hbm [resolvable:$true] %s60
      %s62 = sshll.u32 [#allocation8], 4
      %s63 = int_to_ptr.vmem [resolvable:$true] %s62
      %68 = dma.hbm_to_vmem [thread:$0]  %s61, 8192, %s63, [#allocation7], 256, 256, 16
    $region17: #{model_forward.1} parent=1 // pred_fallthru
      _
    // Predicated region
    $region18: #{model_forward.1} parent=1 // pred_check
      _
    $region19: #{model_forward.1} parent=1 // pred_check_branch
      %70 = sbr.rel (0) target = $region21
    $region20: #{model_forward.1} parent=1 // pred_region
      %72 = vsyncadd [#allocation10], 0
      %s74 = sshll.u32 %s4, 4
      %s75 = int_to_ptr.hbm [resolvable:$true] %s74
      %s76 = sshll.u32 [#allocation9], 4
      %s77 = int_to_ptr.vmem [resolvable:$true] %s76
      %79 = dma.hbm_to_vmem [thread:$0]  %s75, 32, %s77, [#allocation10]
    $region21: #{model_forward.1} parent=1 // pred_fallthru
      _
    // Predicated region
    $region22: #{model_forward.1} parent=1 // pred_check
      _
    $region23: #{model_forward.1} parent=1 // pred_check_branch
      %81 = sbr.rel (0) target = $region25
    $region24: #{model_forward.1} parent=1 // pred_region
      %83 = vsyncadd [#allocation10], 0
      %s85 = sshll.u32 %s5, 4
      %s86 = int_to_ptr.hbm [resolvable:$true] %s85
      %s87 = sshll.u32 [#allocation11], 4
      %s88 = int_to_ptr.vmem [resolvable:$true] %s87
      %90 = dma.hbm_to_vmem [thread:$0]  %s86, 16, %s88, [#allocation10]
    $region25: #{model_forward.1} parent=1 // pred_fallthru
      _
    // Predicated region
    $region26: #{model_forward.1} parent=1 // pred_check
      _
    $region27: #{model_forward.1} parent=1 // pred_check_branch
      %92 = sbr.rel (0) target = $region29
    $region28: #{model_forward.1} parent=1 // pred_region
      %94 = vsyncadd [#allocation13], 0
      %s95 = sshll.u32 %s6, 4
      %s96 = int_to_ptr.hbm [resolvable:$true] %s95
      %s97 = sshll.u32 [#allocation12], 4
      %s98 = int_to_ptr.vmem [resolvable:$true] %s97
      %103 = dma.hbm_to_vmem [thread:$0]  %s96, 98304, %s98, [#allocation13], 1536, 1536, 96
    $region29: #{model_forward.1} parent=1 // pred_fallthru
      _
    // Predicated region
    $region30: #{model_forward.1} parent=1 // pred_check
      _
    $region31: #{model_forward.1} parent=1 // pred_check_branch
      %105 = sbr.rel (0) target = $region33
    $region32: #{model_forward.1} parent=1 // pred_region
      %107 = vsyncadd [#allocation13], 0
      %s109 = sshll.u32 %s7, 4
      %s110 = int_to_ptr.hbm [resolvable:$true] %s109
      %s111 = sshll.u32 [#allocation14], 4
      %s112 = int_to_ptr.vmem [resolvable:$true] %s111
      %114 = dma.hbm_to_vmem [thread:$0]  %s110, 192, %s112, [#allocation13]
    $region33: #{model_forward.1} parent=1 // pred_fallthru
      _
    // Predicated region
    $region34: #{model_forward.1} parent=1 // pred_check
      _
    $region35: #{model_forward.1} parent=1 // pred_check_branch
      %116 = sbr.rel (0) target = $region37
    $region36: #{model_forward.1} parent=1 // pred_region
      %118 = vsyncadd [#allocation16], 0
      %s119 = sshll.u32 %s8, 4
      %s120 = int_to_ptr.hbm [resolvable:$true] %s119
      %s121 = sshll.u32 [#allocation15], 4
      %s122 = int_to_ptr.vmem [resolvable:$true] %s121
      %127 = dma.hbm_to_vmem [thread:$0]  %s120, 24576, %s122, [#allocation16], 384, 384, 24
    $region37: #{model_forward.1} parent=1 // pred_fallthru
      _
    // Predicated region
    $region38: #{model_forward.1} parent=1 // pred_check
      _
    $region39: #{model_forward.1} parent=1 // pred_check_branch
      %129 = sbr.rel (0) target = $region41
    $region40: #{model_forward.1} parent=1 // pred_region
      %131 = vsyncadd [#allocation16], 0
      %s133 = sshll.u32 %s9, 4
      %s134 = int_to_ptr.hbm [resolvable:$true] %s133
      %s135 = sshll.u32 [#allocation17], 4
      %s136 = int_to_ptr.vmem [resolvable:$true] %s135
      %138 = dma.hbm_to_vmem [thread:$0]  %s134, 48, %s136, [#allocation16]
    $region41: #{model_forward.1} parent=1 // pred_fallthru
      _
    // Predicated region
    $region42: #{model_forward.1} parent=1 // pred_check
      _
    $region43: #{model_forward.1} parent=1 // pred_check_branch
      %140 = sbr.rel (0) target = $region45
    $region44: #{model_forward.1} parent=1 // pred_region
      _
    $region45: #{model_forward.1} parent=1 // pred_fallthru
      _
    // Predicated region
    $region46: #{model_forward.1} parent=1 // pred_check
      _
    $region47: #{model_forward.1} parent=1 // pred_check_branch
      %142 = sbr.rel (0) target = $region49
    $region48: #{model_forward.1} parent=1 // pred_region
      %144 = vsyncadd [#allocation19], 0
      %s146 = sshll.u32 %s11, 4
      %s147 = int_to_ptr.hbm [resolvable:$true] %s146
      %s148 = sshll.u32 [#allocation18], 4
      %s149 = int_to_ptr.vmem [resolvable:$true] %s148
      %151 = dma.hbm_to_vmem [thread:$0]  %s147, 16, %s149, [#allocation19]
    $region49: #{model_forward.1} parent=1 // pred_fallthru
      _
    // Predicated region
    $region50: #{model_forward.1} parent=1 // pred_check
      _
    $region51: #{model_forward.1} parent=1 // pred_check_branch
      %153 = sbr.rel (0) target = $region53
    $region52: #{model_forward.1} parent=1 // pred_region
      %155 = vsyncadd [#allocation19], 0
      %s156 = sshll.u32 %s12, 4
      %s157 = int_to_ptr.hbm [resolvable:$true] %s156
      %s158 = sshll.u32 [#allocation20], 4
      %s159 = int_to_ptr.vmem [resolvable:$true] %s158
      %164 = dma.hbm_to_vmem [thread:$0]  %s157, 256, %s159, [#allocation19], 128, 128, 8
    $region53: #{model_forward.1} parent=1 // pred_fallthru
      _
    // Predicated region
    $region54: #{model_forward.1} parent=1 // pred_check
      _
    $region55: #{model_forward.1} parent=1 // pred_check_branch
      %166 = sbr.rel (0) target = $region57
    $region56: #{model_forward.1} parent=1 // pred_region
      %168 = vsyncadd [#allocation22], 0
      %s170 = sshll.u32 %s13, 4
      %s171 = int_to_ptr.hbm [resolvable:$true] %s170
      %s172 = sshll.u32 [#allocation21], 4
      %s173 = int_to_ptr.vmem [resolvable:$true] %s172
      %175 = dma.hbm_to_vmem [thread:$0]  %s171, 16, %s173, [#allocation22]
    $region57: #{model_forward.1} parent=1 // pred_fallthru
      _
    // Predicated region
    $region58: #{model_forward.1} parent=1 // pred_check
      _
    $region59: #{model_forward.1} parent=1 // pred_check_branch
      %177 = sbr.rel (0) target = $region61
    $region60: #{model_forward.1} parent=1 // pred_region
      _
    $region61: #{model_forward.1} parent=1 // pred_fallthru
      _
    // Predicated region
    $region62: #{model_forward.1} parent=1 // pred_check
      _
    $region63: #{model_forward.1} parent=1 // pred_check_branch
      %179 = sbr.rel (0) target = $region65
    $region64: #{model_forward.1} parent=1 // pred_region
      _
    $region65: #{model_forward.1} parent=1 // pred_fallthru
      _
    // Predicated region
    $region66: #{model_forward.1} parent=1 // pred_check
      _
    $region67: #{model_forward.1} parent=1 // pred_check_branch
      %181 = sbr.rel (0) target = $region69
    $region68: #{model_forward.1} parent=1 // pred_region
      %183 = dma.done [#allocation5], 2560
    $region69: #{model_forward.1} parent=1 // pred_fallthru
      _
    // Predicated region
    $region70: #{model_forward.1} parent=1 // pred_check
      _
    $region71: #{model_forward.1} parent=1 // pred_check_branch
      %185 = sbr.rel (0) target = $region73
    $region72: #{model_forward.1} parent=1 // pred_region
      %187 = dma.done [#allocation7], 32
    $region73: #{model_forward.1} parent=1 // pred_fallthru
      _
    // Predicated region
    $region74: #{model_forward.1} parent=1 // pred_check
      _
    $region75: #{model_forward.1} parent=1 // pred_check_branch
      %189 = sbr.rel (0) target = $region77
    $region76: #{model_forward.1} parent=1 // pred_region
      %191 = dma.done [#allocation7], 8192
    $region77: #{model_forward.1} parent=1 // pred_fallthru
      _
    // Predicated region
    $region78: #{model_forward.1} parent=1 // pred_check
      _
    $region79: #{model_forward.1} parent=1 // pred_check_branch
      %193 = sbr.rel (0) target = $region81
    $region80: #{model_forward.1} parent=1 // pred_region
      %195 = dma.done [#allocation10], 32
    $region81: #{model_forward.1} parent=1 // pred_fallthru
      _
    // Predicated region
    $region82: #{model_forward.1} parent=1 // pred_check
      _
    $region83: #{model_forward.1} parent=1 // pred_check_branch
      %197 = sbr.rel (0) target = $region85
    $region84: #{model_forward.1} parent=1 // pred_region
      %199 = dma.done [#allocation10], 16
    $region85: #{model_forward.1} parent=1 // pred_fallthru
      _
    // Predicated region
    $region86: #{model_forward.1} parent=1 // pred_check
      _
    $region87: #{model_forward.1} parent=1 // pred_check_branch
      %201 = sbr.rel (0) target = $region89
    $region88: #{model_forward.1} parent=1 // pred_region
      %203 = dma.done [#allocation13], 98304
    $region89: #{model_forward.1} parent=1 // pred_fallthru
      _
    // Predicated region
    $region90: #{model_forward.1} parent=1 // pred_check
      _
    $region91: #{model_forward.1} parent=1 // pred_check_branch
      %205 = sbr.rel (0) target = $region93
    $region92: #{model_forward.1} parent=1 // pred_region
      %207 = dma.done [#allocation13], 192
    $region93: #{model_forward.1} parent=1 // pred_fallthru
      _
    // Predicated region
    $region94: #{model_forward.1} parent=1 // pred_check
      _
    $region95: #{model_forward.1} parent=1 // pred_check_branch
      %209 = sbr.rel (0) target = $region97
    $region96: #{model_forward.1} parent=1 // pred_region
      %211 = dma.done [#allocation16], 24576
    $region97: #{model_forward.1} parent=1 // pred_fallthru
      _
    // Predicated region
    $region98: #{model_forward.1} parent=1 // pred_check
      _
    $region99: #{model_forward.1} parent=1 // pred_check_branch
      %213 = sbr.rel (0) target = $region101
    $region100: #{model_forward.1} parent=1 // pred_region
      %215 = dma.done [#allocation16], 48
    $region101: #{model_forward.1} parent=1 // pred_fallthru
      _
    // Predicated region
    $region102: #{model_forward.1} parent=1 // pred_check
      _
    $region103: #{model_forward.1} parent=1 // pred_check_branch
      %217 = sbr.rel (0) target = $region105
    $region104: #{model_forward.1} parent=1 // pred_region
      %219 = dma.done [#allocation19], 16
    $region105: #{model_forward.1} parent=1 // pred_fallthru
      _
    // Predicated region
    $region106: #{model_forward.1} parent=1 // pred_check
      _
    $region107: #{model_forward.1} parent=1 // pred_check_branch
      %221 = sbr.rel (0) target = $region109
    $region108: #{model_forward.1} parent=1 // pred_region
      %223 = dma.done [#allocation19], 256
    $region109: #{model_forward.1} parent=1 // pred_fallthru
      _
    // Predicated region
    $region110: #{model_forward.1} parent=1 // pred_check
      _
    $region111: #{model_forward.1} parent=1 // pred_check_branch
      %225 = sbr.rel (0) target = $region113
    $region112: #{model_forward.1} parent=1 // pred_region
      %227 = dma.done [#allocation22], 16
    $region113: #{model_forward.1} parent=1 // pred_fallthru
      _
    %v228 = vld [vmem:[%s0] sm:$0xff]
    %v229 = vld [vmem:[#allocation11] sm:$0x1]
    %v231 = vperm.slane %v229, 0
    %v233 = vmul.f32 %v228, %v231
    %vm234 = vcmask 637952
    %v235 = vsel %vm234, %v233, 0.0
    %236 = vadd.xlane.f32.xlu0 %v235
    %v237 = vpop.xlane.xlu0 %236
    %v238 = vand.u32 2147483647, %v237
    %v239 = vsub.f32 0.0, %v238
    %v240 = vmul.f32 %v239, 1.442695
    %v241 = vpow.pop %v240
    %vm242 = vcmp.ge.f32.partialorder %v237, 0.0
    %v243 = vadd.f32 %v241, 1.0
    %v244 = vrcp.pop %v243
    %v245 = vmul.f32 %v243, %v244
    %v246 = vsub.f32 1.0, %v245
    %v247 = vmul.f32 %v244, %v246
    %v248 = vadd.f32 %v244, %v247
    %vm249 = vweird.f32 %v243
    %vm250 = vweird.f32 %v244
    %vm251 = vmor %vm249, %vm250
    %v252 = vsel %vm251, %v244, %v248
    %v253 = vand.u32 2147483647, %v243
    %vm254 = vcmp.eq.f32.partialorder %v253, 8.507059e+37
    %v255 = vand.u32 %v243, 2147483648
    %v256 = vor.u32 1.1754944e-38, %v255
    %v257 = vsel %vm254, %v256, %v252
    %v258 = vmul.f32 1.0, %v257
    %v259 = vmul.f32 %v241, %v257
    %v260 = vsel %vm242, %v258, %v259
    %v261 = vmul.f32 %v228, %v260
    %v262 = vld [vmem:[#allocation4] sm:$0xff]
    %v263 = vld [vmem:[#allocation4 + $0x8] sm:$0xff]
    %v264 = vld [vmem:[#allocation4 + $0x10] sm:$0xff]
    %v265 = vld [vmem:[#allocation4 + $0x18] sm:$0xff]
    %v266 = vld [vmem:[#allocation4 + $0x20] sm:$0xff]
    %v267 = vld [vmem:[#allocation4 + $0x28] sm:$0xff]
    %v268 = vld [vmem:[#allocation4 + $0x30] sm:$0xff]
    %v269 = vld [vmem:[#allocation4 + $0x38] sm:$0xff]
    %v270 = vld [vmem:[#allocation4 + $0x40] sm:$0xff]
    %v271 = vld [vmem:[#allocation4 + $0x48] sm:$0xff]
    %v272 = vld [vmem:[#allocation4 + $0x50] sm:$0xff]
    %v273 = vld [vmem:[#allocation4 + $0x58] sm:$0xff]
    %v274 = vld [vmem:[#allocation4 + $0x60] sm:$0xff]
    %v275 = vld [vmem:[#allocation4 + $0x68] sm:$0xff]
    %v276 = vld [vmem:[#allocation4 + $0x70] sm:$0xff]
    %v277 = vld [vmem:[#allocation4 + $0x78] sm:$0xff]
    %v278 = vld [vmem:[#allocation4 + $0x80] sm:$0xff]
    %v279 = vld [vmem:[#allocation4 + $0x88] sm:$0xff]
    %v280 = vld [vmem:[#allocation4 + $0x90] sm:$0x3f]
    %v281 = vld [vmem:[#allocation4 + $0x98] sm:$0x3f]
    %v282 = vld [vmem:[#allocation6] sm:$0x3]
    %v284 = vperm.slane %v282, 0
    %v285 = vperm.slane %v282, 1
    %v289 = vsel %vm234, %v228, 0
    %vm291 = vcmask 1045504
    %v293 = vsel %vm291, %v280, 0
    %v296 = vsel %vm291, %v281, 0
    %298 = vmatpush.msra.mxu0 0.0
    %299 = vmatpush.msra.mxu0 0.0
    %300 = vmatpush.msra.mxu0 0.0
    %301 = vmatpush.msra.mxu0 0.0
    %302 = vmatpush.msra.mxu0 0.0
    %303 = vmatpush.msra.mxu0 0.0
    %304 = vmatpush.msra.mxu0 %v293
    %305 = vmatpush.msra.mxu0 %v278
    %306 = vmatpush.msra.mxu0 %v276
    %307 = vmatpush.msra.mxu0 %v274
    %308 = vmatpush.msra.mxu0 %v272
    %309 = vmatpush.msra.mxu0 %v270
    %310 = vmatpush.msra.mxu0 %v268
    %311 = vmatpush.msra.mxu0 %v266
    %312 = vmatpush.msra.mxu0 %v264
    %313 = vmatpush.msra.mxu0 %v262
    %314 = vmatmul.f32.gmra.mxu0 %v289
    %v315 = vpop.f32.mrf.mxu0
    %v316 = vadd.f32 %v284, %v315
    %317 = vdwg.mxu0
    %318 = vmatpush.msra.mxu0 0.0
    %319 = vmatpush.msra.mxu0 0.0
    %320 = vmatpush.msra.mxu0 0.0
    %321 = vmatpush.msra.mxu0 0.0
    %322 = vmatpush.msra.mxu0 0.0
    %323 = vmatpush.msra.mxu0 0.0
    %324 = vmatpush.msra.mxu0 %v296
    %325 = vmatpush.msra.mxu0 %v279
    %326 = vmatpush.msra.mxu0 %v277
    %327 = vmatpush.msra.mxu0 %v275
    %328 = vmatpush.msra.mxu0 %v273
    %329 = vmatpush.msra.mxu0 %v271
    %330 = vmatpush.msra.mxu0 %v269
    %331 = vmatpush.msra.mxu0 %v267
    %332 = vmatpush.msra.mxu0 %v265
    %333 = vmatpush.msra.mxu0 %v263
    %334 = vmatmul.f32.gmra.mxu0 %v289
    %v335 = vpop.f32.mrf.mxu0
    %v336 = vadd.f32 %v285, %v335
    %337 = vdwg.mxu0
    %v338 = vmax.f32 %v316, 0.0
    %v339 = vmax.f32 %v336, 0.0
    %v340 = vld [vmem:[#allocation8] sm:$0xff]
    %v341 = vld [vmem:[#allocation8 + $0x8] sm:$0xff]
    %v342 = vld [vmem:[#allocation8 + $0x10] sm:$0xff]
    %v343 = vld [vmem:[#allocation8 + $0x18] sm:$0xff]
    %v344 = vld [vmem:[#allocation8 + $0x20] sm:$0xff]
    %v345 = vld [vmem:[#allocation8 + $0x28] sm:$0xff]
    %v346 = vld [vmem:[#allocation8 + $0x30] sm:$0xff]
    %v347 = vld [vmem:[#allocation8 + $0x38] sm:$0xff]
    %v348 = vld [vmem:[#allocation8 + $0x40] sm:$0xff]
    %v349 = vld [vmem:[#allocation8 + $0x48] sm:$0xff]
    %v350 = vld [vmem:[#allocation8 + $0x50] sm:$0xff]
    %v351 = vld [vmem:[#allocation8 + $0x58] sm:$0xff]
    %v352 = vld [vmem:[#allocation8 + $0x60] sm:$0xff]
    %v353 = vld [vmem:[#allocation8 + $0x68] sm:$0xff]
    %v354 = vld [vmem:[#allocation8 + $0x70] sm:$0xff]
    %v355 = vld [vmem:[#allocation8 + $0x78] sm:$0xff]
    %v356 = vld [vmem:[#allocation8 + $0x80] sm:$0xff]
    %v357 = vld [vmem:[#allocation8 + $0x88] sm:$0xff]
    %v358 = vld [vmem:[#allocation8 + $0x90] sm:$0xff]
    %v359 = vld [vmem:[#allocation8 + $0x98] sm:$0xff]
    %v360 = vld [vmem:[#allocation8 + $0xa0] sm:$0xff]
    %v361 = vld [vmem:[#allocation8 + $0xa8] sm:$0xff]
    %v362 = vld [vmem:[#allocation8 + $0xb0] sm:$0xff]
    %v363 = vld [vmem:[#allocation8 + $0xb8] sm:$0xff]
    %v364 = vld [vmem:[#allocation8 + $0xc0] sm:$0xff]
    %v365 = vld [vmem:[#allocation8 + $0xc8] sm:$0xff]
    %v366 = vld [vmem:[#allocation8 + $0xd0] sm:$0xff]
    %v367 = vld [vmem:[#allocation8 + $0xd8] sm:$0xff]
    %v368 = vld [vmem:[#allocation8 + $0xe0] sm:$0xff]
    %v369 = vld [vmem:[#allocation8 + $0xe8] sm:$0xff]
    %v370 = vld [vmem:[#allocation8 + $0xf0] sm:$0xff]
    %v371 = vld [vmem:[#allocation8 + $0xf8] sm:$0xff]
    %v372 = vld [vmem:[#allocation8 + $0x100] sm:$0xff]
    %v373 = vld [vmem:[#allocation8 + $0x108] sm:$0xff]
    %v374 = vld [vmem:[#allocation8 + $0x110] sm:$0xff]
    %v375 = vld [vmem:[#allocation8 + $0x118] sm:$0xff]
    %v376 = vld [vmem:[#allocation8 + $0x120] sm:$0xff]
    %v377 = vld [vmem:[#allocation8 + $0x128] sm:$0xff]
    %v378 = vld [vmem:[#allocation8 + $0x130] sm:$0xff]
    %v379 = vld [vmem:[#allocation8 + $0x138] sm:$0xff]
    %v380 = vld [vmem:[#allocation8 + $0x140] sm:$0xff]
    %v381 = vld [vmem:[#allocation8 + $0x148] sm:$0xff]
    %v382 = vld [vmem:[#allocation8 + $0x150] sm:$0xff]
    %v383 = vld [vmem:[#allocation8 + $0x158] sm:$0xff]
    %v384 = vld [vmem:[#allocation8 + $0x160] sm:$0xff]
    %v385 = vld [vmem:[#allocation8 + $0x168] sm:$0xff]
    %v386 = vld [vmem:[#allocation8 + $0x170] sm:$0xff]
    %v387 = vld [vmem:[#allocation8 + $0x178] sm:$0xff]
    %v388 = vld [vmem:[#allocation8 + $0x180] sm:$0xff]
    %v389 = vld [vmem:[#allocation8 + $0x188] sm:$0xff]
    %v390 = vld [vmem:[#allocation8 + $0x190] sm:$0xff]
    %v391 = vld [vmem:[#allocation8 + $0x198] sm:$0xff]
    %v392 = vld [vmem:[#allocation8 + $0x1a0] sm:$0xff]
    %v393 = vld [vmem:[#allocation8 + $0x1a8] sm:$0xff]
    %v394 = vld [vmem:[#allocation8 + $0x1b0] sm:$0xff]
    %v395 = vld [vmem:[#allocation8 + $0x1b8] sm:$0xff]
    %v396 = vld [vmem:[#allocation8 + $0x1c0] sm:$0xff]
    %v397 = vld [vmem:[#allocation8 + $0x1c8] sm:$0xff]
    %v398 = vld [vmem:[#allocation8 + $0x1d0] sm:$0xff]
    %v399 = vld [vmem:[#allocation8 + $0x1d8] sm:$0xff]
    %v400 = vld [vmem:[#allocation8 + $0x1e0] sm:$0xff]
    %v401 = vld [vmem:[#allocation8 + $0x1e8] sm:$0xff]
    %v402 = vld [vmem:[#allocation8 + $0x1f0] sm:$0xff]
    %v403 = vld [vmem:[#allocation8 + $0x1f8] sm:$0xff]
    %v404 = vld [vmem:[#allocation9] sm:$0x3]
    %v406 = vperm.slane %v404, 0
    %v407 = vperm.slane %v404, 1
    %410 = vmatpush.msra.mxu0 %v370
    %411 = vmatpush.msra.mxu0 %v368
    %412 = vmatpush.msra.mxu0 %v366
    %413 = vmatpush.msra.mxu0 %v364
    %414 = vmatpush.msra.mxu0 %v362
    %415 = vmatpush.msra.mxu0 %v360
    %416 = vmatpush.msra.mxu0 %v358
    %417 = vmatpush.msra.mxu0 %v356
    %418 = vmatpush.msra.mxu0 %v354
    %419 = vmatpush.msra.mxu0 %v352
    %420 = vmatpush.msra.mxu0 %v350
    %421 = vmatpush.msra.mxu0 %v348
    %422 = vmatpush.msra.mxu0 %v346
    %423 = vmatpush.msra.mxu0 %v344
    %424 = vmatpush.msra.mxu0 %v342
    %425 = vmatpush.msra.mxu0 %v340
    %426 = vmatmul.f32.gmra.mxu0 %v338
    %v427 = vpop.f32.mrf.mxu0
    %v428 = vadd.f32 %v406, %v427
    %429 = vdwg.mxu0
    %430 = vmatpush.msra.mxu0 %v402
    %431 = vmatpush.msra.mxu0 %v400
    %432 = vmatpush.msra.mxu0 %v398
    %433 = vmatpush.msra.mxu0 %v396
    %434 = vmatpush.msra.mxu0 %v394
    %435 = vmatpush.msra.mxu0 %v392
    %436 = vmatpush.msra.mxu0 %v390
    %437 = vmatpush.msra.mxu0 %v388
    %438 = vmatpush.msra.mxu0 %v386
    %439 = vmatpush.msra.mxu0 %v384
    %440 = vmatpush.msra.mxu0 %v382
    %441 = vmatpush.msra.mxu0 %v380
    %442 = vmatpush.msra.mxu0 %v378
    %443 = vmatpush.msra.mxu0 %v376
    %444 = vmatpush.msra.mxu0 %v374
    %445 = vmatpush.msra.mxu0 %v372
    %446 = vmatmul.f32.gmra.mxu0 %v339
    %v447 = vpop.f32.mrf.mxu0
    %v448 = vadd.f32 %v428, %v447
    %449 = vdwg.mxu0
    %450 = vmatpush.msra.mxu0 %v371
    %451 = vmatpush.msra.mxu0 %v369
    %452 = vmatpush.msra.mxu0 %v367
    %453 = vmatpush.msra.mxu0 %v365
    %454 = vmatpush.msra.mxu0 %v363
    %455 = vmatpush.msra.mxu0 %v361
    %456 = vmatpush.msra.mxu0 %v359
    %457 = vmatpush.msra.mxu0 %v357
    %458 = vmatpush.msra.mxu0 %v355
    %459 = vmatpush.msra.mxu0 %v353
    %460 = vmatpush.msra.mxu0 %v351
    %461 = vmatpush.msra.mxu0 %v349
    %462 = vmatpush.msra.mxu0 %v347
    %463 = vmatpush.msra.mxu0 %v345
    %464 = vmatpush.msra.mxu0 %v343
    %465 = vmatpush.msra.mxu0 %v341
    %466 = vmatmul.f32.gmra.mxu0 %v338
    %v467 = vpop.f32.mrf.mxu0
    %v468 = vadd.f32 %v407, %v467
    %469 = vdwg.mxu0
    %470 = vmatpush.msra.mxu0 %v403
    %471 = vmatpush.msra.mxu0 %v401
    %472 = vmatpush.msra.mxu0 %v399
    %473 = vmatpush.msra.mxu0 %v397
    %474 = vmatpush.msra.mxu0 %v395
    %475 = vmatpush.msra.mxu0 %v393
    %476 = vmatpush.msra.mxu0 %v391
    %477 = vmatpush.msra.mxu0 %v389
    %478 = vmatpush.msra.mxu0 %v387
    %479 = vmatpush.msra.mxu0 %v385
    %480 = vmatpush.msra.mxu0 %v383
    %481 = vmatpush.msra.mxu0 %v381
    %482 = vmatpush.msra.mxu0 %v379
    %483 = vmatpush.msra.mxu0 %v377
    %484 = vmatpush.msra.mxu0 %v375
    %485 = vmatpush.msra.mxu0 %v373
    %486 = vmatmul.f32.gmra.mxu0 %v339
    %v487 = vpop.f32.mrf.mxu0
    %v488 = vadd.f32 %v468, %v487
    %489 = vdwg.mxu0
    %v490 = vmax.f32 %v448, 0.0
    %v491 = vmax.f32 %v488, 0.0
    %492 = vst.msk [vmem:[#allocation2] sm:$0xff] %vm234, %v228
    %vm493 = vcmask 1048176
    %494 = vst.msk [vmem:[#allocation2] sm:$0xff] %vm493, 0.0
    %495 = vst.msk [vmem:[#allocation2 + $0x8] sm:$0xff] %vm234, %v261
    %496 = vst.msk [vmem:[#allocation2 + $0x8] sm:$0xff] %vm493, 0.0
    %497 = vst [vmem:[#allocation2 + $0x10] sm:$0xff] %v490
    %498 = vst [vmem:[#allocation2 + $0x18] sm:$0xff] %v491
    %v499 = vld [vmem:[#allocation2] sm:$0xff]
    %v500 = vld [vmem:[#allocation2 + $0x8] sm:$0xff]
    %v501 = vld [vmem:[#allocation2 + $0x10] sm:$0xff]
    %v502 = vld [vmem:[#allocation2 + $0x18] sm:$0xff]
    %v503 = vld [vmem:[#allocation12] sm:$0xff]
    %v504 = vld [vmem:[#allocation12 + $0x8] sm:$0xff]
    %v505 = vld [vmem:[#allocation12 + $0x10] sm:$0xff]
    %v506 = vld [vmem:[#allocation12 + $0x18] sm:$0xff]
    %v507 = vld [vmem:[#allocation12 + $0x20] sm:$0xff]
    %v508 = vld [vmem:[#allocation12 + $0x28] sm:$0xff]
    %v509 = vld [vmem:[#allocation12 + $0x30] sm:$0xff]
    %v510 = vld [vmem:[#allocation12 + $0x38] sm:$0xff]
    %v511 = vld [vmem:[#allocation12 + $0x40] sm:$0xff]
    %v512 = vld [vmem:[#allocation12 + $0x48] sm:$0xff]
    %v513 = vld [vmem:[#allocation12 + $0x50] sm:$0xff]
    %v514 = vld [vmem:[#allocation12 + $0x58] sm:$0xff]
    %v515 = vld [vmem:[#allocation12 + $0x60] sm:$0xff]
    %v516 = vld [vmem:[#allocation12 + $0x68] sm:$0xff]
    %v517 = vld [vmem:[#allocation12 + $0x70] sm:$0xff]
    %v518 = vld [vmem:[#allocation12 + $0x78] sm:$0xff]
    %v519 = vld [vmem:[#allocation12 + $0x80] sm:$0xff]
    %v520 = vld [vmem:[#allocation12 + $0x88] sm:$0xff]
    %v521 = vld [vmem:[#allocation12 + $0x90] sm:$0xff]
    %v522 = vld [vmem:[#allocation12 + $0x98] sm:$0xff]
    %v523 = vld [vmem:[#allocation12 + $0xa0] sm:$0xff]
    %v524 = vld [vmem:[#allocation12 + $0xa8] sm:$0xff]
    %v525 = vld [vmem:[#allocation12 + $0xb0] sm:$0xff]
    %v526 = vld [vmem:[#allocation12 + $0xb8] sm:$0xff]
    %v527 = vld [vmem:[#allocation12 + $0xc0] sm:$0xff]
    %v528 = vld [vmem:[#allocation12 + $0xc8] sm:$0xff]
    %v529 = vld [vmem:[#allocation12 + $0xd0] sm:$0xff]
    %v530 = vld [vmem:[#allocation12 + $0xd8] sm:$0xff]
    %v531 = vld [vmem:[#allocation12 + $0xe0] sm:$0xff]
    %v532 = vld [vmem:[#allocation12 + $0xe8] sm:$0xff]
    %v533 = vld [vmem:[#allocation12 + $0xf0] sm:$0xff]
    %v534 = vld [vmem:[#allocation12 + $0xf8] sm:$0xff]
    %v535 = vld [vmem:[#allocation12 + $0x100] sm:$0xff]
    %v536 = vld [vmem:[#allocation12 + $0x108] sm:$0xff]
    %v537 = vld [vmem:[#allocation12 + $0x110] sm:$0xff]
    %v538 = vld [vmem:[#allocation12 + $0x118] sm:$0xff]
    %v539 = vld [vmem:[#allocation12 + $0x120] sm:$0xff]
    %v540 = vld [vmem:[#allocation12 + $0x128] sm:$0xff]
    %v541 = vld [vmem:[#allocation12 + $0x130] sm:$0xff]
    %v542 = vld [vmem:[#allocation12 + $0x138] sm:$0xff]
    %v543 = vld [vmem:[#allocation12 + $0x140] sm:$0xff]
    %v544 = vld [vmem:[#allocation12 + $0x148] sm:$0xff]
    %v545 = vld [vmem:[#allocation12 + $0x150] sm:$0xff]
    %v546 = vld [vmem:[#allocation12 + $0x158] sm:$0xff]
    %v547 = vld [vmem:[#allocation12 + $0x160] sm:$0xff]
    %v548 = vld [vmem:[#allocation12 + $0x168] sm:$0xff]
    %v549 = vld [vmem:[#allocation12 + $0x170] sm:$0xff]
    %v550 = vld [vmem:[#allocation12 + $0x178] sm:$0xff]
    %v551 = vld [vmem:[#allocation12 + $0x180] sm:$0xff]
    %v552 = vld [vmem:[#allocation12 + $0x188] sm:$0xff]
    %v553 = vld [vmem:[#allocation12 + $0x190] sm:$0xff]
    %v554 = vld [vmem:[#allocation12 + $0x198] sm:$0xff]
    %v555 = vld [vmem:[#allocation12 + $0x1a0] sm:$0xff]
    %v556 = vld [vmem:[#allocation12 + $0x1a8] sm:$0xff]
    %v557 = vld [vmem:[#allocation12 + $0x1b0] sm:$0xff]
    %v558 = vld [vmem:[#allocation12 + $0x1b8] sm:$0xff]
    %v559 = vld [vmem:[#allocation12 + $0x1c0] sm:$0xff]
    %v560 = vld [vmem:[#allocation12 + $0x1c8] sm:$0xff]
    %v561 = vld [vmem:[#allocation12 + $0x1d0] sm:$0xff]
    %v562 = vld [vmem:[#allocation12 + $0x1d8] sm:$0xff]
    %v563 = vld [vmem:[#allocation12 + $0x1e0] sm:$0xff]
    %v564 = vld [vmem:[#allocation12 + $0x1e8] sm:$0xff]
    %v565 = vld [vmem:[#allocation12 + $0x1f0] sm:$0xff]
    %v566 = vld [vmem:[#allocation12 + $0x1f8] sm:$0xff]
    %v567 = vld [vmem:[#allocation12 + $0x200] sm:$0xff]
    %v568 = vld [vmem:[#allocation12 + $0x208] sm:$0xff]
    %v569 = vld [vmem:[#allocation12 + $0x210] sm:$0xff]
    %v570 = vld [vmem:[#allocation12 + $0x218] sm:$0xff]
    %v571 = vld [vmem:[#allocation12 + $0x220] sm:$0xff]
    %v572 = vld [vmem:[#allocation12 + $0x228] sm:$0xff]
    %v573 = vld [vmem:[#allocation12 + $0x230] sm:$0xff]
    %v574 = vld [vmem:[#allocation12 + $0x238] sm:$0xff]
    %v575 = vld [vmem:[#allocation12 + $0x240] sm:$0xff]
    %v576 = vld [vmem:[#allocation12 + $0x248] sm:$0xff]
    %v577 = vld [vmem:[#allocation12 + $0x250] sm:$0xff]
    %v578 = vld [vmem:[#allocation12 + $0x258] sm:$0xff]
    %v579 = vld [vmem:[#allocation12 + $0x260] sm:$0xff]
    %v580 = vld [vmem:[#allocation12 + $0x268] sm:$0xff]
    %v581 = vld [vmem:[#allocation12 + $0x270] sm:$0xff]
    %v582 = vld [vmem:[#allocation12 + $0x278] sm:$0xff]
    %v583 = vld [vmem:[#allocation12 + $0x280] sm:$0xff]
    %v584 = vld [vmem:[#allocation12 + $0x288] sm:$0xff]
    %v585 = vld [vmem:[#allocation12 + $0x290] sm:$0xff]
    %v586 = vld [vmem:[#allocation12 + $0x298] sm:$0xff]
    %v587 = vld [vmem:[#allocation12 + $0x2a0] sm:$0xff]
    %v588 = vld [vmem:[#allocation12 + $0x2a8] sm:$0xff]
    %v589 = vld [vmem:[#allocation12 + $0x2b0] sm:$0xff]
    %v590 = vld [vmem:[#allocation12 + $0x2b8] sm:$0xff]
    %v591 = vld [vmem:[#allocation12 + $0x2c0] sm:$0xff]
    %v592 = vld [vmem:[#allocation12 + $0x2c8] sm:$0xff]
    %v593 = vld [vmem:[#allocation12 + $0x2d0] sm:$0xff]
    %v594 = vld [vmem:[#allocation12 + $0x2d8] sm:$0xff]
    %v595 = vld [vmem:[#allocation12 + $0x2e0] sm:$0xff]
    %v596 = vld [vmem:[#allocation12 + $0x2e8] sm:$0xff]
    %v597 = vld [vmem:[#allocation12 + $0x2f0] sm:$0xff]
    %v598 = vld [vmem:[#allocation12 + $0x2f8] sm:$0xff]
    %v599 = vld [vmem:[#allocation12 + $0x300] sm:$0xff]
    %v600 = vld [vmem:[#allocation12 + $0x308] sm:$0xff]
    %v601 = vld [vmem:[#allocation12 + $0x310] sm:$0xff]
    %v602 = vld [vmem:[#allocation12 + $0x318] sm:$0xff]
    %v603 = vld [vmem:[#allocation12 + $0x320] sm:$0xff]
    %v604 = vld [vmem:[#allocation12 + $0x328] sm:$0xff]
    %v605 = vld [vmem:[#allocation12 + $0x330] sm:$0xff]
    %v606 = vld [vmem:[#allocation12 + $0x338] sm:$0xff]
    %v607 = vld [vmem:[#allocation12 + $0x340] sm:$0xff]
    %v608 = vld [vmem:[#allocation12 + $0x348] sm:$0xff]
    %v609 = vld [vmem:[#allocation12 + $0x350] sm:$0xff]
    %v610 = vld [vmem:[#allocation12 + $0x358] sm:$0xff]
    %v611 = vld [vmem:[#allocation12 + $0x360] sm:$0xff]
    %v612 = vld [vmem:[#allocation12 + $0x368] sm:$0xff]
    %v613 = vld [vmem:[#allocation12 + $0x370] sm:$0xff]
    %v614 = vld [vmem:[#allocation12 + $0x378] sm:$0xff]
    %v615 = vld [vmem:[#allocation12 + $0x380] sm:$0xff]
    %v616 = vld [vmem:[#allocation12 + $0x388] sm:$0xff]
    %v617 = vld [vmem:[#allocation12 + $0x390] sm:$0xff]
    %v618 = vld [vmem:[#allocation12 + $0x398] sm:$0xff]
    %v619 = vld [vmem:[#allocation12 + $0x3a0] sm:$0xff]
    %v620 = vld [vmem:[#allocation12 + $0x3a8] sm:$0xff]
    %v621 = vld [vmem:[#allocation12 + $0x3b0] sm:$0xff]
    %v622 = vld [vmem:[#allocation12 + $0x3b8] sm:$0xff]
    %v623 = vld [vmem:[#allocation12 + $0x3c0] sm:$0xff]
    %v624 = vld [vmem:[#allocation12 + $0x3c8] sm:$0xff]
    %v625 = vld [vmem:[#allocation12 + $0x3d0] sm:$0xff]
    %v626 = vld [vmem:[#allocation12 + $0x3d8] sm:$0xff]
    %v627 = vld [vmem:[#allocation12 + $0x3e0] sm:$0xff]
    %v628 = vld [vmem:[#allocation12 + $0x3e8] sm:$0xff]
    %v629 = vld [vmem:[#allocation12 + $0x3f0] sm:$0xff]
    %v630 = vld [vmem:[#allocation12 + $0x3f8] sm:$0xff]
    %v631 = vld [vmem:[#allocation12 + $0x400] sm:$0xff]
    %v632 = vld [vmem:[#allocation12 + $0x408] sm:$0xff]
    %v633 = vld [vmem:[#allocation12 + $0x410] sm:$0xff]
    %v634 = vld [vmem:[#allocation12 + $0x418] sm:$0xff]
    %v635 = vld [vmem:[#allocation12 + $0x420] sm:$0xff]
    %v636 = vld [vmem:[#allocation12 + $0x428] sm:$0xff]
    %v637 = vld [vmem:[#allocation12 + $0x430] sm:$0xff]
    %v638 = vld [vmem:[#allocation12 + $0x438] sm:$0xff]
    %v639 = vld [vmem:[#allocation12 + $0x440] sm:$0xff]
    %v640 = vld [vmem:[#allocation12 + $0x448] sm:$0xff]
    %v641 = vld [vmem:[#allocation12 + $0x450] sm:$0xff]
    %v642 = vld [vmem:[#allocation12 + $0x458] sm:$0xff]
    %v643 = vld [vmem:[#allocation12 + $0x460] sm:$0xff]
    %v644 = vld [vmem:[#allocation12 + $0x468] sm:$0xff]
    %v645 = vld [vmem:[#allocation12 + $0x470] sm:$0xff]
    %v646 = vld [vmem:[#allocation12 + $0x478] sm:$0xff]
    %v647 = vld [vmem:[#allocation12 + $0x480] sm:$0xff]
    %v648 = vld [vmem:[#allocation12 + $0x488] sm:$0xff]
    %v649 = vld [vmem:[#allocation12 + $0x490] sm:$0xff]
    %v650 = vld [vmem:[#allocation12 + $0x498] sm:$0xff]
    %v651 = vld [vmem:[#allocation12 + $0x4a0] sm:$0xff]
    %v652 = vld [vmem:[#allocation12 + $0x4a8] sm:$0xff]
    %v653 = vld [vmem:[#allocation12 + $0x4b0] sm:$0xff]
    %v654 = vld [vmem:[#allocation12 + $0x4b8] sm:$0xff]
    %v655 = vld [vmem:[#allocation12 + $0x4c0] sm:$0xff]
    %v656 = vld [vmem:[#allocation12 + $0x4c8] sm:$0xff]
    %v657 = vld [vmem:[#allocation12 + $0x4d0] sm:$0xff]
    %v658 = vld [vmem:[#allocation12 + $0x4d8] sm:$0xff]
    %v659 = vld [vmem:[#allocation12 + $0x4e0] sm:$0xff]
    %v660 = vld [vmem:[#allocation12 + $0x4e8] sm:$0xff]
    %v661 = vld [vmem:[#allocation12 + $0x4f0] sm:$0xff]
    %v662 = vld [vmem:[#allocation12 + $0x4f8] sm:$0xff]
    %v663 = vld [vmem:[#allocation12 + $0x500] sm:$0xff]
    %v664 = vld [vmem:[#allocation12 + $0x508] sm:$0xff]
    %v665 = vld [vmem:[#allocation12 + $0x510] sm:$0xff]
    %v666 = vld [vmem:[#allocation12 + $0x518] sm:$0xff]
    %v667 = vld [vmem:[#allocation12 + $0x520] sm:$0xff]
    %v668 = vld [vmem:[#allocation12 + $0x528] sm:$0xff]
    %v669 = vld [vmem:[#allocation12 + $0x530] sm:$0xff]
    %v670 = vld [vmem:[#allocation12 + $0x538] sm:$0xff]
    %v671 = vld [vmem:[#allocation12 + $0x540] sm:$0xff]
    %v672 = vld [vmem:[#allocation12 + $0x548] sm:$0xff]
    %v673 = vld [vmem:[#allocation12 + $0x550] sm:$0xff]
    %v674 = vld [vmem:[#allocation12 + $0x558] sm:$0xff]
    %v675 = vld [vmem:[#allocation12 + $0x560] sm:$0xff]
    %v676 = vld [vmem:[#allocation12 + $0x568] sm:$0xff]
    %v677 = vld [vmem:[#allocation12 + $0x570] sm:$0xff]
    %v678 = vld [vmem:[#allocation12 + $0x578] sm:$0xff]
    %v679 = vld [vmem:[#allocation12 + $0x580] sm:$0xff]
    %v680 = vld [vmem:[#allocation12 + $0x588] sm:$0xff]
    %v681 = vld [vmem:[#allocation12 + $0x590] sm:$0xff]
    %v682 = vld [vmem:[#allocation12 + $0x598] sm:$0xff]
    %v683 = vld [vmem:[#allocation12 + $0x5a0] sm:$0xff]
    %v684 = vld [vmem:[#allocation12 + $0x5a8] sm:$0xff]
    %v685 = vld [vmem:[#allocation12 + $0x5b0] sm:$0xff]
    %v686 = vld [vmem:[#allocation12 + $0x5b8] sm:$0xff]
    %v687 = vld [vmem:[#allocation12 + $0x5c0] sm:$0xff]
    %v688 = vld [vmem:[#allocation12 + $0x5c8] sm:$0xff]
    %v689 = vld [vmem:[#allocation12 + $0x5d0] sm:$0xff]
    %v690 = vld [vmem:[#allocation12 + $0x5d8] sm:$0xff]
    %v691 = vld [vmem:[#allocation12 + $0x5e0] sm:$0xff]
    %v692 = vld [vmem:[#allocation12 + $0x5e8] sm:$0xff]
    %v693 = vld [vmem:[#allocation12 + $0x5f0] sm:$0xff]
    %v694 = vld [vmem:[#allocation12 + $0x5f8] sm:$0xff]
    %v695 = vld [vmem:[#allocation12 + $0x600] sm:$0xff]
    %v696 = vld [vmem:[#allocation12 + $0x608] sm:$0xff]
    %v697 = vld [vmem:[#allocation12 + $0x610] sm:$0xff]
    %v698 = vld [vmem:[#allocation12 + $0x618] sm:$0xff]
    %v699 = vld [vmem:[#allocation12 + $0x620] sm:$0xff]
    %v700 = vld [vmem:[#allocation12 + $0x628] sm:$0xff]
    %v701 = vld [vmem:[#allocation12 + $0x630] sm:$0xff]
    %v702 = vld [vmem:[#allocation12 + $0x638] sm:$0xff]
    %v703 = vld [vmem:[#allocation12 + $0x640] sm:$0xff]
    %v704 = vld [vmem:[#allocation12 + $0x648] sm:$0xff]
    %v705 = vld [vmem:[#allocation12 + $0x650] sm:$0xff]
    %v706 = vld [vmem:[#allocation12 + $0x658] sm:$0xff]
    %v707 = vld [vmem:[#allocation12 + $0x660] sm:$0xff]
    %v708 = vld [vmem:[#allocation12 + $0x668] sm:$0xff]
    %v709 = vld [vmem:[#allocation12 + $0x670] sm:$0xff]
    %v710 = vld [vmem:[#allocation12 + $0x678] sm:$0xff]
    %v711 = vld [vmem:[#allocation12 + $0x680] sm:$0xff]
    %v712 = vld [vmem:[#allocation12 + $0x688] sm:$0xff]
    %v713 = vld [vmem:[#allocation12 + $0x690] sm:$0xff]
    %v714 = vld [vmem:[#allocation12 + $0x698] sm:$0xff]
    %v715 = vld [vmem:[#allocation12 + $0x6a0] sm:$0xff]
    %v716 = vld [vmem:[#allocation12 + $0x6a8] sm:$0xff]
    %v717 = vld [vmem:[#allocation12 + $0x6b0] sm:$0xff]
    %v718 = vld [vmem:[#allocation12 + $0x6b8] sm:$0xff]
    %v719 = vld [vmem:[#allocation12 + $0x6c0] sm:$0xff]
    %v720 = vld [vmem:[#allocation12 + $0x6c8] sm:$0xff]
    %v721 = vld [vmem:[#allocation12 + $0x6d0] sm:$0xff]
    %v722 = vld [vmem:[#allocation12 + $0x6d8] sm:$0xff]
    %v723 = vld [vmem:[#allocation12 + $0x6e0] sm:$0xff]
    %v724 = vld [vmem:[#allocation12 + $0x6e8] sm:$0xff]
    %v725 = vld [vmem:[#allocation12 + $0x6f0] sm:$0xff]
    %v726 = vld [vmem:[#allocation12 + $0x6f8] sm:$0xff]
    %v727 = vld [vmem:[#allocation12 + $0x700] sm:$0xff]
    %v728 = vld [vmem:[#allocation12 + $0x708] sm:$0xff]
    %v729 = vld [vmem:[#allocation12 + $0x710] sm:$0xff]
    %v730 = vld [vmem:[#allocation12 + $0x718] sm:$0xff]
    %v731 = vld [vmem:[#allocation12 + $0x720] sm:$0xff]
    %v732 = vld [vmem:[#allocation12 + $0x728] sm:$0xff]
    %v733 = vld [vmem:[#allocation12 + $0x730] sm:$0xff]
    %v734 = vld [vmem:[#allocation12 + $0x738] sm:$0xff]
    %v735 = vld [vmem:[#allocation12 + $0x740] sm:$0xff]
    %v736 = vld [vmem:[#allocation12 + $0x748] sm:$0xff]
    %v737 = vld [vmem:[#allocation12 + $0x750] sm:$0xff]
    %v738 = vld [vmem:[#allocation12 + $0x758] sm:$0xff]
    %v739 = vld [vmem:[#allocation12 + $0x760] sm:$0xff]
    %v740 = vld [vmem:[#allocation12 + $0x768] sm:$0xff]
    %v741 = vld [vmem:[#allocation12 + $0x770] sm:$0xff]
    %v742 = vld [vmem:[#allocation12 + $0x778] sm:$0xff]
    %v743 = vld [vmem:[#allocation12 + $0x780] sm:$0xff]
    %v744 = vld [vmem:[#allocation12 + $0x788] sm:$0xff]
    %v745 = vld [vmem:[#allocation12 + $0x790] sm:$0xff]
    %v746 = vld [vmem:[#allocation12 + $0x798] sm:$0xff]
    %v747 = vld [vmem:[#allocation12 + $0x7a0] sm:$0xff]
    %v748 = vld [vmem:[#allocation12 + $0x7a8] sm:$0xff]
    %v749 = vld [vmem:[#allocation12 + $0x7b0] sm:$0xff]
    %v750 = vld [vmem:[#allocation12 + $0x7b8] sm:$0xff]
    %v751 = vld [vmem:[#allocation12 + $0x7c0] sm:$0xff]
    %v752 = vld [vmem:[#allocation12 + $0x7c8] sm:$0xff]
    %v753 = vld [vmem:[#allocation12 + $0x7d0] sm:$0xff]
    %v754 = vld [vmem:[#allocation12 + $0x7d8] sm:$0xff]
    %v755 = vld [vmem:[#allocation12 + $0x7e0] sm:$0xff]
    %v756 = vld [vmem:[#allocation12 + $0x7e8] sm:$0xff]
    %v757 = vld [vmem:[#allocation12 + $0x7f0] sm:$0xff]
    %v758 = vld [vmem:[#allocation12 + $0x7f8] sm:$0xff]
    %v759 = vld [vmem:[#allocation12 + $0x800] sm:$0xff]
    %v760 = vld [vmem:[#allocation12 + $0x808] sm:$0xff]
    %v761 = vld [vmem:[#allocation12 + $0x810] sm:$0xff]
    %v762 = vld [vmem:[#allocation12 + $0x818] sm:$0xff]
    %v763 = vld [vmem:[#allocation12 + $0x820] sm:$0xff]
    %v764 = vld [vmem:[#allocation12 + $0x828] sm:$0xff]
    %v765 = vld [vmem:[#allocation12 + $0x830] sm:$0xff]
    %v766 = vld [vmem:[#allocation12 + $0x838] sm:$0xff]
    %v767 = vld [vmem:[#allocation12 + $0x840] sm:$0xff]
    %v768 = vld [vmem:[#allocation12 + $0x848] sm:$0xff]
    %v769 = vld [vmem:[#allocation12 + $0x850] sm:$0xff]
    %v770 = vld [vmem:[#allocation12 + $0x858] sm:$0xff]
    %v771 = vld [vmem:[#allocation12 + $0x860] sm:$0xff]
    %v772 = vld [vmem:[#allocation12 + $0x868] sm:$0xff]
    %v773 = vld [vmem:[#allocation12 + $0x870] sm:$0xff]
    %v774 = vld [vmem:[#allocation12 + $0x878] sm:$0xff]
    %v775 = vld [vmem:[#allocation12 + $0x880] sm:$0xff]
    %v776 = vld [vmem:[#allocation12 + $0x888] sm:$0xff]
    %v777 = vld [vmem:[#allocation12 + $0x890] sm:$0xff]
    %v778 = vld [vmem:[#allocation12 + $0x898] sm:$0xff]
    %v779 = vld [vmem:[#allocation12 + $0x8a0] sm:$0xff]
    %v780 = vld [vmem:[#allocation12 + $0x8a8] sm:$0xff]
    %v781 = vld [vmem:[#allocation12 + $0x8b0] sm:$0xff]
    %v782 = vld [vmem:[#allocation12 + $0x8b8] sm:$0xff]
    %v783 = vld [vmem:[#allocation12 + $0x8c0] sm:$0xff]
    %v784 = vld [vmem:[#allocation12 + $0x8c8] sm:$0xff]
    %v785 = vld [vmem:[#allocation12 + $0x8d0] sm:$0xff]
    %v786 = vld [vmem:[#allocation12 + $0x8d8] sm:$0xff]
    %v787 = vld [vmem:[#allocation12 + $0x8e0] sm:$0xff]
    %v788 = vld [vmem:[#allocation12 + $0x8e8] sm:$0xff]
    %v789 = vld [vmem:[#allocation12 + $0x8f0] sm:$0xff]
    %v790 = vld [vmem:[#allocation12 + $0x8f8] sm:$0xff]
    %v791 = vld [vmem:[#allocation12 + $0x900] sm:$0xff]
    %v792 = vld [vmem:[#allocation12 + $0x908] sm:$0xff]
    %v793 = vld [vmem:[#allocation12 + $0x910] sm:$0xff]
    %v794 = vld [vmem:[#allocation12 + $0x918] sm:$0xff]
    %v795 = vld [vmem:[#allocation12 + $0x920] sm:$0xff]
    %v796 = vld [vmem:[#allocation12 + $0x928] sm:$0xff]
    %v797 = vld [vmem:[#allocation12 + $0x930] sm:$0xff]
    %v798 = vld [vmem:[#allocation12 + $0x938] sm:$0xff]
    %v799 = vld [vmem:[#allocation12 + $0x940] sm:$0xff]
    %v800 = vld [vmem:[#allocation12 + $0x948] sm:$0xff]
    %v801 = vld [vmem:[#allocation12 + $0x950] sm:$0xff]
    %v802 = vld [vmem:[#allocation12 + $0x958] sm:$0xff]
    %v803 = vld [vmem:[#allocation12 + $0x960] sm:$0xff]
    %v804 = vld [vmem:[#allocation12 + $0x968] sm:$0xff]
    %v805 = vld [vmem:[#allocation12 + $0x970] sm:$0xff]
    %v806 = vld [vmem:[#allocation12 + $0x978] sm:$0xff]
    %v807 = vld [vmem:[#allocation12 + $0x980] sm:$0xff]
    %v808 = vld [vmem:[#allocation12 + $0x988] sm:$0xff]
    %v809 = vld [vmem:[#allocation12 + $0x990] sm:$0xff]
    %v810 = vld [vmem:[#allocation12 + $0x998] sm:$0xff]
    %v811 = vld [vmem:[#allocation12 + $0x9a0] sm:$0xff]
    %v812 = vld [vmem:[#allocation12 + $0x9a8] sm:$0xff]
    %v813 = vld [vmem:[#allocation12 + $0x9b0] sm:$0xff]
    %v814 = vld [vmem:[#allocation12 + $0x9b8] sm:$0xff]
    %v815 = vld [vmem:[#allocation12 + $0x9c0] sm:$0xff]
    %v816 = vld [vmem:[#allocation12 + $0x9c8] sm:$0xff]
    %v817 = vld [vmem:[#allocation12 + $0x9d0] sm:$0xff]
    %v818 = vld [vmem:[#allocation12 + $0x9d8] sm:$0xff]
    %v819 = vld [vmem:[#allocation12 + $0x9e0] sm:$0xff]
    %v820 = vld [vmem:[#allocation12 + $0x9e8] sm:$0xff]
    %v821 = vld [vmem:[#allocation12 + $0x9f0] sm:$0xff]
    %v822 = vld [vmem:[#allocation12 + $0x9f8] sm:$0xff]
    %v823 = vld [vmem:[#allocation12 + $0xa00] sm:$0xff]
    %v824 = vld [vmem:[#allocation12 + $0xa08] sm:$0xff]
    %v825 = vld [vmem:[#allocation12 + $0xa10] sm:$0xff]
    %v826 = vld [vmem:[#allocation12 + $0xa18] sm:$0xff]
    %v827 = vld [vmem:[#allocation12 + $0xa20] sm:$0xff]
    %v828 = vld [vmem:[#allocation12 + $0xa28] sm:$0xff]
    %v829 = vld [vmem:[#allocation12 + $0xa30] sm:$0xff]
    %v830 = vld [vmem:[#allocation12 + $0xa38] sm:$0xff]
    %v831 = vld [vmem:[#allocation12 + $0xa40] sm:$0xff]
    %v832 = vld [vmem:[#allocation12 + $0xa48] sm:$0xff]
    %v833 = vld [vmem:[#allocation12 + $0xa50] sm:$0xff]
    %v834 = vld [vmem:[#allocation12 + $0xa58] sm:$0xff]
    %v835 = vld [vmem:[#allocation12 + $0xa60] sm:$0xff]
    %v836 = vld [vmem:[#allocation12 + $0xa68] sm:$0xff]
    %v837 = vld [vmem:[#allocation12 + $0xa70] sm:$0xff]
    %v838 = vld [vmem:[#allocation12 + $0xa78] sm:$0xff]
    %v839 = vld [vmem:[#allocation12 + $0xa80] sm:$0xff]
    %v840 = vld [vmem:[#allocation12 + $0xa88] sm:$0xff]
    %v841 = vld [vmem:[#allocation12 + $0xa90] sm:$0xff]
    %v842 = vld [vmem:[#allocation12 + $0xa98] sm:$0xff]
    %v843 = vld [vmem:[#allocation12 + $0xaa0] sm:$0xff]
    %v844 = vld [vmem:[#allocation12 + $0xaa8] sm:$0xff]
    %v845 = vld [vmem:[#allocation12 + $0xab0] sm:$0xff]
    %v846 = vld [vmem:[#allocation12 + $0xab8] sm:$0xff]
    %v847 = vld [vmem:[#allocation12 + $0xac0] sm:$0xff]
    %v848 = vld [vmem:[#allocation12 + $0xac8] sm:$0xff]
    %v849 = vld [vmem:[#allocation12 + $0xad0] sm:$0xff]
    %v850 = vld [vmem:[#allocation12 + $0xad8] sm:$0xff]
    %v851 = vld [vmem:[#allocation12 + $0xae0] sm:$0xff]
    %v852 = vld [vmem:[#allocation12 + $0xae8] sm:$0xff]
    %v853 = vld [vmem:[#allocation12 + $0xaf0] sm:$0xff]
    %v854 = vld [vmem:[#allocation12 + $0xaf8] sm:$0xff]
    %v855 = vld [vmem:[#allocation12 + $0xb00] sm:$0xff]
    %v856 = vld [vmem:[#allocation12 + $0xb08] sm:$0xff]
    %v857 = vld [vmem:[#allocation12 + $0xb10] sm:$0xff]
    %v858 = vld [vmem:[#allocation12 + $0xb18] sm:$0xff]
    %v859 = vld [vmem:[#allocation12 + $0xb20] sm:$0xff]
    %v860 = vld [vmem:[#allocation12 + $0xb28] sm:$0xff]
    %v861 = vld [vmem:[#allocation12 + $0xb30] sm:$0xff]
    %v862 = vld [vmem:[#allocation12 + $0xb38] sm:$0xff]
    %v863 = vld [vmem:[#allocation12 + $0xb40] sm:$0xff]
    %v864 = vld [vmem:[#allocation12 + $0xb48] sm:$0xff]
    %v865 = vld [vmem:[#allocation12 + $0xb50] sm:$0xff]
    %v866 = vld [vmem:[#allocation12 + $0xb58] sm:$0xff]
    %v867 = vld [vmem:[#allocation12 + $0xb60] sm:$0xff]
    %v868 = vld [vmem:[#allocation12 + $0xb68] sm:$0xff]
    %v869 = vld [vmem:[#allocation12 + $0xb70] sm:$0xff]
    %v870 = vld [vmem:[#allocation12 + $0xb78] sm:$0xff]
    %v871 = vld [vmem:[#allocation12 + $0xb80] sm:$0xff]
    %v872 = vld [vmem:[#allocation12 + $0xb88] sm:$0xff]
    %v873 = vld [vmem:[#allocation12 + $0xb90] sm:$0xff]
    %v874 = vld [vmem:[#allocation12 + $0xb98] sm:$0xff]
    %v875 = vld [vmem:[#allocation12 + $0xba0] sm:$0xff]
    %v876 = vld [vmem:[#allocation12 + $0xba8] sm:$0xff]
    %v877 = vld [vmem:[#allocation12 + $0xbb0] sm:$0xff]
    %v878 = vld [vmem:[#allocation12 + $0xbb8] sm:$0xff]
    %v879 = vld [vmem:[#allocation12 + $0xbc0] sm:$0xff]
    %v880 = vld [vmem:[#allocation12 + $0xbc8] sm:$0xff]
    %v881 = vld [vmem:[#allocation12 + $0xbd0] sm:$0xff]
    %v882 = vld [vmem:[#allocation12 + $0xbd8] sm:$0xff]
    %v883 = vld [vmem:[#allocation12 + $0xbe0] sm:$0xff]
    %v884 = vld [vmem:[#allocation12 + $0xbe8] sm:$0xff]
    %v885 = vld [vmem:[#allocation12 + $0xbf0] sm:$0xff]
    %v886 = vld [vmem:[#allocation12 + $0xbf8] sm:$0xff]
    %v887 = vld [vmem:[#allocation12 + $0xc00] sm:$0xff]
    %v888 = vld [vmem:[#allocation12 + $0xc08] sm:$0xff]
    %v889 = vld [vmem:[#allocation12 + $0xc10] sm:$0xff]
    %v890 = vld [vmem:[#allocation12 + $0xc18] sm:$0xff]
    %v891 = vld [vmem:[#allocation12 + $0xc20] sm:$0xff]
    %v892 = vld [vmem:[#allocation12 + $0xc28] sm:$0xff]
    %v893 = vld [vmem:[#allocation12 + $0xc30] sm:$0xff]
    %v894 = vld [vmem:[#allocation12 + $0xc38] sm:$0xff]
    %v895 = vld [vmem:[#allocation12 + $0xc40] sm:$0xff]
    %v896 = vld [vmem:[#allocation12 + $0xc48] sm:$0xff]
    %v897 = vld [vmem:[#allocation12 + $0xc50] sm:$0xff]
    %v898 = vld [vmem:[#allocation12 + $0xc58] sm:$0xff]
    %v899 = vld [vmem:[#allocation12 + $0xc60] sm:$0xff]
    %v900 = vld [vmem:[#allocation12 + $0xc68] sm:$0xff]
    %v901 = vld [vmem:[#allocation12 + $0xc70] sm:$0xff]
    %v902 = vld [vmem:[#allocation12 + $0xc78] sm:$0xff]
    %v903 = vld [vmem:[#allocation12 + $0xc80] sm:$0xff]
    %v904 = vld [vmem:[#allocation12 + $0xc88] sm:$0xff]
    %v905 = vld [vmem:[#allocation12 + $0xc90] sm:$0xff]
    %v906 = vld [vmem:[#allocation12 + $0xc98] sm:$0xff]
    %v907 = vld [vmem:[#allocation12 + $0xca0] sm:$0xff]
    %v908 = vld [vmem:[#allocation12 + $0xca8] sm:$0xff]
    %v909 = vld [vmem:[#allocation12 + $0xcb0] sm:$0xff]
    %v910 = vld [vmem:[#allocation12 + $0xcb8] sm:$0xff]
    %v911 = vld [vmem:[#allocation12 + $0xcc0] sm:$0xff]
    %v912 = vld [vmem:[#allocation12 + $0xcc8] sm:$0xff]
    %v913 = vld [vmem:[#allocation12 + $0xcd0] sm:$0xff]
    %v914 = vld [vmem:[#allocation12 + $0xcd8] sm:$0xff]
    %v915 = vld [vmem:[#allocation12 + $0xce0] sm:$0xff]
    %v916 = vld [vmem:[#allocation12 + $0xce8] sm:$0xff]
    %v917 = vld [vmem:[#allocation12 + $0xcf0] sm:$0xff]
    %v918 = vld [vmem:[#allocation12 + $0xcf8] sm:$0xff]
    %v919 = vld [vmem:[#allocation12 + $0xd00] sm:$0xff]
    %v920 = vld [vmem:[#allocation12 + $0xd08] sm:$0xff]
    %v921 = vld [vmem:[#allocation12 + $0xd10] sm:$0xff]
    %v922 = vld [vmem:[#allocation12 + $0xd18] sm:$0xff]
    %v923 = vld [vmem:[#allocation12 + $0xd20] sm:$0xff]
    %v924 = vld [vmem:[#allocation12 + $0xd28] sm:$0xff]
    %v925 = vld [vmem:[#allocation12 + $0xd30] sm:$0xff]
    %v926 = vld [vmem:[#allocation12 + $0xd38] sm:$0xff]
    %v927 = vld [vmem:[#allocation12 + $0xd40] sm:$0xff]
    %v928 = vld [vmem:[#allocation12 + $0xd48] sm:$0xff]
    %v929 = vld [vmem:[#allocation12 + $0xd50] sm:$0xff]
    %v930 = vld [vmem:[#allocation12 + $0xd58] sm:$0xff]
    %v931 = vld [vmem:[#allocation12 + $0xd60] sm:$0xff]
    %v932 = vld [vmem:[#allocation12 + $0xd68] sm:$0xff]
    %v933 = vld [vmem:[#allocation12 + $0xd70] sm:$0xff]
    %v934 = vld [vmem:[#allocation12 + $0xd78] sm:$0xff]
    %v935 = vld [vmem:[#allocation12 + $0xd80] sm:$0xff]
    %v936 = vld [vmem:[#allocation12 + $0xd88] sm:$0xff]
    %v937 = vld [vmem:[#allocation12 + $0xd90] sm:$0xff]
    %v938 = vld [vmem:[#allocation12 + $0xd98] sm:$0xff]
    %v939 = vld [vmem:[#allocation12 + $0xda0] sm:$0xff]
    %v940 = vld [vmem:[#allocation12 + $0xda8] sm:$0xff]
    %v941 = vld [vmem:[#allocation12 + $0xdb0] sm:$0xff]
    %v942 = vld [vmem:[#allocation12 + $0xdb8] sm:$0xff]
    %v943 = vld [vmem:[#allocation12 + $0xdc0] sm:$0xff]
    %v944 = vld [vmem:[#allocation12 + $0xdc8] sm:$0xff]
    %v945 = vld [vmem:[#allocation12 + $0xdd0] sm:$0xff]
    %v946 = vld [vmem:[#allocation12 + $0xdd8] sm:$0xff]
    %v947 = vld [vmem:[#allocation12 + $0xde0] sm:$0xff]
    %v948 = vld [vmem:[#allocation12 + $0xde8] sm:$0xff]
    %v949 = vld [vmem:[#allocation12 + $0xdf0] sm:$0xff]
    %v950 = vld [vmem:[#allocation12 + $0xdf8] sm:$0xff]
    %v951 = vld [vmem:[#allocation12 + $0xe00] sm:$0xff]
    %v952 = vld [vmem:[#allocation12 + $0xe08] sm:$0xff]
    %v953 = vld [vmem:[#allocation12 + $0xe10] sm:$0xff]
    %v954 = vld [vmem:[#allocation12 + $0xe18] sm:$0xff]
    %v955 = vld [vmem:[#allocation12 + $0xe20] sm:$0xff]
    %v956 = vld [vmem:[#allocation12 + $0xe28] sm:$0xff]
    %v957 = vld [vmem:[#allocation12 + $0xe30] sm:$0xff]
    %v958 = vld [vmem:[#allocation12 + $0xe38] sm:$0xff]
    %v959 = vld [vmem:[#allocation12 + $0xe40] sm:$0xff]
    %v960 = vld [vmem:[#allocation12 + $0xe48] sm:$0xff]
    %v961 = vld [vmem:[#allocation12 + $0xe50] sm:$0xff]
    %v962 = vld [vmem:[#allocation12 + $0xe58] sm:$0xff]
    %v963 = vld [vmem:[#allocation12 + $0xe60] sm:$0xff]
    %v964 = vld [vmem:[#allocation12 + $0xe68] sm:$0xff]
    %v965 = vld [vmem:[#allocation12 + $0xe70] sm:$0xff]
    %v966 = vld [vmem:[#allocation12 + $0xe78] sm:$0xff]
    %v967 = vld [vmem:[#allocation12 + $0xe80] sm:$0xff]
    %v968 = vld [vmem:[#allocation12 + $0xe88] sm:$0xff]
    %v969 = vld [vmem:[#allocation12 + $0xe90] sm:$0xff]
    %v970 = vld [vmem:[#allocation12 + $0xe98] sm:$0xff]
    %v971 = vld [vmem:[#allocation12 + $0xea0] sm:$0xff]
    %v972 = vld [vmem:[#allocation12 + $0xea8] sm:$0xff]
    %v973 = vld [vmem:[#allocation12 + $0xeb0] sm:$0xff]
    %v974 = vld [vmem:[#allocation12 + $0xeb8] sm:$0xff]
    %v975 = vld [vmem:[#allocation12 + $0xec0] sm:$0xff]
    %v976 = vld [vmem:[#allocation12 + $0xec8] sm:$0xff]
    %v977 = vld [vmem:[#allocation12 + $0xed0] sm:$0xff]
    %v978 = vld [vmem:[#allocation12 + $0xed8] sm:$0xff]
    %v979 = vld [vmem:[#allocation12 + $0xee0] sm:$0xff]
    %v980 = vld [vmem:[#allocation12 + $0xee8] sm:$0xff]
    %v981 = vld [vmem:[#allocation12 + $0xef0] sm:$0xff]
    %v982 = vld [vmem:[#allocation12 + $0xef8] sm:$0xff]
    %v983 = vld [vmem:[#allocation12 + $0xf00] sm:$0xff]
    %v984 = vld [vmem:[#allocation12 + $0xf08] sm:$0xff]
    %v985 = vld [vmem:[#allocation12 + $0xf10] sm:$0xff]
    %v986 = vld [vmem:[#allocation12 + $0xf18] sm:$0xff]
    %v987 = vld [vmem:[#allocation12 + $0xf20] sm:$0xff]
    %v988 = vld [vmem:[#allocation12 + $0xf28] sm:$0xff]
    %v989 = vld [vmem:[#allocation12 + $0xf30] sm:$0xff]
    %v990 = vld [vmem:[#allocation12 + $0xf38] sm:$0xff]
    %v991 = vld [vmem:[#allocation12 + $0xf40] sm:$0xff]
    %v992 = vld [vmem:[#allocation12 + $0xf48] sm:$0xff]
    %v993 = vld [vmem:[#allocation12 + $0xf50] sm:$0xff]
    %v994 = vld [vmem:[#allocation12 + $0xf58] sm:$0xff]
    %v995 = vld [vmem:[#allocation12 + $0xf60] sm:$0xff]
    %v996 = vld [vmem:[#allocation12 + $0xf68] sm:$0xff]
    %v997 = vld [vmem:[#allocation12 + $0xf70] sm:$0xff]
    %v998 = vld [vmem:[#allocation12 + $0xf78] sm:$0xff]
    %v999 = vld [vmem:[#allocation12 + $0xf80] sm:$0xff]
    %v1000 = vld [vmem:[#allocation12 + $0xf88] sm:$0xff]
    %v1001 = vld [vmem:[#allocation12 + $0xf90] sm:$0xff]
    %v1002 = vld [vmem:[#allocation12 + $0xf98] sm:$0xff]
    %v1003 = vld [vmem:[#allocation12 + $0xfa0] sm:$0xff]
    %v1004 = vld [vmem:[#allocation12 + $0xfa8] sm:$0xff]
    %v1005 = vld [vmem:[#allocation12 + $0xfb0] sm:$0xff]
    %v1006 = vld [vmem:[#allocation12 + $0xfb8] sm:$0xff]
    %v1007 = vld [vmem:[#allocation12 + $0xfc0] sm:$0xff]
    %v1008 = vld [vmem:[#allocation12 + $0xfc8] sm:$0xff]
    %v1009 = vld [vmem:[#allocation12 + $0xfd0] sm:$0xff]
    %v1010 = vld [vmem:[#allocation12 + $0xfd8] sm:$0xff]
    %v1011 = vld [vmem:[#allocation12 + $0xfe0] sm:$0xff]
    %v1012 = vld [vmem:[#allocation12 + $0xfe8] sm:$0xff]
    %v1013 = vld [vmem:[#allocation12 + $0xff0] sm:$0xff]
    %v1014 = vld [vmem:[#allocation12 + $0xff8] sm:$0xff]
    %v1015 = vld [vmem:[#allocation12 + $0x1000] sm:$0xff]
    %v1016 = vld [vmem:[#allocation12 + $0x1008] sm:$0xff]
    %v1017 = vld [vmem:[#allocation12 + $0x1010] sm:$0xff]
    %v1018 = vld [vmem:[#allocation12 + $0x1018] sm:$0xff]
    %v1019 = vld [vmem:[#allocation12 + $0x1020] sm:$0xff]
    %v1020 = vld [vmem:[#allocation12 + $0x1028] sm:$0xff]
    %v1021 = vld [vmem:[#allocation12 + $0x1030] sm:$0xff]
    %v1022 = vld [vmem:[#allocation12 + $0x1038] sm:$0xff]
    %v1023 = vld [vmem:[#allocation12 + $0x1040] sm:$0xff]
    %v1024 = vld [vmem:[#allocation12 + $0x1048] sm:$0xff]
    %v1025 = vld [vmem:[#allocation12 + $0x1050] sm:$0xff]
    %v1026 = vld [vmem:[#allocation12 + $0x1058] sm:$0xff]
    %v1027 = vld [vmem:[#allocation12 + $0x1060] sm:$0xff]
    %v1028 = vld [vmem:[#allocation12 + $0x1068] sm:$0xff]
    %v1029 = vld [vmem:[#allocation12 + $0x1070] sm:$0xff]
    %v1030 = vld [vmem:[#allocation12 + $0x1078] sm:$0xff]
    %v1031 = vld [vmem:[#allocation12 + $0x1080] sm:$0xff]
    %v1032 = vld [vmem:[#allocation12 + $0x1088] sm:$0xff]
    %v1033 = vld [vmem:[#allocation12 + $0x1090] sm:$0xff]
    %v1034 = vld [vmem:[#allocation12 + $0x1098] sm:$0xff]
    %v1035 = vld [vmem:[#allocation12 + $0x10a0] sm:$0xff]
    %v1036 = vld [vmem:[#allocation12 + $0x10a8] sm:$0xff]
    %v1037 = vld [vmem:[#allocation12 + $0x10b0] sm:$0xff]
    %v1038 = vld [vmem:[#allocation12 + $0x10b8] sm:$0xff]
    %v1039 = vld [vmem:[#allocation12 + $0x10c0] sm:$0xff]
    %v1040 = vld [vmem:[#allocation12 + $0x10c8] sm:$0xff]
    %v1041 = vld [vmem:[#allocation12 + $0x10d0] sm:$0xff]
    %v1042 = vld [vmem:[#allocation12 + $0x10d8] sm:$0xff]
    %v1043 = vld [vmem:[#allocation12 + $0x10e0] sm:$0xff]
    %v1044 = vld [vmem:[#allocation12 + $0x10e8] sm:$0xff]
    %v1045 = vld [vmem:[#allocation12 + $0x10f0] sm:$0xff]
    %v1046 = vld [vmem:[#allocation12 + $0x10f8] sm:$0xff]
    %v1047 = vld [vmem:[#allocation12 + $0x1100] sm:$0xff]
    %v1048 = vld [vmem:[#allocation12 + $0x1108] sm:$0xff]
    %v1049 = vld [vmem:[#allocation12 + $0x1110] sm:$0xff]
    %v1050 = vld [vmem:[#allocation12 + $0x1118] sm:$0xff]
    %v1051 = vld [vmem:[#allocation12 + $0x1120] sm:$0xff]
    %v1052 = vld [vmem:[#allocation12 + $0x1128] sm:$0xff]
    %v1053 = vld [vmem:[#allocation12 + $0x1130] sm:$0xff]
    %v1054 = vld [vmem:[#allocation12 + $0x1138] sm:$0xff]
    %v1055 = vld [vmem:[#allocation12 + $0x1140] sm:$0xff]
    %v1056 = vld [vmem:[#allocation12 + $0x1148] sm:$0xff]
    %v1057 = vld [vmem:[#allocation12 + $0x1150] sm:$0xff]
    %v1058 = vld [vmem:[#allocation12 + $0x1158] sm:$0xff]
    %v1059 = vld [vmem:[#allocation12 + $0x1160] sm:$0xff]
    %v1060 = vld [vmem:[#allocation12 + $0x1168] sm:$0xff]
    %v1061 = vld [vmem:[#allocation12 + $0x1170] sm:$0xff]
    %v1062 = vld [vmem:[#allocation12 + $0x1178] sm:$0xff]
    %v1063 = vld [vmem:[#allocation12 + $0x1180] sm:$0xff]
    %v1064 = vld [vmem:[#allocation12 + $0x1188] sm:$0xff]
    %v1065 = vld [vmem:[#allocation12 + $0x1190] sm:$0xff]
    %v1066 = vld [vmem:[#allocation12 + $0x1198] sm:$0xff]
    %v1067 = vld [vmem:[#allocation12 + $0x11a0] sm:$0xff]
    %v1068 = vld [vmem:[#allocation12 + $0x11a8] sm:$0xff]
    %v1069 = vld [vmem:[#allocation12 + $0x11b0] sm:$0xff]
    %v1070 = vld [vmem:[#allocation12 + $0x11b8] sm:$0xff]
    %v1071 = vld [vmem:[#allocation12 + $0x11c0] sm:$0xff]
    %v1072 = vld [vmem:[#allocation12 + $0x11c8] sm:$0xff]
    %v1073 = vld [vmem:[#allocation12 + $0x11d0] sm:$0xff]
    %v1074 = vld [vmem:[#allocation12 + $0x11d8] sm:$0xff]
    %v1075 = vld [vmem:[#allocation12 + $0x11e0] sm:$0xff]
    %v1076 = vld [vmem:[#allocation12 + $0x11e8] sm:$0xff]
    %v1077 = vld [vmem:[#allocation12 + $0x11f0] sm:$0xff]
    %v1078 = vld [vmem:[#allocation12 + $0x11f8] sm:$0xff]
    %v1079 = vld [vmem:[#allocation12 + $0x1200] sm:$0xff]
    %v1080 = vld [vmem:[#allocation12 + $0x1208] sm:$0xff]
    %v1081 = vld [vmem:[#allocation12 + $0x1210] sm:$0xff]
    %v1082 = vld [vmem:[#allocation12 + $0x1218] sm:$0xff]
    %v1083 = vld [vmem:[#allocation12 + $0x1220] sm:$0xff]
    %v1084 = vld [vmem:[#allocation12 + $0x1228] sm:$0xff]
    %v1085 = vld [vmem:[#allocation12 + $0x1230] sm:$0xff]
    %v1086 = vld [vmem:[#allocation12 + $0x1238] sm:$0xff]
    %v1087 = vld [vmem:[#allocation12 + $0x1240] sm:$0xff]
    %v1088 = vld [vmem:[#allocation12 + $0x1248] sm:$0xff]
    %v1089 = vld [vmem:[#allocation12 + $0x1250] sm:$0xff]
    %v1090 = vld [vmem:[#allocation12 + $0x1258] sm:$0xff]
    %v1091 = vld [vmem:[#allocation12 + $0x1260] sm:$0xff]
    %v1092 = vld [vmem:[#allocation12 + $0x1268] sm:$0xff]
    %v1093 = vld [vmem:[#allocation12 + $0x1270] sm:$0xff]
    %v1094 = vld [vmem:[#allocation12 + $0x1278] sm:$0xff]
    %v1095 = vld [vmem:[#allocation12 + $0x1280] sm:$0xff]
    %v1096 = vld [vmem:[#allocation12 + $0x1288] sm:$0xff]
    %v1097 = vld [vmem:[#allocation12 + $0x1290] sm:$0xff]
    %v1098 = vld [vmem:[#allocation12 + $0x1298] sm:$0xff]
    %v1099 = vld [vmem:[#allocation12 + $0x12a0] sm:$0xff]
    %v1100 = vld [vmem:[#allocation12 + $0x12a8] sm:$0xff]
    %v1101 = vld [vmem:[#allocation12 + $0x12b0] sm:$0xff]
    %v1102 = vld [vmem:[#allocation12 + $0x12b8] sm:$0xff]
    %v1103 = vld [vmem:[#allocation12 + $0x12c0] sm:$0xff]
    %v1104 = vld [vmem:[#allocation12 + $0x12c8] sm:$0xff]
    %v1105 = vld [vmem:[#allocation12 + $0x12d0] sm:$0xff]
    %v1106 = vld [vmem:[#allocation12 + $0x12d8] sm:$0xff]
    %v1107 = vld [vmem:[#allocation12 + $0x12e0] sm:$0xff]
    %v1108 = vld [vmem:[#allocation12 + $0x12e8] sm:$0xff]
    %v1109 = vld [vmem:[#allocation12 + $0x12f0] sm:$0xff]
    %v1110 = vld [vmem:[#allocation12 + $0x12f8] sm:$0xff]
    %v1111 = vld [vmem:[#allocation12 + $0x1300] sm:$0xff]
    %v1112 = vld [vmem:[#allocation12 + $0x1308] sm:$0xff]
    %v1113 = vld [vmem:[#allocation12 + $0x1310] sm:$0xff]
    %v1114 = vld [vmem:[#allocation12 + $0x1318] sm:$0xff]
    %v1115 = vld [vmem:[#allocation12 + $0x1320] sm:$0xff]
    %v1116 = vld [vmem:[#allocation12 + $0x1328] sm:$0xff]
    %v1117 = vld [vmem:[#allocation12 + $0x1330] sm:$0xff]
    %v1118 = vld [vmem:[#allocation12 + $0x1338] sm:$0xff]
    %v1119 = vld [vmem:[#allocation12 + $0x1340] sm:$0xff]
    %v1120 = vld [vmem:[#allocation12 + $0x1348] sm:$0xff]
    %v1121 = vld [vmem:[#allocation12 + $0x1350] sm:$0xff]
    %v1122 = vld [vmem:[#allocation12 + $0x1358] sm:$0xff]
    %v1123 = vld [vmem:[#allocation12 + $0x1360] sm:$0xff]
    %v1124 = vld [vmem:[#allocation12 + $0x1368] sm:$0xff]
    %v1125 = vld [vmem:[#allocation12 + $0x1370] sm:$0xff]
    %v1126 = vld [vmem:[#allocation12 + $0x1378] sm:$0xff]
    %v1127 = vld [vmem:[#allocation12 + $0x1380] sm:$0xff]
    %v1128 = vld [vmem:[#allocation12 + $0x1388] sm:$0xff]
    %v1129 = vld [vmem:[#allocation12 + $0x1390] sm:$0xff]
    %v1130 = vld [vmem:[#allocation12 + $0x1398] sm:$0xff]
    %v1131 = vld [vmem:[#allocation12 + $0x13a0] sm:$0xff]
    %v1132 = vld [vmem:[#allocation12 + $0x13a8] sm:$0xff]
    %v1133 = vld [vmem:[#allocation12 + $0x13b0] sm:$0xff]
    %v1134 = vld [vmem:[#allocation12 + $0x13b8] sm:$0xff]
    %v1135 = vld [vmem:[#allocation12 + $0x13c0] sm:$0xff]
    %v1136 = vld [vmem:[#allocation12 + $0x13c8] sm:$0xff]
    %v1137 = vld [vmem:[#allocation12 + $0x13d0] sm:$0xff]
    %v1138 = vld [vmem:[#allocation12 + $0x13d8] sm:$0xff]
    %v1139 = vld [vmem:[#allocation12 + $0x13e0] sm:$0xff]
    %v1140 = vld [vmem:[#allocation12 + $0x13e8] sm:$0xff]
    %v1141 = vld [vmem:[#allocation12 + $0x13f0] sm:$0xff]
    %v1142 = vld [vmem:[#allocation12 + $0x13f8] sm:$0xff]
    %v1143 = vld [vmem:[#allocation12 + $0x1400] sm:$0xff]
    %v1144 = vld [vmem:[#allocation12 + $0x1408] sm:$0xff]
    %v1145 = vld [vmem:[#allocation12 + $0x1410] sm:$0xff]
    %v1146 = vld [vmem:[#allocation12 + $0x1418] sm:$0xff]
    %v1147 = vld [vmem:[#allocation12 + $0x1420] sm:$0xff]
    %v1148 = vld [vmem:[#allocation12 + $0x1428] sm:$0xff]
    %v1149 = vld [vmem:[#allocation12 + $0x1430] sm:$0xff]
    %v1150 = vld [vmem:[#allocation12 + $0x1438] sm:$0xff]
    %v1151 = vld [vmem:[#allocation12 + $0x1440] sm:$0xff]
    %v1152 = vld [vmem:[#allocation12 + $0x1448] sm:$0xff]
    %v1153 = vld [vmem:[#allocation12 + $0x1450] sm:$0xff]
    %v1154 = vld [vmem:[#allocation12 + $0x1458] sm:$0xff]
    %v1155 = vld [vmem:[#allocation12 + $0x1460] sm:$0xff]
    %v1156 = vld [vmem:[#allocation12 + $0x1468] sm:$0xff]
    %v1157 = vld [vmem:[#allocation12 + $0x1470] sm:$0xff]
    %v1158 = vld [vmem:[#allocation12 + $0x1478] sm:$0xff]
    %v1159 = vld [vmem:[#allocation12 + $0x1480] sm:$0xff]
    %v1160 = vld [vmem:[#allocation12 + $0x1488] sm:$0xff]
    %v1161 = vld [vmem:[#allocation12 + $0x1490] sm:$0xff]
    %v1162 = vld [vmem:[#allocation12 + $0x1498] sm:$0xff]
    %v1163 = vld [vmem:[#allocation12 + $0x14a0] sm:$0xff]
    %v1164 = vld [vmem:[#allocation12 + $0x14a8] sm:$0xff]
    %v1165 = vld [vmem:[#allocation12 + $0x14b0] sm:$0xff]
    %v1166 = vld [vmem:[#allocation12 + $0x14b8] sm:$0xff]
    %v1167 = vld [vmem:[#allocation12 + $0x14c0] sm:$0xff]
    %v1168 = vld [vmem:[#allocation12 + $0x14c8] sm:$0xff]
    %v1169 = vld [vmem:[#allocation12 + $0x14d0] sm:$0xff]
    %v1170 = vld [vmem:[#allocation12 + $0x14d8] sm:$0xff]
    %v1171 = vld [vmem:[#allocation12 + $0x14e0] sm:$0xff]
    %v1172 = vld [vmem:[#allocation12 + $0x14e8] sm:$0xff]
    %v1173 = vld [vmem:[#allocation12 + $0x14f0] sm:$0xff]
    %v1174 = vld [vmem:[#allocation12 + $0x14f8] sm:$0xff]
    %v1175 = vld [vmem:[#allocation12 + $0x1500] sm:$0xff]
    %v1176 = vld [vmem:[#allocation12 + $0x1508] sm:$0xff]
    %v1177 = vld [vmem:[#allocation12 + $0x1510] sm:$0xff]
    %v1178 = vld [vmem:[#allocation12 + $0x1518] sm:$0xff]
    %v1179 = vld [vmem:[#allocation12 + $0x1520] sm:$0xff]
    %v1180 = vld [vmem:[#allocation12 + $0x1528] sm:$0xff]
    %v1181 = vld [vmem:[#allocation12 + $0x1530] sm:$0xff]
    %v1182 = vld [vmem:[#allocation12 + $0x1538] sm:$0xff]
    %v1183 = vld [vmem:[#allocation12 + $0x1540] sm:$0xff]
    %v1184 = vld [vmem:[#allocation12 + $0x1548] sm:$0xff]
    %v1185 = vld [vmem:[#allocation12 + $0x1550] sm:$0xff]
    %v1186 = vld [vmem:[#allocation12 + $0x1558] sm:$0xff]
    %v1187 = vld [vmem:[#allocation12 + $0x1560] sm:$0xff]
    %v1188 = vld [vmem:[#allocation12 + $0x1568] sm:$0xff]
    %v1189 = vld [vmem:[#allocation12 + $0x1570] sm:$0xff]
    %v1190 = vld [vmem:[#allocation12 + $0x1578] sm:$0xff]
    %v1191 = vld [vmem:[#allocation12 + $0x1580] sm:$0xff]
    %v1192 = vld [vmem:[#allocation12 + $0x1588] sm:$0xff]
    %v1193 = vld [vmem:[#allocation12 + $0x1590] sm:$0xff]
    %v1194 = vld [vmem:[#allocation12 + $0x1598] sm:$0xff]
    %v1195 = vld [vmem:[#allocation12 + $0x15a0] sm:$0xff]
    %v1196 = vld [vmem:[#allocation12 + $0x15a8] sm:$0xff]
    %v1197 = vld [vmem:[#allocation12 + $0x15b0] sm:$0xff]
    %v1198 = vld [vmem:[#allocation12 + $0x15b8] sm:$0xff]
    %v1199 = vld [vmem:[#allocation12 + $0x15c0] sm:$0xff]
    %v1200 = vld [vmem:[#allocation12 + $0x15c8] sm:$0xff]
    %v1201 = vld [vmem:[#allocation12 + $0x15d0] sm:$0xff]
    %v1202 = vld [vmem:[#allocation12 + $0x15d8] sm:$0xff]
    %v1203 = vld [vmem:[#allocation12 + $0x15e0] sm:$0xff]
    %v1204 = vld [vmem:[#allocation12 + $0x15e8] sm:$0xff]
    %v1205 = vld [vmem:[#allocation12 + $0x15f0] sm:$0xff]
    %v1206 = vld [vmem:[#allocation12 + $0x15f8] sm:$0xff]
    %v1207 = vld [vmem:[#allocation12 + $0x1600] sm:$0xff]
    %v1208 = vld [vmem:[#allocation12 + $0x1608] sm:$0xff]
    %v1209 = vld [vmem:[#allocation12 + $0x1610] sm:$0xff]
    %v1210 = vld [vmem:[#allocation12 + $0x1618] sm:$0xff]
    %v1211 = vld [vmem:[#allocation12 + $0x1620] sm:$0xff]
    %v1212 = vld [vmem:[#allocation12 + $0x1628] sm:$0xff]
    %v1213 = vld [vmem:[#allocation12 + $0x1630] sm:$0xff]
    %v1214 = vld [vmem:[#allocation12 + $0x1638] sm:$0xff]
    %v1215 = vld [vmem:[#allocation12 + $0x1640] sm:$0xff]
    %v1216 = vld [vmem:[#allocation12 + $0x1648] sm:$0xff]
    %v1217 = vld [vmem:[#allocation12 + $0x1650] sm:$0xff]
    %v1218 = vld [vmem:[#allocation12 + $0x1658] sm:$0xff]
    %v1219 = vld [vmem:[#allocation12 + $0x1660] sm:$0xff]
    %v1220 = vld [vmem:[#allocation12 + $0x1668] sm:$0xff]
    %v1221 = vld [vmem:[#allocation12 + $0x1670] sm:$0xff]
    %v1222 = vld [vmem:[#allocation12 + $0x1678] sm:$0xff]
    %v1223 = vld [vmem:[#allocation12 + $0x1680] sm:$0xff]
    %v1224 = vld [vmem:[#allocation12 + $0x1688] sm:$0xff]
    %v1225 = vld [vmem:[#allocation12 + $0x1690] sm:$0xff]
    %v1226 = vld [vmem:[#allocation12 + $0x1698] sm:$0xff]
    %v1227 = vld [vmem:[#allocation12 + $0x16a0] sm:$0xff]
    %v1228 = vld [vmem:[#allocation12 + $0x16a8] sm:$0xff]
    %v1229 = vld [vmem:[#allocation12 + $0x16b0] sm:$0xff]
    %v1230 = vld [vmem:[#allocation12 + $0x16b8] sm:$0xff]
    %v1231 = vld [vmem:[#allocation12 + $0x16c0] sm:$0xff]
    %v1232 = vld [vmem:[#allocation12 + $0x16c8] sm:$0xff]
    %v1233 = vld [vmem:[#allocation12 + $0x16d0] sm:$0xff]
    %v1234 = vld [vmem:[#allocation12 + $0x16d8] sm:$0xff]
    %v1235 = vld [vmem:[#allocation12 + $0x16e0] sm:$0xff]
    %v1236 = vld [vmem:[#allocation12 + $0x16e8] sm:$0xff]
    %v1237 = vld [vmem:[#allocation12 + $0x16f0] sm:$0xff]
    %v1238 = vld [vmem:[#allocation12 + $0x16f8] sm:$0xff]
    %v1239 = vld [vmem:[#allocation12 + $0x1700] sm:$0xff]
    %v1240 = vld [vmem:[#allocation12 + $0x1708] sm:$0xff]
    %v1241 = vld [vmem:[#allocation12 + $0x1710] sm:$0xff]
    %v1242 = vld [vmem:[#allocation12 + $0x1718] sm:$0xff]
    %v1243 = vld [vmem:[#allocation12 + $0x1720] sm:$0xff]
    %v1244 = vld [vmem:[#allocation12 + $0x1728] sm:$0xff]
    %v1245 = vld [vmem:[#allocation12 + $0x1730] sm:$0xff]
    %v1246 = vld [vmem:[#allocation12 + $0x1738] sm:$0xff]
    %v1247 = vld [vmem:[#allocation12 + $0x1740] sm:$0xff]
    %v1248 = vld [vmem:[#allocation12 + $0x1748] sm:$0xff]
    %v1249 = vld [vmem:[#allocation12 + $0x1750] sm:$0xff]
    %v1250 = vld [vmem:[#allocation12 + $0x1758] sm:$0xff]
    %v1251 = vld [vmem:[#allocation12 + $0x1760] sm:$0xff]
    %v1252 = vld [vmem:[#allocation12 + $0x1768] sm:$0xff]
    %v1253 = vld [vmem:[#allocation12 + $0x1770] sm:$0xff]
    %v1254 = vld [vmem:[#allocation12 + $0x1778] sm:$0xff]
    %v1255 = vld [vmem:[#allocation12 + $0x1780] sm:$0xff]
    %v1256 = vld [vmem:[#allocation12 + $0x1788] sm:$0xff]
    %v1257 = vld [vmem:[#allocation12 + $0x1790] sm:$0xff]
    %v1258 = vld [vmem:[#allocation12 + $0x1798] sm:$0xff]
    %v1259 = vld [vmem:[#allocation12 + $0x17a0] sm:$0xff]
    %v1260 = vld [vmem:[#allocation12 + $0x17a8] sm:$0xff]
    %v1261 = vld [vmem:[#allocation12 + $0x17b0] sm:$0xff]
    %v1262 = vld [vmem:[#allocation12 + $0x17b8] sm:$0xff]
    %v1263 = vld [vmem:[#allocation12 + $0x17c0] sm:$0xff]
    %v1264 = vld [vmem:[#allocation12 + $0x17c8] sm:$0xff]
    %v1265 = vld [vmem:[#allocation12 + $0x17d0] sm:$0xff]
    %v1266 = vld [vmem:[#allocation12 + $0x17d8] sm:$0xff]
    %v1267 = vld [vmem:[#allocation12 + $0x17e0] sm:$0xff]
    %v1268 = vld [vmem:[#allocation12 + $0x17e8] sm:$0xff]
    %v1269 = vld [vmem:[#allocation12 + $0x17f0] sm:$0xff]
    %v1270 = vld [vmem:[#allocation12 + $0x17f8] sm:$0xff]
    %v1271 = vld [vmem:[#allocation14] sm:$0xff]
    %v1272 = vld [vmem:[#allocation14 + $0x8] sm:$0xf]
    %v1275 = vperm.slane %v1271, 0
    %v1276 = vperm.slane %v1271, 1
    %v1277 = vperm.slane %v1271, 2
    %v1278 = vperm.slane %v1271, 3
    %v1279 = vperm.slane %v1271, 4
    %v1280 = vperm.slane %v1271, 5
    %v1281 = vperm.slane %v1271, 6
    %v1282 = vperm.slane %v1271, 7
    %v1283 = vperm.slane %v1272, 0
    %v1284 = vperm.slane %v1272, 1
    %v1285 = vperm.slane %v1272, 2
    %v1286 = vperm.slane %v1272, 3
    %1299 = vmatpush.msra.mxu0 %v683
    %1300 = vmatpush.msra.mxu0 %v671
    %1301 = vmatpush.msra.mxu0 %v659
    %1302 = vmatpush.msra.mxu0 %v647
    %1303 = vmatpush.msra.mxu0 %v635
    %1304 = vmatpush.msra.mxu0 %v623
    %1305 = vmatpush.msra.mxu0 %v611
    %1306 = vmatpush.msra.mxu0 %v599
    %1307 = vmatpush.msra.mxu0 %v587
    %1308 = vmatpush.msra.mxu0 %v575
    %1309 = vmatpush.msra.mxu0 %v563
    %1310 = vmatpush.msra.mxu0 %v551
    %1311 = vmatpush.msra.mxu0 %v539
    %1312 = vmatpush.msra.mxu0 %v527
    %1313 = vmatpush.msra.mxu0 %v515
    %1314 = vmatpush.msra.mxu0 %v503
    %1315 = vmatmul.f32.gmra.mxu0 %v499
    %v1316 = vpop.f32.mrf.mxu0
    %v1317 = vadd.f32 %v1275, %v1316
    %1318 = vdwg.mxu0
    %1319 = vmatpush.msra.mxu0 %v875
    %1320 = vmatpush.msra.mxu0 %v863
    %1321 = vmatpush.msra.mxu0 %v851
    %1322 = vmatpush.msra.mxu0 %v839
    %1323 = vmatpush.msra.mxu0 %v827
    %1324 = vmatpush.msra.mxu0 %v815
    %1325 = vmatpush.msra.mxu0 %v803
    %1326 = vmatpush.msra.mxu0 %v791
    %1327 = vmatpush.msra.mxu0 %v779
    %1328 = vmatpush.msra.mxu0 %v767
    %1329 = vmatpush.msra.mxu0 %v755
    %1330 = vmatpush.msra.mxu0 %v743
    %1331 = vmatpush.msra.mxu0 %v731
    %1332 = vmatpush.msra.mxu0 %v719
    %1333 = vmatpush.msra.mxu0 %v707
    %1334 = vmatpush.msra.mxu0 %v695
    %1335 = vmatmul.f32.gmra.mxu0 %v500
    %v1336 = vpop.f32.mrf.mxu0
    %v1337 = vadd.f32 %v1317, %v1336
    %1338 = vdwg.mxu0
    %1339 = vmatpush.msra.mxu0 %v1067
    %1340 = vmatpush.msra.mxu0 %v1055
    %1341 = vmatpush.msra.mxu0 %v1043
    %1342 = vmatpush.msra.mxu0 %v1031
    %1343 = vmatpush.msra.mxu0 %v1019
    %1344 = vmatpush.msra.mxu0 %v1007
    %1345 = vmatpush.msra.mxu0 %v995
    %1346 = vmatpush.msra.mxu0 %v983
    %1347 = vmatpush.msra.mxu0 %v971
    %1348 = vmatpush.msra.mxu0 %v959
    %1349 = vmatpush.msra.mxu0 %v947
    %1350 = vmatpush.msra.mxu0 %v935
    %1351 = vmatpush.msra.mxu0 %v923
    %1352 = vmatpush.msra.mxu0 %v911
    %1353 = vmatpush.msra.mxu0 %v899
    %1354 = vmatpush.msra.mxu0 %v887
    %1355 = vmatmul.f32.gmra.mxu0 %v501
    %v1356 = vpop.f32.mrf.mxu0
    %v1357 = vadd.f32 %v1337, %v1356
    %1358 = vdwg.mxu0
    %1359 = vmatpush.msra.mxu0 %v1259
    %1360 = vmatpush.msra.mxu0 %v1247
    %1361 = vmatpush.msra.mxu0 %v1235
    %1362 = vmatpush.msra.mxu0 %v1223
    %1363 = vmatpush.msra.mxu0 %v1211
    %1364 = vmatpush.msra.mxu0 %v1199
    %1365 = vmatpush.msra.mxu0 %v1187
    %1366 = vmatpush.msra.mxu0 %v1175
    %1367 = vmatpush.msra.mxu0 %v1163
    %1368 = vmatpush.msra.mxu0 %v1151
    %1369 = vmatpush.msra.mxu0 %v1139
    %1370 = vmatpush.msra.mxu0 %v1127
    %1371 = vmatpush.msra.mxu0 %v1115
    %1372 = vmatpush.msra.mxu0 %v1103
    %1373 = vmatpush.msra.mxu0 %v1091
    %1374 = vmatpush.msra.mxu0 %v1079
    %1375 = vmatmul.f32.gmra.mxu0 %v502
    %v1376 = vpop.f32.mrf.mxu0
    %v1377 = vadd.f32 %v1357, %v1376
    %1378 = vdwg.mxu0
    %1379 = vmatpush.msra.mxu0 %v684
    %1380 = vmatpush.msra.mxu0 %v672
    %1381 = vmatpush.msra.mxu0 %v660
    %1382 = vmatpush.msra.mxu0 %v648
    %1383 = vmatpush.msra.mxu0 %v636
    %1384 = vmatpush.msra.mxu0 %v624
    %1385 = vmatpush.msra.mxu0 %v612
    %1386 = vmatpush.msra.mxu0 %v600
    %1387 = vmatpush.msra.mxu0 %v588
    %1388 = vmatpush.msra.mxu0 %v576
    %1389 = vmatpush.msra.mxu0 %v564
    %1390 = vmatpush.msra.mxu0 %v552
    %1391 = vmatpush.msra.mxu0 %v540
    %1392 = vmatpush.msra.mxu0 %v528
    %1393 = vmatpush.msra.mxu0 %v516
    %1394 = vmatpush.msra.mxu0 %v504
    %1395 = vmatmul.f32.gmra.mxu0 %v499
    %v1396 = vpop.f32.mrf.mxu0
    %v1397 = vadd.f32 %v1276, %v1396
    %1398 = vdwg.mxu0
    %1399 = vmatpush.msra.mxu0 %v876
    %1400 = vmatpush.msra.mxu0 %v864
    %1401 = vmatpush.msra.mxu0 %v852
    %1402 = vmatpush.msra.mxu0 %v840
    %1403 = vmatpush.msra.mxu0 %v828
    %1404 = vmatpush.msra.mxu0 %v816
    %1405 = vmatpush.msra.mxu0 %v804
    %1406 = vmatpush.msra.mxu0 %v792
    %1407 = vmatpush.msra.mxu0 %v780
    %1408 = vmatpush.msra.mxu0 %v768
    %1409 = vmatpush.msra.mxu0 %v756
    %1410 = vmatpush.msra.mxu0 %v744
    %1411 = vmatpush.msra.mxu0 %v732
    %1412 = vmatpush.msra.mxu0 %v720
    %1413 = vmatpush.msra.mxu0 %v708
    %1414 = vmatpush.msra.mxu0 %v696
    %1415 = vmatmul.f32.gmra.mxu0 %v500
    %v1416 = vpop.f32.mrf.mxu0
    %v1417 = vadd.f32 %v1397, %v1416
    %1418 = vdwg.mxu0
    %1419 = vmatpush.msra.mxu0 %v1068
    %1420 = vmatpush.msra.mxu0 %v1056
    %1421 = vmatpush.msra.mxu0 %v1044
    %1422 = vmatpush.msra.mxu0 %v1032
    %1423 = vmatpush.msra.mxu0 %v1020
    %1424 = vmatpush.msra.mxu0 %v1008
    %1425 = vmatpush.msra.mxu0 %v996
    %1426 = vmatpush.msra.mxu0 %v984
    %1427 = vmatpush.msra.mxu0 %v972
    %1428 = vmatpush.msra.mxu0 %v960
    %1429 = vmatpush.msra.mxu0 %v948
    %1430 = vmatpush.msra.mxu0 %v936
    %1431 = vmatpush.msra.mxu0 %v924
    %1432 = vmatpush.msra.mxu0 %v912
    %1433 = vmatpush.msra.mxu0 %v900
    %1434 = vmatpush.msra.mxu0 %v888
    %1435 = vmatmul.f32.gmra.mxu0 %v501
    %v1436 = vpop.f32.mrf.mxu0
    %v1437 = vadd.f32 %v1417, %v1436
    %1438 = vdwg.mxu0
    %1439 = vmatpush.msra.mxu0 %v1260
    %1440 = vmatpush.msra.mxu0 %v1248
    %1441 = vmatpush.msra.mxu0 %v1236
    %1442 = vmatpush.msra.mxu0 %v1224
    %1443 = vmatpush.msra.mxu0 %v1212
    %1444 = vmatpush.msra.mxu0 %v1200
    %1445 = vmatpush.msra.mxu0 %v1188
    %1446 = vmatpush.msra.mxu0 %v1176
    %1447 = vmatpush.msra.mxu0 %v1164
    %1448 = vmatpush.msra.mxu0 %v1152
    %1449 = vmatpush.msra.mxu0 %v1140
    %1450 = vmatpush.msra.mxu0 %v1128
    %1451 = vmatpush.msra.mxu0 %v1116
    %1452 = vmatpush.msra.mxu0 %v1104
    %1453 = vmatpush.msra.mxu0 %v1092
    %1454 = vmatpush.msra.mxu0 %v1080
    %1455 = vmatmul.f32.gmra.mxu0 %v502
    %v1456 = vpop.f32.mrf.mxu0
    %v1457 = vadd.f32 %v1437, %v1456
    %1458 = vdwg.mxu0
    %1459 = vmatpush.msra.mxu0 %v685
    %1460 = vmatpush.msra.mxu0 %v673
    %1461 = vmatpush.msra.mxu0 %v661
    %1462 = vmatpush.msra.mxu0 %v649
    %1463 = vmatpush.msra.mxu0 %v637
    %1464 = vmatpush.msra.mxu0 %v625
    %1465 = vmatpush.msra.mxu0 %v613
    %1466 = vmatpush.msra.mxu0 %v601
    %1467 = vmatpush.msra.mxu0 %v589
    %1468 = vmatpush.msra.mxu0 %v577
    %1469 = vmatpush.msra.mxu0 %v565
    %1470 = vmatpush.msra.mxu0 %v553
    %1471 = vmatpush.msra.mxu0 %v541
    %1472 = vmatpush.msra.mxu0 %v529
    %1473 = vmatpush.msra.mxu0 %v517
    %1474 = vmatpush.msra.mxu0 %v505
    %1475 = vmatmul.f32.gmra.mxu0 %v499
    %v1476 = vpop.f32.mrf.mxu0
    %v1477 = vadd.f32 %v1277, %v1476
    %1478 = vdwg.mxu0
    %1479 = vmatpush.msra.mxu0 %v877
    %1480 = vmatpush.msra.mxu0 %v865
    %1481 = vmatpush.msra.mxu0 %v853
    %1482 = vmatpush.msra.mxu0 %v841
    %1483 = vmatpush.msra.mxu0 %v829
    %1484 = vmatpush.msra.mxu0 %v817
    %1485 = vmatpush.msra.mxu0 %v805
    %1486 = vmatpush.msra.mxu0 %v793
    %1487 = vmatpush.msra.mxu0 %v781
    %1488 = vmatpush.msra.mxu0 %v769
    %1489 = vmatpush.msra.mxu0 %v757
    %1490 = vmatpush.msra.mxu0 %v745
    %1491 = vmatpush.msra.mxu0 %v733
    %1492 = vmatpush.msra.mxu0 %v721
    %1493 = vmatpush.msra.mxu0 %v709
    %1494 = vmatpush.msra.mxu0 %v697
    %1495 = vmatmul.f32.gmra.mxu0 %v500
    %v1496 = vpop.f32.mrf.mxu0
    %v1497 = vadd.f32 %v1477, %v1496
    %1498 = vdwg.mxu0
    %1499 = vmatpush.msra.mxu0 %v1069
    %1500 = vmatpush.msra.mxu0 %v1057
    %1501 = vmatpush.msra.mxu0 %v1045
    %1502 = vmatpush.msra.mxu0 %v1033
    %1503 = vmatpush.msra.mxu0 %v1021
    %1504 = vmatpush.msra.mxu0 %v1009
    %1505 = vmatpush.msra.mxu0 %v997
    %1506 = vmatpush.msra.mxu0 %v985
    %1507 = vmatpush.msra.mxu0 %v973
    %1508 = vmatpush.msra.mxu0 %v961
    %1509 = vmatpush.msra.mxu0 %v949
    %1510 = vmatpush.msra.mxu0 %v937
    %1511 = vmatpush.msra.mxu0 %v925
    %1512 = vmatpush.msra.mxu0 %v913
    %1513 = vmatpush.msra.mxu0 %v901
    %1514 = vmatpush.msra.mxu0 %v889
    %1515 = vmatmul.f32.gmra.mxu0 %v501
    %v1516 = vpop.f32.mrf.mxu0
    %v1517 = vadd.f32 %v1497, %v1516
    %1518 = vdwg.mxu0
    %1519 = vmatpush.msra.mxu0 %v1261
    %1520 = vmatpush.msra.mxu0 %v1249
    %1521 = vmatpush.msra.mxu0 %v1237
    %1522 = vmatpush.msra.mxu0 %v1225
    %1523 = vmatpush.msra.mxu0 %v1213
    %1524 = vmatpush.msra.mxu0 %v1201
    %1525 = vmatpush.msra.mxu0 %v1189
    %1526 = vmatpush.msra.mxu0 %v1177
    %1527 = vmatpush.msra.mxu0 %v1165
    %1528 = vmatpush.msra.mxu0 %v1153
    %1529 = vmatpush.msra.mxu0 %v1141
    %1530 = vmatpush.msra.mxu0 %v1129
    %1531 = vmatpush.msra.mxu0 %v1117
    %1532 = vmatpush.msra.mxu0 %v1105
    %1533 = vmatpush.msra.mxu0 %v1093
    %1534 = vmatpush.msra.mxu0 %v1081
    %1535 = vmatmul.f32.gmra.mxu0 %v502
    %v1536 = vpop.f32.mrf.mxu0
    %v1537 = vadd.f32 %v1517, %v1536
    %1538 = vdwg.mxu0
    %1539 = vmatpush.msra.mxu0 %v686
    %1540 = vmatpush.msra.mxu0 %v674
    %1541 = vmatpush.msra.mxu0 %v662
    %1542 = vmatpush.msra.mxu0 %v650
    %1543 = vmatpush.msra.mxu0 %v638
    %1544 = vmatpush.msra.mxu0 %v626
    %1545 = vmatpush.msra.mxu0 %v614
    %1546 = vmatpush.msra.mxu0 %v602
    %1547 = vmatpush.msra.mxu0 %v590
    %1548 = vmatpush.msra.mxu0 %v578
    %1549 = vmatpush.msra.mxu0 %v566
    %1550 = vmatpush.msra.mxu0 %v554
    %1551 = vmatpush.msra.mxu0 %v542
    %1552 = vmatpush.msra.mxu0 %v530
    %1553 = vmatpush.msra.mxu0 %v518
    %1554 = vmatpush.msra.mxu0 %v506
    %1555 = vmatmul.f32.gmra.mxu0 %v499
    %v1556 = vpop.f32.mrf.mxu0
    %v1557 = vadd.f32 %v1278, %v1556
    %1558 = vdwg.mxu0
    %1559 = vmatpush.msra.mxu0 %v878
    %1560 = vmatpush.msra.mxu0 %v866
    %1561 = vmatpush.msra.mxu0 %v854
    %1562 = vmatpush.msra.mxu0 %v842
    %1563 = vmatpush.msra.mxu0 %v830
    %1564 = vmatpush.msra.mxu0 %v818
    %1565 = vmatpush.msra.mxu0 %v806
    %1566 = vmatpush.msra.mxu0 %v794
    %1567 = vmatpush.msra.mxu0 %v782
    %1568 = vmatpush.msra.mxu0 %v770
    %1569 = vmatpush.msra.mxu0 %v758
    %1570 = vmatpush.msra.mxu0 %v746
    %1571 = vmatpush.msra.mxu0 %v734
    %1572 = vmatpush.msra.mxu0 %v722
    %1573 = vmatpush.msra.mxu0 %v710
    %1574 = vmatpush.msra.mxu0 %v698
    %1575 = vmatmul.f32.gmra.mxu0 %v500
    %v1576 = vpop.f32.mrf.mxu0
    %v1577 = vadd.f32 %v1557, %v1576
    %1578 = vdwg.mxu0
    %1579 = vmatpush.msra.mxu0 %v1070
    %1580 = vmatpush.msra.mxu0 %v1058
    %1581 = vmatpush.msra.mxu0 %v1046
    %1582 = vmatpush.msra.mxu0 %v1034
    %1583 = vmatpush.msra.mxu0 %v1022
    %1584 = vmatpush.msra.mxu0 %v1010
    %1585 = vmatpush.msra.mxu0 %v998
    %1586 = vmatpush.msra.mxu0 %v986
    %1587 = vmatpush.msra.mxu0 %v974
    %1588 = vmatpush.msra.mxu0 %v962
    %1589 = vmatpush.msra.mxu0 %v950
    %1590 = vmatpush.msra.mxu0 %v938
    %1591 = vmatpush.msra.mxu0 %v926
    %1592 = vmatpush.msra.mxu0 %v914
    %1593 = vmatpush.msra.mxu0 %v902
    %1594 = vmatpush.msra.mxu0 %v890
    %1595 = vmatmul.f32.gmra.mxu0 %v501
    %v1596 = vpop.f32.mrf.mxu0
    %v1597 = vadd.f32 %v1577, %v1596
    %1598 = vdwg.mxu0
    %1599 = vmatpush.msra.mxu0 %v1262
    %1600 = vmatpush.msra.mxu0 %v1250
    %1601 = vmatpush.msra.mxu0 %v1238
    %1602 = vmatpush.msra.mxu0 %v1226
    %1603 = vmatpush.msra.mxu0 %v1214
    %1604 = vmatpush.msra.mxu0 %v1202
    %1605 = vmatpush.msra.mxu0 %v1190
    %1606 = vmatpush.msra.mxu0 %v1178
    %1607 = vmatpush.msra.mxu0 %v1166
    %1608 = vmatpush.msra.mxu0 %v1154
    %1609 = vmatpush.msra.mxu0 %v1142
    %1610 = vmatpush.msra.mxu0 %v1130
    %1611 = vmatpush.msra.mxu0 %v1118
    %1612 = vmatpush.msra.mxu0 %v1106
    %1613 = vmatpush.msra.mxu0 %v1094
    %1614 = vmatpush.msra.mxu0 %v1082
    %1615 = vmatmul.f32.gmra.mxu0 %v502
    %v1616 = vpop.f32.mrf.mxu0
    %v1617 = vadd.f32 %v1597, %v1616
    %1618 = vdwg.mxu0
    %1619 = vmatpush.msra.mxu0 %v687
    %1620 = vmatpush.msra.mxu0 %v675
    %1621 = vmatpush.msra.mxu0 %v663
    %1622 = vmatpush.msra.mxu0 %v651
    %1623 = vmatpush.msra.mxu0 %v639
    %1624 = vmatpush.msra.mxu0 %v627
    %1625 = vmatpush.msra.mxu0 %v615
    %1626 = vmatpush.msra.mxu0 %v603
    %1627 = vmatpush.msra.mxu0 %v591
    %1628 = vmatpush.msra.mxu0 %v579
    %1629 = vmatpush.msra.mxu0 %v567
    %1630 = vmatpush.msra.mxu0 %v555
    %1631 = vmatpush.msra.mxu0 %v543
    %1632 = vmatpush.msra.mxu0 %v531
    %1633 = vmatpush.msra.mxu0 %v519
    %1634 = vmatpush.msra.mxu0 %v507
    %1635 = vmatmul.f32.gmra.mxu0 %v499
    %v1636 = vpop.f32.mrf.mxu0
    %v1637 = vadd.f32 %v1279, %v1636
    %1638 = vdwg.mxu0
    %1639 = vmatpush.msra.mxu0 %v879
    %1640 = vmatpush.msra.mxu0 %v867
    %1641 = vmatpush.msra.mxu0 %v855
    %1642 = vmatpush.msra.mxu0 %v843
    %1643 = vmatpush.msra.mxu0 %v831
    %1644 = vmatpush.msra.mxu0 %v819
    %1645 = vmatpush.msra.mxu0 %v807
    %1646 = vmatpush.msra.mxu0 %v795
    %1647 = vmatpush.msra.mxu0 %v783
    %1648 = vmatpush.msra.mxu0 %v771
    %1649 = vmatpush.msra.mxu0 %v759
    %1650 = vmatpush.msra.mxu0 %v747
    %1651 = vmatpush.msra.mxu0 %v735
    %1652 = vmatpush.msra.mxu0 %v723
    %1653 = vmatpush.msra.mxu0 %v711
    %1654 = vmatpush.msra.mxu0 %v699
    %1655 = vmatmul.f32.gmra.mxu0 %v500
    %v1656 = vpop.f32.mrf.mxu0
    %v1657 = vadd.f32 %v1637, %v1656
    %1658 = vdwg.mxu0
    %1659 = vmatpush.msra.mxu0 %v1071
    %1660 = vmatpush.msra.mxu0 %v1059
    %1661 = vmatpush.msra.mxu0 %v1047
    %1662 = vmatpush.msra.mxu0 %v1035
    %1663 = vmatpush.msra.mxu0 %v1023
    %1664 = vmatpush.msra.mxu0 %v1011
    %1665 = vmatpush.msra.mxu0 %v999
    %1666 = vmatpush.msra.mxu0 %v987
    %1667 = vmatpush.msra.mxu0 %v975
    %1668 = vmatpush.msra.mxu0 %v963
    %1669 = vmatpush.msra.mxu0 %v951
    %1670 = vmatpush.msra.mxu0 %v939
    %1671 = vmatpush.msra.mxu0 %v927
    %1672 = vmatpush.msra.mxu0 %v915
    %1673 = vmatpush.msra.mxu0 %v903
    %1674 = vmatpush.msra.mxu0 %v891
    %1675 = vmatmul.f32.gmra.mxu0 %v501
    %v1676 = vpop.f32.mrf.mxu0
    %v1677 = vadd.f32 %v1657, %v1676
    %1678 = vdwg.mxu0
    %1679 = vmatpush.msra.mxu0 %v1263
    %1680 = vmatpush.msra.mxu0 %v1251
    %1681 = vmatpush.msra.mxu0 %v1239
    %1682 = vmatpush.msra.mxu0 %v1227
    %1683 = vmatpush.msra.mxu0 %v1215
    %1684 = vmatpush.msra.mxu0 %v1203
    %1685 = vmatpush.msra.mxu0 %v1191
    %1686 = vmatpush.msra.mxu0 %v1179
    %1687 = vmatpush.msra.mxu0 %v1167
    %1688 = vmatpush.msra.mxu0 %v1155
    %1689 = vmatpush.msra.mxu0 %v1143
    %1690 = vmatpush.msra.mxu0 %v1131
    %1691 = vmatpush.msra.mxu0 %v1119
    %1692 = vmatpush.msra.mxu0 %v1107
    %1693 = vmatpush.msra.mxu0 %v1095
    %1694 = vmatpush.msra.mxu0 %v1083
    %1695 = vmatmul.f32.gmra.mxu0 %v502
    %v1696 = vpop.f32.mrf.mxu0
    %v1697 = vadd.f32 %v1677, %v1696
    %1698 = vdwg.mxu0
    %1699 = vmatpush.msra.mxu0 %v688
    %1700 = vmatpush.msra.mxu0 %v676
    %1701 = vmatpush.msra.mxu0 %v664
    %1702 = vmatpush.msra.mxu0 %v652
    %1703 = vmatpush.msra.mxu0 %v640
    %1704 = vmatpush.msra.mxu0 %v628
    %1705 = vmatpush.msra.mxu0 %v616
    %1706 = vmatpush.msra.mxu0 %v604
    %1707 = vmatpush.msra.mxu0 %v592
    %1708 = vmatpush.msra.mxu0 %v580
    %1709 = vmatpush.msra.mxu0 %v568
    %1710 = vmatpush.msra.mxu0 %v556
    %1711 = vmatpush.msra.mxu0 %v544
    %1712 = vmatpush.msra.mxu0 %v532
    %1713 = vmatpush.msra.mxu0 %v520
    %1714 = vmatpush.msra.mxu0 %v508
    %1715 = vmatmul.f32.gmra.mxu0 %v499
    %v1716 = vpop.f32.mrf.mxu0
    %v1717 = vadd.f32 %v1280, %v1716
    %1718 = vdwg.mxu0
    %1719 = vmatpush.msra.mxu0 %v880
    %1720 = vmatpush.msra.mxu0 %v868
    %1721 = vmatpush.msra.mxu0 %v856
    %1722 = vmatpush.msra.mxu0 %v844
    %1723 = vmatpush.msra.mxu0 %v832
    %1724 = vmatpush.msra.mxu0 %v820
    %1725 = vmatpush.msra.mxu0 %v808
    %1726 = vmatpush.msra.mxu0 %v796
    %1727 = vmatpush.msra.mxu0 %v784
    %1728 = vmatpush.msra.mxu0 %v772
    %1729 = vmatpush.msra.mxu0 %v760
    %1730 = vmatpush.msra.mxu0 %v748
    %1731 = vmatpush.msra.mxu0 %v736
    %1732 = vmatpush.msra.mxu0 %v724
    %1733 = vmatpush.msra.mxu0 %v712
    %1734 = vmatpush.msra.mxu0 %v700
    %1735 = vmatmul.f32.gmra.mxu0 %v500
    %v1736 = vpop.f32.mrf.mxu0
    %v1737 = vadd.f32 %v1717, %v1736
    %1738 = vdwg.mxu0
    %1739 = vmatpush.msra.mxu0 %v1072
    %1740 = vmatpush.msra.mxu0 %v1060
    %1741 = vmatpush.msra.mxu0 %v1048
    %1742 = vmatpush.msra.mxu0 %v1036
    %1743 = vmatpush.msra.mxu0 %v1024
    %1744 = vmatpush.msra.mxu0 %v1012
    %1745 = vmatpush.msra.mxu0 %v1000
    %1746 = vmatpush.msra.mxu0 %v988
    %1747 = vmatpush.msra.mxu0 %v976
    %1748 = vmatpush.msra.mxu0 %v964
    %1749 = vmatpush.msra.mxu0 %v952
    %1750 = vmatpush.msra.mxu0 %v940
    %1751 = vmatpush.msra.mxu0 %v928
    %1752 = vmatpush.msra.mxu0 %v916
    %1753 = vmatpush.msra.mxu0 %v904
    %1754 = vmatpush.msra.mxu0 %v892
    %1755 = vmatmul.f32.gmra.mxu0 %v501
    %v1756 = vpop.f32.mrf.mxu0
    %v1757 = vadd.f32 %v1737, %v1756
    %1758 = vdwg.mxu0
    %1759 = vmatpush.msra.mxu0 %v1264
    %1760 = vmatpush.msra.mxu0 %v1252
    %1761 = vmatpush.msra.mxu0 %v1240
    %1762 = vmatpush.msra.mxu0 %v1228
    %1763 = vmatpush.msra.mxu0 %v1216
    %1764 = vmatpush.msra.mxu0 %v1204
    %1765 = vmatpush.msra.mxu0 %v1192
    %1766 = vmatpush.msra.mxu0 %v1180
    %1767 = vmatpush.msra.mxu0 %v1168
    %1768 = vmatpush.msra.mxu0 %v1156
    %1769 = vmatpush.msra.mxu0 %v1144
    %1770 = vmatpush.msra.mxu0 %v1132
    %1771 = vmatpush.msra.mxu0 %v1120
    %1772 = vmatpush.msra.mxu0 %v1108
    %1773 = vmatpush.msra.mxu0 %v1096
    %1774 = vmatpush.msra.mxu0 %v1084
    %1775 = vmatmul.f32.gmra.mxu0 %v502
    %v1776 = vpop.f32.mrf.mxu0
    %v1777 = vadd.f32 %v1757, %v1776
    %1778 = vdwg.mxu0
    %1779 = vmatpush.msra.mxu0 %v689
    %1780 = vmatpush.msra.mxu0 %v677
    %1781 = vmatpush.msra.mxu0 %v665
    %1782 = vmatpush.msra.mxu0 %v653
    %1783 = vmatpush.msra.mxu0 %v641
    %1784 = vmatpush.msra.mxu0 %v629
    %1785 = vmatpush.msra.mxu0 %v617
    %1786 = vmatpush.msra.mxu0 %v605
    %1787 = vmatpush.msra.mxu0 %v593
    %1788 = vmatpush.msra.mxu0 %v581
    %1789 = vmatpush.msra.mxu0 %v569
    %1790 = vmatpush.msra.mxu0 %v557
    %1791 = vmatpush.msra.mxu0 %v545
    %1792 = vmatpush.msra.mxu0 %v533
    %1793 = vmatpush.msra.mxu0 %v521
    %1794 = vmatpush.msra.mxu0 %v509
    %1795 = vmatmul.f32.gmra.mxu0 %v499
    %v1796 = vpop.f32.mrf.mxu0
    %v1797 = vadd.f32 %v1281, %v1796
    %1798 = vdwg.mxu0
    %1799 = vmatpush.msra.mxu0 %v881
    %1800 = vmatpush.msra.mxu0 %v869
    %1801 = vmatpush.msra.mxu0 %v857
    %1802 = vmatpush.msra.mxu0 %v845
    %1803 = vmatpush.msra.mxu0 %v833
    %1804 = vmatpush.msra.mxu0 %v821
    %1805 = vmatpush.msra.mxu0 %v809
    %1806 = vmatpush.msra.mxu0 %v797
    %1807 = vmatpush.msra.mxu0 %v785
    %1808 = vmatpush.msra.mxu0 %v773
    %1809 = vmatpush.msra.mxu0 %v761
    %1810 = vmatpush.msra.mxu0 %v749
    %1811 = vmatpush.msra.mxu0 %v737
    %1812 = vmatpush.msra.mxu0 %v725
    %1813 = vmatpush.msra.mxu0 %v713
    %1814 = vmatpush.msra.mxu0 %v701
    %1815 = vmatmul.f32.gmra.mxu0 %v500
    %v1816 = vpop.f32.mrf.mxu0
    %v1817 = vadd.f32 %v1797, %v1816
    %1818 = vdwg.mxu0
    %1819 = vmatpush.msra.mxu0 %v1073
    %1820 = vmatpush.msra.mxu0 %v1061
    %1821 = vmatpush.msra.mxu0 %v1049
    %1822 = vmatpush.msra.mxu0 %v1037
    %1823 = vmatpush.msra.mxu0 %v1025
    %1824 = vmatpush.msra.mxu0 %v1013
    %1825 = vmatpush.msra.mxu0 %v1001
    %1826 = vmatpush.msra.mxu0 %v989
    %1827 = vmatpush.msra.mxu0 %v977
    %1828 = vmatpush.msra.mxu0 %v965
    %1829 = vmatpush.msra.mxu0 %v953
    %1830 = vmatpush.msra.mxu0 %v941
    %1831 = vmatpush.msra.mxu0 %v929
    %1832 = vmatpush.msra.mxu0 %v917
    %1833 = vmatpush.msra.mxu0 %v905
    %1834 = vmatpush.msra.mxu0 %v893
    %1835 = vmatmul.f32.gmra.mxu0 %v501
    %v1836 = vpop.f32.mrf.mxu0
    %v1837 = vadd.f32 %v1817, %v1836
    %1838 = vdwg.mxu0
    %1839 = vmatpush.msra.mxu0 %v1265
    %1840 = vmatpush.msra.mxu0 %v1253
    %1841 = vmatpush.msra.mxu0 %v1241
    %1842 = vmatpush.msra.mxu0 %v1229
    %1843 = vmatpush.msra.mxu0 %v1217
    %1844 = vmatpush.msra.mxu0 %v1205
    %1845 = vmatpush.msra.mxu0 %v1193
    %1846 = vmatpush.msra.mxu0 %v1181
    %1847 = vmatpush.msra.mxu0 %v1169
    %1848 = vmatpush.msra.mxu0 %v1157
    %1849 = vmatpush.msra.mxu0 %v1145
    %1850 = vmatpush.msra.mxu0 %v1133
    %1851 = vmatpush.msra.mxu0 %v1121
    %1852 = vmatpush.msra.mxu0 %v1109
    %1853 = vmatpush.msra.mxu0 %v1097
    %1854 = vmatpush.msra.mxu0 %v1085
    %1855 = vmatmul.f32.gmra.mxu0 %v502
    %v1856 = vpop.f32.mrf.mxu0
    %v1857 = vadd.f32 %v1837, %v1856
    %1858 = vdwg.mxu0
    %1859 = vmatpush.msra.mxu0 %v690
    %1860 = vmatpush.msra.mxu0 %v678
    %1861 = vmatpush.msra.mxu0 %v666
    %1862 = vmatpush.msra.mxu0 %v654
    %1863 = vmatpush.msra.mxu0 %v642
    %1864 = vmatpush.msra.mxu0 %v630
    %1865 = vmatpush.msra.mxu0 %v618
    %1866 = vmatpush.msra.mxu0 %v606
    %1867 = vmatpush.msra.mxu0 %v594
    %1868 = vmatpush.msra.mxu0 %v582
    %1869 = vmatpush.msra.mxu0 %v570
    %1870 = vmatpush.msra.mxu0 %v558
    %1871 = vmatpush.msra.mxu0 %v546
    %1872 = vmatpush.msra.mxu0 %v534
    %1873 = vmatpush.msra.mxu0 %v522
    %1874 = vmatpush.msra.mxu0 %v510
    %1875 = vmatmul.f32.gmra.mxu0 %v499
    %v1876 = vpop.f32.mrf.mxu0
    %v1877 = vadd.f32 %v1282, %v1876
    %1878 = vdwg.mxu0
    %1879 = vmatpush.msra.mxu0 %v882
    %1880 = vmatpush.msra.mxu0 %v870
    %1881 = vmatpush.msra.mxu0 %v858
    %1882 = vmatpush.msra.mxu0 %v846
    %1883 = vmatpush.msra.mxu0 %v834
    %1884 = vmatpush.msra.mxu0 %v822
    %1885 = vmatpush.msra.mxu0 %v810
    %1886 = vmatpush.msra.mxu0 %v798
    %1887 = vmatpush.msra.mxu0 %v786
    %1888 = vmatpush.msra.mxu0 %v774
    %1889 = vmatpush.msra.mxu0 %v762
    %1890 = vmatpush.msra.mxu0 %v750
    %1891 = vmatpush.msra.mxu0 %v738
    %1892 = vmatpush.msra.mxu0 %v726
    %1893 = vmatpush.msra.mxu0 %v714
    %1894 = vmatpush.msra.mxu0 %v702
    %1895 = vmatmul.f32.gmra.mxu0 %v500
    %v1896 = vpop.f32.mrf.mxu0
    %v1897 = vadd.f32 %v1877, %v1896
    %1898 = vdwg.mxu0
    %1899 = vmatpush.msra.mxu0 %v1074
    %1900 = vmatpush.msra.mxu0 %v1062
    %1901 = vmatpush.msra.mxu0 %v1050
    %1902 = vmatpush.msra.mxu0 %v1038
    %1903 = vmatpush.msra.mxu0 %v1026
    %1904 = vmatpush.msra.mxu0 %v1014
    %1905 = vmatpush.msra.mxu0 %v1002
    %1906 = vmatpush.msra.mxu0 %v990
    %1907 = vmatpush.msra.mxu0 %v978
    %1908 = vmatpush.msra.mxu0 %v966
    %1909 = vmatpush.msra.mxu0 %v954
    %1910 = vmatpush.msra.mxu0 %v942
    %1911 = vmatpush.msra.mxu0 %v930
    %1912 = vmatpush.msra.mxu0 %v918
    %1913 = vmatpush.msra.mxu0 %v906
    %1914 = vmatpush.msra.mxu0 %v894
    %1915 = vmatmul.f32.gmra.mxu0 %v501
    %v1916 = vpop.f32.mrf.mxu0
    %v1917 = vadd.f32 %v1897, %v1916
    %1918 = vdwg.mxu0
    %1919 = vmatpush.msra.mxu0 %v1266
    %1920 = vmatpush.msra.mxu0 %v1254
    %1921 = vmatpush.msra.mxu0 %v1242
    %1922 = vmatpush.msra.mxu0 %v1230
    %1923 = vmatpush.msra.mxu0 %v1218
    %1924 = vmatpush.msra.mxu0 %v1206
    %1925 = vmatpush.msra.mxu0 %v1194
    %1926 = vmatpush.msra.mxu0 %v1182
    %1927 = vmatpush.msra.mxu0 %v1170
    %1928 = vmatpush.msra.mxu0 %v1158
    %1929 = vmatpush.msra.mxu0 %v1146
    %1930 = vmatpush.msra.mxu0 %v1134
    %1931 = vmatpush.msra.mxu0 %v1122
    %1932 = vmatpush.msra.mxu0 %v1110
    %1933 = vmatpush.msra.mxu0 %v1098
    %1934 = vmatpush.msra.mxu0 %v1086
    %1935 = vmatmul.f32.gmra.mxu0 %v502
    %v1936 = vpop.f32.mrf.mxu0
    %v1937 = vadd.f32 %v1917, %v1936
    %1938 = vdwg.mxu0
    %1939 = vmatpush.msra.mxu0 %v691
    %1940 = vmatpush.msra.mxu0 %v679
    %1941 = vmatpush.msra.mxu0 %v667
    %1942 = vmatpush.msra.mxu0 %v655
    %1943 = vmatpush.msra.mxu0 %v643
    %1944 = vmatpush.msra.mxu0 %v631
    %1945 = vmatpush.msra.mxu0 %v619
    %1946 = vmatpush.msra.mxu0 %v607
    %1947 = vmatpush.msra.mxu0 %v595
    %1948 = vmatpush.msra.mxu0 %v583
    %1949 = vmatpush.msra.mxu0 %v571
    %1950 = vmatpush.msra.mxu0 %v559
    %1951 = vmatpush.msra.mxu0 %v547
    %1952 = vmatpush.msra.mxu0 %v535
    %1953 = vmatpush.msra.mxu0 %v523
    %1954 = vmatpush.msra.mxu0 %v511
    %1955 = vmatmul.f32.gmra.mxu0 %v499
    %v1956 = vpop.f32.mrf.mxu0
    %v1957 = vadd.f32 %v1283, %v1956
    %1958 = vdwg.mxu0
    %1959 = vmatpush.msra.mxu0 %v883
    %1960 = vmatpush.msra.mxu0 %v871
    %1961 = vmatpush.msra.mxu0 %v859
    %1962 = vmatpush.msra.mxu0 %v847
    %1963 = vmatpush.msra.mxu0 %v835
    %1964 = vmatpush.msra.mxu0 %v823
    %1965 = vmatpush.msra.mxu0 %v811
    %1966 = vmatpush.msra.mxu0 %v799
    %1967 = vmatpush.msra.mxu0 %v787
    %1968 = vmatpush.msra.mxu0 %v775
    %1969 = vmatpush.msra.mxu0 %v763
    %1970 = vmatpush.msra.mxu0 %v751
    %1971 = vmatpush.msra.mxu0 %v739
    %1972 = vmatpush.msra.mxu0 %v727
    %1973 = vmatpush.msra.mxu0 %v715
    %1974 = vmatpush.msra.mxu0 %v703
    %1975 = vmatmul.f32.gmra.mxu0 %v500
    %v1976 = vpop.f32.mrf.mxu0
    %v1977 = vadd.f32 %v1957, %v1976
    %1978 = vdwg.mxu0
    %1979 = vmatpush.msra.mxu0 %v1075
    %1980 = vmatpush.msra.mxu0 %v1063
    %1981 = vmatpush.msra.mxu0 %v1051
    %1982 = vmatpush.msra.mxu0 %v1039
    %1983 = vmatpush.msra.mxu0 %v1027
    %1984 = vmatpush.msra.mxu0 %v1015
    %1985 = vmatpush.msra.mxu0 %v1003
    %1986 = vmatpush.msra.mxu0 %v991
    %1987 = vmatpush.msra.mxu0 %v979
    %1988 = vmatpush.msra.mxu0 %v967
    %1989 = vmatpush.msra.mxu0 %v955
    %1990 = vmatpush.msra.mxu0 %v943
    %1991 = vmatpush.msra.mxu0 %v931
    %1992 = vmatpush.msra.mxu0 %v919
    %1993 = vmatpush.msra.mxu0 %v907
    %1994 = vmatpush.msra.mxu0 %v895
    %1995 = vmatmul.f32.gmra.mxu0 %v501
    %v1996 = vpop.f32.mrf.mxu0
    %v1997 = vadd.f32 %v1977, %v1996
    %1998 = vdwg.mxu0
    %1999 = vmatpush.msra.mxu0 %v1267
    %2000 = vmatpush.msra.mxu0 %v1255
    %2001 = vmatpush.msra.mxu0 %v1243
    %2002 = vmatpush.msra.mxu0 %v1231
    %2003 = vmatpush.msra.mxu0 %v1219
    %2004 = vmatpush.msra.mxu0 %v1207
    %2005 = vmatpush.msra.mxu0 %v1195
    %2006 = vmatpush.msra.mxu0 %v1183
    %2007 = vmatpush.msra.mxu0 %v1171
    %2008 = vmatpush.msra.mxu0 %v1159
    %2009 = vmatpush.msra.mxu0 %v1147
    %2010 = vmatpush.msra.mxu0 %v1135
    %2011 = vmatpush.msra.mxu0 %v1123
    %2012 = vmatpush.msra.mxu0 %v1111
    %2013 = vmatpush.msra.mxu0 %v1099
    %2014 = vmatpush.msra.mxu0 %v1087
    %2015 = vmatmul.f32.gmra.mxu0 %v502
    %v2016 = vpop.f32.mrf.mxu0
    %v2017 = vadd.f32 %v1997, %v2016
    %2018 = vdwg.mxu0
    %2019 = vmatpush.msra.mxu0 %v692
    %2020 = vmatpush.msra.mxu0 %v680
    %2021 = vmatpush.msra.mxu0 %v668
    %2022 = vmatpush.msra.mxu0 %v656
    %2023 = vmatpush.msra.mxu0 %v644
    %2024 = vmatpush.msra.mxu0 %v632
    %2025 = vmatpush.msra.mxu0 %v620
    %2026 = vmatpush.msra.mxu0 %v608
    %2027 = vmatpush.msra.mxu0 %v596
    %2028 = vmatpush.msra.mxu0 %v584
    %2029 = vmatpush.msra.mxu0 %v572
    %2030 = vmatpush.msra.mxu0 %v560
    %2031 = vmatpush.msra.mxu0 %v548
    %2032 = vmatpush.msra.mxu0 %v536
    %2033 = vmatpush.msra.mxu0 %v524
    %2034 = vmatpush.msra.mxu0 %v512
    %2035 = vmatmul.f32.gmra.mxu0 %v499
    %v2036 = vpop.f32.mrf.mxu0
    %v2037 = vadd.f32 %v1284, %v2036
    %2038 = vdwg.mxu0
    %2039 = vmatpush.msra.mxu0 %v884
    %2040 = vmatpush.msra.mxu0 %v872
    %2041 = vmatpush.msra.mxu0 %v860
    %2042 = vmatpush.msra.mxu0 %v848
    %2043 = vmatpush.msra.mxu0 %v836
    %2044 = vmatpush.msra.mxu0 %v824
    %2045 = vmatpush.msra.mxu0 %v812
    %2046 = vmatpush.msra.mxu0 %v800
    %2047 = vmatpush.msra.mxu0 %v788
    %2048 = vmatpush.msra.mxu0 %v776
    %2049 = vmatpush.msra.mxu0 %v764
    %2050 = vmatpush.msra.mxu0 %v752
    %2051 = vmatpush.msra.mxu0 %v740
    %2052 = vmatpush.msra.mxu0 %v728
    %2053 = vmatpush.msra.mxu0 %v716
    %2054 = vmatpush.msra.mxu0 %v704
    %2055 = vmatmul.f32.gmra.mxu0 %v500
    %v2056 = vpop.f32.mrf.mxu0
    %v2057 = vadd.f32 %v2037, %v2056
    %2058 = vdwg.mxu0
    %2059 = vmatpush.msra.mxu0 %v1076
    %2060 = vmatpush.msra.mxu0 %v1064
    %2061 = vmatpush.msra.mxu0 %v1052
    %2062 = vmatpush.msra.mxu0 %v1040
    %2063 = vmatpush.msra.mxu0 %v1028
    %2064 = vmatpush.msra.mxu0 %v1016
    %2065 = vmatpush.msra.mxu0 %v1004
    %2066 = vmatpush.msra.mxu0 %v992
    %2067 = vmatpush.msra.mxu0 %v980
    %2068 = vmatpush.msra.mxu0 %v968
    %2069 = vmatpush.msra.mxu0 %v956
    %2070 = vmatpush.msra.mxu0 %v944
    %2071 = vmatpush.msra.mxu0 %v932
    %2072 = vmatpush.msra.mxu0 %v920
    %2073 = vmatpush.msra.mxu0 %v908
    %2074 = vmatpush.msra.mxu0 %v896
    %2075 = vmatmul.f32.gmra.mxu0 %v501
    %v2076 = vpop.f32.mrf.mxu0
    %v2077 = vadd.f32 %v2057, %v2076
    %2078 = vdwg.mxu0
    %2079 = vmatpush.msra.mxu0 %v1268
    %2080 = vmatpush.msra.mxu0 %v1256
    %2081 = vmatpush.msra.mxu0 %v1244
    %2082 = vmatpush.msra.mxu0 %v1232
    %2083 = vmatpush.msra.mxu0 %v1220
    %2084 = vmatpush.msra.mxu0 %v1208
    %2085 = vmatpush.msra.mxu0 %v1196
    %2086 = vmatpush.msra.mxu0 %v1184
    %2087 = vmatpush.msra.mxu0 %v1172
    %2088 = vmatpush.msra.mxu0 %v1160
    %2089 = vmatpush.msra.mxu0 %v1148
    %2090 = vmatpush.msra.mxu0 %v1136
    %2091 = vmatpush.msra.mxu0 %v1124
    %2092 = vmatpush.msra.mxu0 %v1112
    %2093 = vmatpush.msra.mxu0 %v1100
    %2094 = vmatpush.msra.mxu0 %v1088
    %2095 = vmatmul.f32.gmra.mxu0 %v502
    %v2096 = vpop.f32.mrf.mxu0
    %v2097 = vadd.f32 %v2077, %v2096
    %2098 = vdwg.mxu0
    %2099 = vmatpush.msra.mxu0 %v693
    %2100 = vmatpush.msra.mxu0 %v681
    %2101 = vmatpush.msra.mxu0 %v669
    %2102 = vmatpush.msra.mxu0 %v657
    %2103 = vmatpush.msra.mxu0 %v645
    %2104 = vmatpush.msra.mxu0 %v633
    %2105 = vmatpush.msra.mxu0 %v621
    %2106 = vmatpush.msra.mxu0 %v609
    %2107 = vmatpush.msra.mxu0 %v597
    %2108 = vmatpush.msra.mxu0 %v585
    %2109 = vmatpush.msra.mxu0 %v573
    %2110 = vmatpush.msra.mxu0 %v561
    %2111 = vmatpush.msra.mxu0 %v549
    %2112 = vmatpush.msra.mxu0 %v537
    %2113 = vmatpush.msra.mxu0 %v525
    %2114 = vmatpush.msra.mxu0 %v513
    %2115 = vmatmul.f32.gmra.mxu0 %v499
    %v2116 = vpop.f32.mrf.mxu0
    %v2117 = vadd.f32 %v1285, %v2116
    %2118 = vdwg.mxu0
    %2119 = vmatpush.msra.mxu0 %v885
    %2120 = vmatpush.msra.mxu0 %v873
    %2121 = vmatpush.msra.mxu0 %v861
    %2122 = vmatpush.msra.mxu0 %v849
    %2123 = vmatpush.msra.mxu0 %v837
    %2124 = vmatpush.msra.mxu0 %v825
    %2125 = vmatpush.msra.mxu0 %v813
    %2126 = vmatpush.msra.mxu0 %v801
    %2127 = vmatpush.msra.mxu0 %v789
    %2128 = vmatpush.msra.mxu0 %v777
    %2129 = vmatpush.msra.mxu0 %v765
    %2130 = vmatpush.msra.mxu0 %v753
    %2131 = vmatpush.msra.mxu0 %v741
    %2132 = vmatpush.msra.mxu0 %v729
    %2133 = vmatpush.msra.mxu0 %v717
    %2134 = vmatpush.msra.mxu0 %v705
    %2135 = vmatmul.f32.gmra.mxu0 %v500
    %v2136 = vpop.f32.mrf.mxu0
    %v2137 = vadd.f32 %v2117, %v2136
    %2138 = vdwg.mxu0
    %2139 = vmatpush.msra.mxu0 %v1077
    %2140 = vmatpush.msra.mxu0 %v1065
    %2141 = vmatpush.msra.mxu0 %v1053
    %2142 = vmatpush.msra.mxu0 %v1041
    %2143 = vmatpush.msra.mxu0 %v1029
    %2144 = vmatpush.msra.mxu0 %v1017
    %2145 = vmatpush.msra.mxu0 %v1005
    %2146 = vmatpush.msra.mxu0 %v993
    %2147 = vmatpush.msra.mxu0 %v981
    %2148 = vmatpush.msra.mxu0 %v969
    %2149 = vmatpush.msra.mxu0 %v957
    %2150 = vmatpush.msra.mxu0 %v945
    %2151 = vmatpush.msra.mxu0 %v933
    %2152 = vmatpush.msra.mxu0 %v921
    %2153 = vmatpush.msra.mxu0 %v909
    %2154 = vmatpush.msra.mxu0 %v897
    %2155 = vmatmul.f32.gmra.mxu0 %v501
    %v2156 = vpop.f32.mrf.mxu0
    %v2157 = vadd.f32 %v2137, %v2156
    %2158 = vdwg.mxu0
    %2159 = vmatpush.msra.mxu0 %v1269
    %2160 = vmatpush.msra.mxu0 %v1257
    %2161 = vmatpush.msra.mxu0 %v1245
    %2162 = vmatpush.msra.mxu0 %v1233
    %2163 = vmatpush.msra.mxu0 %v1221
    %2164 = vmatpush.msra.mxu0 %v1209
    %2165 = vmatpush.msra.mxu0 %v1197
    %2166 = vmatpush.msra.mxu0 %v1185
    %2167 = vmatpush.msra.mxu0 %v1173
    %2168 = vmatpush.msra.mxu0 %v1161
    %2169 = vmatpush.msra.mxu0 %v1149
    %2170 = vmatpush.msra.mxu0 %v1137
    %2171 = vmatpush.msra.mxu0 %v1125
    %2172 = vmatpush.msra.mxu0 %v1113
    %2173 = vmatpush.msra.mxu0 %v1101
    %2174 = vmatpush.msra.mxu0 %v1089
    %2175 = vmatmul.f32.gmra.mxu0 %v502
    %v2176 = vpop.f32.mrf.mxu0
    %v2177 = vadd.f32 %v2157, %v2176
    %2178 = vdwg.mxu0
    %2179 = vmatpush.msra.mxu0 %v694
    %2180 = vmatpush.msra.mxu0 %v682
    %2181 = vmatpush.msra.mxu0 %v670
    %2182 = vmatpush.msra.mxu0 %v658
    %2183 = vmatpush.msra.mxu0 %v646
    %2184 = vmatpush.msra.mxu0 %v634
    %2185 = vmatpush.msra.mxu0 %v622
    %2186 = vmatpush.msra.mxu0 %v610
    %2187 = vmatpush.msra.mxu0 %v598
    %2188 = vmatpush.msra.mxu0 %v586
    %2189 = vmatpush.msra.mxu0 %v574
    %2190 = vmatpush.msra.mxu0 %v562
    %2191 = vmatpush.msra.mxu0 %v550
    %2192 = vmatpush.msra.mxu0 %v538
    %2193 = vmatpush.msra.mxu0 %v526
    %2194 = vmatpush.msra.mxu0 %v514
    %2195 = vmatmul.f32.gmra.mxu0 %v499
    %v2196 = vpop.f32.mrf.mxu0
    %v2197 = vadd.f32 %v1286, %v2196
    %2198 = vdwg.mxu0
    %2199 = vmatpush.msra.mxu0 %v886
    %2200 = vmatpush.msra.mxu0 %v874
    %2201 = vmatpush.msra.mxu0 %v862
    %2202 = vmatpush.msra.mxu0 %v850
    %2203 = vmatpush.msra.mxu0 %v838
    %2204 = vmatpush.msra.mxu0 %v826
    %2205 = vmatpush.msra.mxu0 %v814
    %2206 = vmatpush.msra.mxu0 %v802
    %2207 = vmatpush.msra.mxu0 %v790
    %2208 = vmatpush.msra.mxu0 %v778
    %2209 = vmatpush.msra.mxu0 %v766
    %2210 = vmatpush.msra.mxu0 %v754
    %2211 = vmatpush.msra.mxu0 %v742
    %2212 = vmatpush.msra.mxu0 %v730
    %2213 = vmatpush.msra.mxu0 %v718
    %2214 = vmatpush.msra.mxu0 %v706
    %2215 = vmatmul.f32.gmra.mxu0 %v500
    %v2216 = vpop.f32.mrf.mxu0
    %v2217 = vadd.f32 %v2197, %v2216
    %2218 = vdwg.mxu0
    %2219 = vmatpush.msra.mxu0 %v1078
    %2220 = vmatpush.msra.mxu0 %v1066
    %2221 = vmatpush.msra.mxu0 %v1054
    %2222 = vmatpush.msra.mxu0 %v1042
    %2223 = vmatpush.msra.mxu0 %v1030
    %2224 = vmatpush.msra.mxu0 %v1018
    %2225 = vmatpush.msra.mxu0 %v1006
    %2226 = vmatpush.msra.mxu0 %v994
    %2227 = vmatpush.msra.mxu0 %v982
    %2228 = vmatpush.msra.mxu0 %v970
    %2229 = vmatpush.msra.mxu0 %v958
    %2230 = vmatpush.msra.mxu0 %v946
    %2231 = vmatpush.msra.mxu0 %v934
    %2232 = vmatpush.msra.mxu0 %v922
    %2233 = vmatpush.msra.mxu0 %v910
    %2234 = vmatpush.msra.mxu0 %v898
    %2235 = vmatmul.f32.gmra.mxu0 %v501
    %v2236 = vpop.f32.mrf.mxu0
    %v2237 = vadd.f32 %v2217, %v2236
    %2238 = vdwg.mxu0
    %2239 = vmatpush.msra.mxu0 %v1270
    %2240 = vmatpush.msra.mxu0 %v1258
    %2241 = vmatpush.msra.mxu0 %v1246
    %2242 = vmatpush.msra.mxu0 %v1234
    %2243 = vmatpush.msra.mxu0 %v1222
    %2244 = vmatpush.msra.mxu0 %v1210
    %2245 = vmatpush.msra.mxu0 %v1198
    %2246 = vmatpush.msra.mxu0 %v1186
    %2247 = vmatpush.msra.mxu0 %v1174
    %2248 = vmatpush.msra.mxu0 %v1162
    %2249 = vmatpush.msra.mxu0 %v1150
    %2250 = vmatpush.msra.mxu0 %v1138
    %2251 = vmatpush.msra.mxu0 %v1126
    %2252 = vmatpush.msra.mxu0 %v1114
    %2253 = vmatpush.msra.mxu0 %v1102
    %2254 = vmatpush.msra.mxu0 %v1090
    %2255 = vmatmul.f32.gmra.mxu0 %v502
    %v2256 = vpop.f32.mrf.mxu0
    %v2257 = vadd.f32 %v2237, %v2256
    %2258 = vdwg.mxu0
    %v2259 = vmax.f32 %v1377, %v1697
    %v2260 = vmax.f32 %v1457, %v1777
    %v2261 = vmax.f32 %v1537, %v1857
    %v2262 = vmax.f32 %v1617, %v1937
    %v2263 = vmax.f32 %v2259, %v2017
    %v2264 = vmax.f32 %v2260, %v2097
    %v2265 = vmax.f32 %v2261, %v2177
    %v2266 = vmax.f32 %v2262, %v2257
    %v2267 = vtanh.pop %v2263
    %v2268 = vtanh.pop %v2264
    %v2269 = vtanh.pop %v2265
    %v2270 = vtanh.pop %v2266
    %v2271 = vld [vmem:[#allocation15] sm:$0xff]
    %v2272 = vld [vmem:[#allocation15 + $0x8] sm:$0xff]
    %v2273 = vld [vmem:[#allocation15 + $0x10] sm:$0xff]
    %v2274 = vld [vmem:[#allocation15 + $0x18] sm:$0xff]
    %v2275 = vld [vmem:[#allocation15 + $0x20] sm:$0xff]
    %v2276 = vld [vmem:[#allocation15 + $0x28] sm:$0xff]
    %v2277 = vld [vmem:[#allocation15 + $0x30] sm:$0xff]
    %v2278 = vld [vmem:[#allocation15 + $0x38] sm:$0xff]
    %v2279 = vld [vmem:[#allocation15 + $0x40] sm:$0xff]
    %v2280 = vld [vmem:[#allocation15 + $0x48] sm:$0xff]
    %v2281 = vld [vmem:[#allocation15 + $0x50] sm:$0xff]
    %v2282 = vld [vmem:[#allocation15 + $0x58] sm:$0xff]
    %v2283 = vld [vmem:[#allocation15 + $0x60] sm:$0xff]
    %v2284 = vld [vmem:[#allocation15 + $0x68] sm:$0xff]
    %v2285 = vld [vmem:[#allocation15 + $0x70] sm:$0xff]
    %v2286 = vld [vmem:[#allocation15 + $0x78] sm:$0xff]
    %v2287 = vld [vmem:[#allocation15 + $0x80] sm:$0xff]
    %v2288 = vld [vmem:[#allocation15 + $0x88] sm:$0xff]
    %v2289 = vld [vmem:[#allocation15 + $0x90] sm:$0xff]
    %v2290 = vld [vmem:[#allocation15 + $0x98] sm:$0xff]
    %v2291 = vld [vmem:[#allocation15 + $0xa0] sm:$0xff]
    %v2292 = vld [vmem:[#allocation15 + $0xa8] sm:$0xff]
    %v2293 = vld [vmem:[#allocation15 + $0xb0] sm:$0xff]
    %v2294 = vld [vmem:[#allocation15 + $0xb8] sm:$0xff]
    %v2295 = vld [vmem:[#allocation15 + $0xc0] sm:$0xff]
    %v2296 = vld [vmem:[#allocation15 + $0xc8] sm:$0xff]
    %v2297 = vld [vmem:[#allocation15 + $0xd0] sm:$0xff]
    %v2298 = vld [vmem:[#allocation15 + $0xd8] sm:$0xff]
    %v2299 = vld [vmem:[#allocation15 + $0xe0] sm:$0xff]
    %v2300 = vld [vmem:[#allocation15 + $0xe8] sm:$0xff]
    %v2301 = vld [vmem:[#allocation15 + $0xf0] sm:$0xff]
    %v2302 = vld [vmem:[#allocation15 + $0xf8] sm:$0xff]
    %v2303 = vld [vmem:[#allocation15 + $0x100] sm:$0xff]
    %v2304 = vld [vmem:[#allocation15 + $0x108] sm:$0xff]
    %v2305 = vld [vmem:[#allocation15 + $0x110] sm:$0xff]
    %v2306 = vld [vmem:[#allocation15 + $0x118] sm:$0xff]
    %v2307 = vld [vmem:[#allocation15 + $0x120] sm:$0xff]
    %v2308 = vld [vmem:[#allocation15 + $0x128] sm:$0xff]
    %v2309 = vld [vmem:[#allocation15 + $0x130] sm:$0xff]
    %v2310 = vld [vmem:[#allocation15 + $0x138] sm:$0xff]
    %v2311 = vld [vmem:[#allocation15 + $0x140] sm:$0xff]
    %v2312 = vld [vmem:[#allocation15 + $0x148] sm:$0xff]
    %v2313 = vld [vmem:[#allocation15 + $0x150] sm:$0xff]
    %v2314 = vld [vmem:[#allocation15 + $0x158] sm:$0xff]
    %v2315 = vld [vmem:[#allocation15 + $0x160] sm:$0xff]
    %v2316 = vld [vmem:[#allocation15 + $0x168] sm:$0xff]
    %v2317 = vld [vmem:[#allocation15 + $0x170] sm:$0xff]
    %v2318 = vld [vmem:[#allocation15 + $0x178] sm:$0xff]
    %v2319 = vld [vmem:[#allocation15 + $0x180] sm:$0xff]
    %v2320 = vld [vmem:[#allocation15 + $0x188] sm:$0xff]
    %v2321 = vld [vmem:[#allocation15 + $0x190] sm:$0xff]
    %v2322 = vld [vmem:[#allocation15 + $0x198] sm:$0xff]
    %v2323 = vld [vmem:[#allocation15 + $0x1a0] sm:$0xff]
    %v2324 = vld [vmem:[#allocation15 + $0x1a8] sm:$0xff]
    %v2325 = vld [vmem:[#allocation15 + $0x1b0] sm:$0xff]
    %v2326 = vld [vmem:[#allocation15 + $0x1b8] sm:$0xff]
    %v2327 = vld [vmem:[#allocation15 + $0x1c0] sm:$0xff]
    %v2328 = vld [vmem:[#allocation15 + $0x1c8] sm:$0xff]
    %v2329 = vld [vmem:[#allocation15 + $0x1d0] sm:$0xff]
    %v2330 = vld [vmem:[#allocation15 + $0x1d8] sm:$0xff]
    %v2331 = vld [vmem:[#allocation15 + $0x1e0] sm:$0xff]
    %v2332 = vld [vmem:[#allocation15 + $0x1e8] sm:$0xff]
    %v2333 = vld [vmem:[#allocation15 + $0x1f0] sm:$0xff]
    %v2334 = vld [vmem:[#allocation15 + $0x1f8] sm:$0xff]
    %v2335 = vld [vmem:[#allocation15 + $0x200] sm:$0xff]
    %v2336 = vld [vmem:[#allocation15 + $0x208] sm:$0xff]
    %v2337 = vld [vmem:[#allocation15 + $0x210] sm:$0xff]
    %v2338 = vld [vmem:[#allocation15 + $0x218] sm:$0xff]
    %v2339 = vld [vmem:[#allocation15 + $0x220] sm:$0xff]
    %v2340 = vld [vmem:[#allocation15 + $0x228] sm:$0xff]
    %v2341 = vld [vmem:[#allocation15 + $0x230] sm:$0xff]
    %v2342 = vld [vmem:[#allocation15 + $0x238] sm:$0xff]
    %v2343 = vld [vmem:[#allocation15 + $0x240] sm:$0xff]
    %v2344 = vld [vmem:[#allocation15 + $0x248] sm:$0xff]
    %v2345 = vld [vmem:[#allocation15 + $0x250] sm:$0xff]
    %v2346 = vld [vmem:[#allocation15 + $0x258] sm:$0xff]
    %v2347 = vld [vmem:[#allocation15 + $0x260] sm:$0xff]
    %v2348 = vld [vmem:[#allocation15 + $0x268] sm:$0xff]
    %v2349 = vld [vmem:[#allocation15 + $0x270] sm:$0xff]
    %v2350 = vld [vmem:[#allocation15 + $0x278] sm:$0xff]
    %v2351 = vld [vmem:[#allocation15 + $0x280] sm:$0xff]
    %v2352 = vld [vmem:[#allocation15 + $0x288] sm:$0xff]
    %v2353 = vld [vmem:[#allocation15 + $0x290] sm:$0xff]
    %v2354 = vld [vmem:[#allocation15 + $0x298] sm:$0xff]
    %v2355 = vld [vmem:[#allocation15 + $0x2a0] sm:$0xff]
    %v2356 = vld [vmem:[#allocation15 + $0x2a8] sm:$0xff]
    %v2357 = vld [vmem:[#allocation15 + $0x2b0] sm:$0xff]
    %v2358 = vld [vmem:[#allocation15 + $0x2b8] sm:$0xff]
    %v2359 = vld [vmem:[#allocation15 + $0x2c0] sm:$0xff]
    %v2360 = vld [vmem:[#allocation15 + $0x2c8] sm:$0xff]
    %v2361 = vld [vmem:[#allocation15 + $0x2d0] sm:$0xff]
    %v2362 = vld [vmem:[#allocation15 + $0x2d8] sm:$0xff]
    %v2363 = vld [vmem:[#allocation15 + $0x2e0] sm:$0xff]
    %v2364 = vld [vmem:[#allocation15 + $0x2e8] sm:$0xff]
    %v2365 = vld [vmem:[#allocation15 + $0x2f0] sm:$0xff]
    %v2366 = vld [vmem:[#allocation15 + $0x2f8] sm:$0xff]
    %v2367 = vld [vmem:[#allocation15 + $0x300] sm:$0xff]
    %v2368 = vld [vmem:[#allocation15 + $0x308] sm:$0xff]
    %v2369 = vld [vmem:[#allocation15 + $0x310] sm:$0xff]
    %v2370 = vld [vmem:[#allocation15 + $0x318] sm:$0xff]
    %v2371 = vld [vmem:[#allocation15 + $0x320] sm:$0xff]
    %v2372 = vld [vmem:[#allocation15 + $0x328] sm:$0xff]
    %v2373 = vld [vmem:[#allocation15 + $0x330] sm:$0xff]
    %v2374 = vld [vmem:[#allocation15 + $0x338] sm:$0xff]
    %v2375 = vld [vmem:[#allocation15 + $0x340] sm:$0xff]
    %v2376 = vld [vmem:[#allocation15 + $0x348] sm:$0xff]
    %v2377 = vld [vmem:[#allocation15 + $0x350] sm:$0xff]
    %v2378 = vld [vmem:[#allocation15 + $0x358] sm:$0xff]
    %v2379 = vld [vmem:[#allocation15 + $0x360] sm:$0xff]
    %v2380 = vld [vmem:[#allocation15 + $0x368] sm:$0xff]
    %v2381 = vld [vmem:[#allocation15 + $0x370] sm:$0xff]
    %v2382 = vld [vmem:[#allocation15 + $0x378] sm:$0xff]
    %v2383 = vld [vmem:[#allocation15 + $0x380] sm:$0xff]
    %v2384 = vld [vmem:[#allocation15 + $0x388] sm:$0xff]
    %v2385 = vld [vmem:[#allocation15 + $0x390] sm:$0xff]
    %v2386 = vld [vmem:[#allocation15 + $0x398] sm:$0xff]
    %v2387 = vld [vmem:[#allocation15 + $0x3a0] sm:$0xff]
    %v2388 = vld [vmem:[#allocation15 + $0x3a8] sm:$0xff]
    %v2389 = vld [vmem:[#allocation15 + $0x3b0] sm:$0xff]
    %v2390 = vld [vmem:[#allocation15 + $0x3b8] sm:$0xff]
    %v2391 = vld [vmem:[#allocation15 + $0x3c0] sm:$0xff]
    %v2392 = vld [vmem:[#allocation15 + $0x3c8] sm:$0xff]
    %v2393 = vld [vmem:[#allocation15 + $0x3d0] sm:$0xff]
    %v2394 = vld [vmem:[#allocation15 + $0x3d8] sm:$0xff]
    %v2395 = vld [vmem:[#allocation15 + $0x3e0] sm:$0xff]
    %v2396 = vld [vmem:[#allocation15 + $0x3e8] sm:$0xff]
    %v2397 = vld [vmem:[#allocation15 + $0x3f0] sm:$0xff]
    %v2398 = vld [vmem:[#allocation15 + $0x3f8] sm:$0xff]
    %v2399 = vld [vmem:[#allocation15 + $0x400] sm:$0xff]
    %v2400 = vld [vmem:[#allocation15 + $0x408] sm:$0xff]
    %v2401 = vld [vmem:[#allocation15 + $0x410] sm:$0xff]
    %v2402 = vld [vmem:[#allocation15 + $0x418] sm:$0xff]
    %v2403 = vld [vmem:[#allocation15 + $0x420] sm:$0xff]
    %v2404 = vld [vmem:[#allocation15 + $0x428] sm:$0xff]
    %v2405 = vld [vmem:[#allocation15 + $0x430] sm:$0xff]
    %v2406 = vld [vmem:[#allocation15 + $0x438] sm:$0xff]
    %v2407 = vld [vmem:[#allocation15 + $0x440] sm:$0xff]
    %v2408 = vld [vmem:[#allocation15 + $0x448] sm:$0xff]
    %v2409 = vld [vmem:[#allocation15 + $0x450] sm:$0xff]
    %v2410 = vld [vmem:[#allocation15 + $0x458] sm:$0xff]
    %v2411 = vld [vmem:[#allocation15 + $0x460] sm:$0xff]
    %v2412 = vld [vmem:[#allocation15 + $0x468] sm:$0xff]
    %v2413 = vld [vmem:[#allocation15 + $0x470] sm:$0xff]
    %v2414 = vld [vmem:[#allocation15 + $0x478] sm:$0xff]
    %v2415 = vld [vmem:[#allocation15 + $0x480] sm:$0xff]
    %v2416 = vld [vmem:[#allocation15 + $0x488] sm:$0xff]
    %v2417 = vld [vmem:[#allocation15 + $0x490] sm:$0xff]
    %v2418 = vld [vmem:[#allocation15 + $0x498] sm:$0xff]
    %v2419 = vld [vmem:[#allocation15 + $0x4a0] sm:$0xff]
    %v2420 = vld [vmem:[#allocation15 + $0x4a8] sm:$0xff]
    %v2421 = vld [vmem:[#allocation15 + $0x4b0] sm:$0xff]
    %v2422 = vld [vmem:[#allocation15 + $0x4b8] sm:$0xff]
    %v2423 = vld [vmem:[#allocation15 + $0x4c0] sm:$0xff]
    %v2424 = vld [vmem:[#allocation15 + $0x4c8] sm:$0xff]
    %v2425 = vld [vmem:[#allocation15 + $0x4d0] sm:$0xff]
    %v2426 = vld [vmem:[#allocation15 + $0x4d8] sm:$0xff]
    %v2427 = vld [vmem:[#allocation15 + $0x4e0] sm:$0xff]
    %v2428 = vld [vmem:[#allocation15 + $0x4e8] sm:$0xff]
    %v2429 = vld [vmem:[#allocation15 + $0x4f0] sm:$0xff]
    %v2430 = vld [vmem:[#allocation15 + $0x4f8] sm:$0xff]
    %v2431 = vld [vmem:[#allocation15 + $0x500] sm:$0xff]
    %v2432 = vld [vmem:[#allocation15 + $0x508] sm:$0xff]
    %v2433 = vld [vmem:[#allocation15 + $0x510] sm:$0xff]
    %v2434 = vld [vmem:[#allocation15 + $0x518] sm:$0xff]
    %v2435 = vld [vmem:[#allocation15 + $0x520] sm:$0xff]
    %v2436 = vld [vmem:[#allocation15 + $0x528] sm:$0xff]
    %v2437 = vld [vmem:[#allocation15 + $0x530] sm:$0xff]
    %v2438 = vld [vmem:[#allocation15 + $0x538] sm:$0xff]
    %v2439 = vld [vmem:[#allocation15 + $0x540] sm:$0xff]
    %v2440 = vld [vmem:[#allocation15 + $0x548] sm:$0xff]
    %v2441 = vld [vmem:[#allocation15 + $0x550] sm:$0xff]
    %v2442 = vld [vmem:[#allocation15 + $0x558] sm:$0xff]
    %v2443 = vld [vmem:[#allocation15 + $0x560] sm:$0xff]
    %v2444 = vld [vmem:[#allocation15 + $0x568] sm:$0xff]
    %v2445 = vld [vmem:[#allocation15 + $0x570] sm:$0xff]
    %v2446 = vld [vmem:[#allocation15 + $0x578] sm:$0xff]
    %v2447 = vld [vmem:[#allocation15 + $0x580] sm:$0xff]
    %v2448 = vld [vmem:[#allocation15 + $0x588] sm:$0xff]
    %v2449 = vld [vmem:[#allocation15 + $0x590] sm:$0xff]
    %v2450 = vld [vmem:[#allocation15 + $0x598] sm:$0xff]
    %v2451 = vld [vmem:[#allocation15 + $0x5a0] sm:$0xff]
    %v2452 = vld [vmem:[#allocation15 + $0x5a8] sm:$0xff]
    %v2453 = vld [vmem:[#allocation15 + $0x5b0] sm:$0xff]
    %v2454 = vld [vmem:[#allocation15 + $0x5b8] sm:$0xff]
    %v2455 = vld [vmem:[#allocation15 + $0x5c0] sm:$0xff]
    %v2456 = vld [vmem:[#allocation15 + $0x5c8] sm:$0xff]
    %v2457 = vld [vmem:[#allocation15 + $0x5d0] sm:$0xff]
    %v2458 = vld [vmem:[#allocation15 + $0x5d8] sm:$0xff]
    %v2459 = vld [vmem:[#allocation15 + $0x5e0] sm:$0xff]
    %v2460 = vld [vmem:[#allocation15 + $0x5e8] sm:$0xff]
    %v2461 = vld [vmem:[#allocation15 + $0x5f0] sm:$0xff]
    %v2462 = vld [vmem:[#allocation15 + $0x5f8] sm:$0xff]
    %v2463 = vld [vmem:[#allocation17] sm:$0x7]
    %v2465 = vperm.slane %v2463, 0
    %v2466 = vperm.slane %v2463, 1
    %v2467 = vperm.slane %v2463, 2
    %2471 = vmatpush.msra.mxu0 %v2316
    %2472 = vmatpush.msra.mxu0 %v2313
    %2473 = vmatpush.msra.mxu0 %v2310
    %2474 = vmatpush.msra.mxu0 %v2307
    %2475 = vmatpush.msra.mxu0 %v2304
    %2476 = vmatpush.msra.mxu0 %v2301
    %2477 = vmatpush.msra.mxu0 %v2298
    %2478 = vmatpush.msra.mxu0 %v2295
    %2479 = vmatpush.msra.mxu0 %v2292
    %2480 = vmatpush.msra.mxu0 %v2289
    %2481 = vmatpush.msra.mxu0 %v2286
    %2482 = vmatpush.msra.mxu0 %v2283
    %2483 = vmatpush.msra.mxu0 %v2280
    %2484 = vmatpush.msra.mxu0 %v2277
    %2485 = vmatpush.msra.mxu0 %v2274
    %2486 = vmatpush.msra.mxu0 %v2271
    %2487 = vmatmul.f32.gmra.mxu0 %v2267
    %v2488 = vpop.f32.mrf.mxu0
    %v2489 = vadd.f32 %v2465, %v2488
    %2490 = vdwg.mxu0
    %2491 = vmatpush.msra.mxu0 %v2364
    %2492 = vmatpush.msra.mxu0 %v2361
    %2493 = vmatpush.msra.mxu0 %v2358
    %2494 = vmatpush.msra.mxu0 %v2355
    %2495 = vmatpush.msra.mxu0 %v2352
    %2496 = vmatpush.msra.mxu0 %v2349
    %2497 = vmatpush.msra.mxu0 %v2346
    %2498 = vmatpush.msra.mxu0 %v2343
    %2499 = vmatpush.msra.mxu0 %v2340
    %2500 = vmatpush.msra.mxu0 %v2337
    %2501 = vmatpush.msra.mxu0 %v2334
    %2502 = vmatpush.msra.mxu0 %v2331
    %2503 = vmatpush.msra.mxu0 %v2328
    %2504 = vmatpush.msra.mxu0 %v2325
    %2505 = vmatpush.msra.mxu0 %v2322
    %2506 = vmatpush.msra.mxu0 %v2319
    %2507 = vmatmul.f32.gmra.mxu0 %v2268
    %v2508 = vpop.f32.mrf.mxu0
    %v2509 = vadd.f32 %v2489, %v2508
    %2510 = vdwg.mxu0
    %2511 = vmatpush.msra.mxu0 %v2412
    %2512 = vmatpush.msra.mxu0 %v2409
    %2513 = vmatpush.msra.mxu0 %v2406
    %2514 = vmatpush.msra.mxu0 %v2403
    %2515 = vmatpush.msra.mxu0 %v2400
    %2516 = vmatpush.msra.mxu0 %v2397
    %2517 = vmatpush.msra.mxu0 %v2394
    %2518 = vmatpush.msra.mxu0 %v2391
    %2519 = vmatpush.msra.mxu0 %v2388
    %2520 = vmatpush.msra.mxu0 %v2385
    %2521 = vmatpush.msra.mxu0 %v2382
    %2522 = vmatpush.msra.mxu0 %v2379
    %2523 = vmatpush.msra.mxu0 %v2376
    %2524 = vmatpush.msra.mxu0 %v2373
    %2525 = vmatpush.msra.mxu0 %v2370
    %2526 = vmatpush.msra.mxu0 %v2367
    %2527 = vmatmul.f32.gmra.mxu0 %v2269
    %v2528 = vpop.f32.mrf.mxu0
    %v2529 = vadd.f32 %v2509, %v2528
    %2530 = vdwg.mxu0
    %2531 = vmatpush.msra.mxu0 %v2460
    %2532 = vmatpush.msra.mxu0 %v2457
    %2533 = vmatpush.msra.mxu0 %v2454
    %2534 = vmatpush.msra.mxu0 %v2451
    %2535 = vmatpush.msra.mxu0 %v2448
    %2536 = vmatpush.msra.mxu0 %v2445
    %2537 = vmatpush.msra.mxu0 %v2442
    %2538 = vmatpush.msra.mxu0 %v2439
    %2539 = vmatpush.msra.mxu0 %v2436
    %2540 = vmatpush.msra.mxu0 %v2433
    %2541 = vmatpush.msra.mxu0 %v2430
    %2542 = vmatpush.msra.mxu0 %v2427
    %2543 = vmatpush.msra.mxu0 %v2424
    %2544 = vmatpush.msra.mxu0 %v2421
    %2545 = vmatpush.msra.mxu0 %v2418
    %2546 = vmatpush.msra.mxu0 %v2415
    %2547 = vmatmul.f32.gmra.mxu0 %v2270
    %v2548 = vpop.f32.mrf.mxu0
    %v2549 = vadd.f32 %v2529, %v2548
    %2550 = vdwg.mxu0
    %2551 = vmatpush.msra.mxu0 %v2317
    %2552 = vmatpush.msra.mxu0 %v2314
    %2553 = vmatpush.msra.mxu0 %v2311
    %2554 = vmatpush.msra.mxu0 %v2308
    %2555 = vmatpush.msra.mxu0 %v2305
    %2556 = vmatpush.msra.mxu0 %v2302
    %2557 = vmatpush.msra.mxu0 %v2299
    %2558 = vmatpush.msra.mxu0 %v2296
    %2559 = vmatpush.msra.mxu0 %v2293
    %2560 = vmatpush.msra.mxu0 %v2290
    %2561 = vmatpush.msra.mxu0 %v2287
    %2562 = vmatpush.msra.mxu0 %v2284
    %2563 = vmatpush.msra.mxu0 %v2281
    %2564 = vmatpush.msra.mxu0 %v2278
    %2565 = vmatpush.msra.mxu0 %v2275
    %2566 = vmatpush.msra.mxu0 %v2272
    %2567 = vmatmul.f32.gmra.mxu0 %v2267
    %v2568 = vpop.f32.mrf.mxu0
    %v2569 = vadd.f32 %v2466, %v2568
    %2570 = vdwg.mxu0
    %2571 = vmatpush.msra.mxu0 %v2365
    %2572 = vmatpush.msra.mxu0 %v2362
    %2573 = vmatpush.msra.mxu0 %v2359
    %2574 = vmatpush.msra.mxu0 %v2356
    %2575 = vmatpush.msra.mxu0 %v2353
    %2576 = vmatpush.msra.mxu0 %v2350
    %2577 = vmatpush.msra.mxu0 %v2347
    %2578 = vmatpush.msra.mxu0 %v2344
    %2579 = vmatpush.msra.mxu0 %v2341
    %2580 = vmatpush.msra.mxu0 %v2338
    %2581 = vmatpush.msra.mxu0 %v2335
    %2582 = vmatpush.msra.mxu0 %v2332
    %2583 = vmatpush.msra.mxu0 %v2329
    %2584 = vmatpush.msra.mxu0 %v2326
    %2585 = vmatpush.msra.mxu0 %v2323
    %2586 = vmatpush.msra.mxu0 %v2320
    %2587 = vmatmul.f32.gmra.mxu0 %v2268
    %v2588 = vpop.f32.mrf.mxu0
    %v2589 = vadd.f32 %v2569, %v2588
    %2590 = vdwg.mxu0
    %2591 = vmatpush.msra.mxu0 %v2413
    %2592 = vmatpush.msra.mxu0 %v2410
    %2593 = vmatpush.msra.mxu0 %v2407
    %2594 = vmatpush.msra.mxu0 %v2404
    %2595 = vmatpush.msra.mxu0 %v2401
    %2596 = vmatpush.msra.mxu0 %v2398
    %2597 = vmatpush.msra.mxu0 %v2395
    %2598 = vmatpush.msra.mxu0 %v2392
    %2599 = vmatpush.msra.mxu0 %v2389
    %2600 = vmatpush.msra.mxu0 %v2386
    %2601 = vmatpush.msra.mxu0 %v2383
    %2602 = vmatpush.msra.mxu0 %v2380
    %2603 = vmatpush.msra.mxu0 %v2377
    %2604 = vmatpush.msra.mxu0 %v2374
    %2605 = vmatpush.msra.mxu0 %v2371
    %2606 = vmatpush.msra.mxu0 %v2368
    %2607 = vmatmul.f32.gmra.mxu0 %v2269
    %v2608 = vpop.f32.mrf.mxu0
    %v2609 = vadd.f32 %v2589, %v2608
    %2610 = vdwg.mxu0
    %2611 = vmatpush.msra.mxu0 %v2461
    %2612 = vmatpush.msra.mxu0 %v2458
    %2613 = vmatpush.msra.mxu0 %v2455
    %2614 = vmatpush.msra.mxu0 %v2452
    %2615 = vmatpush.msra.mxu0 %v2449
    %2616 = vmatpush.msra.mxu0 %v2446
    %2617 = vmatpush.msra.mxu0 %v2443
    %2618 = vmatpush.msra.mxu0 %v2440
    %2619 = vmatpush.msra.mxu0 %v2437
    %2620 = vmatpush.msra.mxu0 %v2434
    %2621 = vmatpush.msra.mxu0 %v2431
    %2622 = vmatpush.msra.mxu0 %v2428
    %2623 = vmatpush.msra.mxu0 %v2425
    %2624 = vmatpush.msra.mxu0 %v2422
    %2625 = vmatpush.msra.mxu0 %v2419
    %2626 = vmatpush.msra.mxu0 %v2416
    %2627 = vmatmul.f32.gmra.mxu0 %v2270
    %v2628 = vpop.f32.mrf.mxu0
    %v2629 = vadd.f32 %v2609, %v2628
    %2630 = vdwg.mxu0
    %2631 = vmatpush.msra.mxu0 %v2318
    %2632 = vmatpush.msra.mxu0 %v2315
    %2633 = vmatpush.msra.mxu0 %v2312
    %2634 = vmatpush.msra.mxu0 %v2309
    %2635 = vmatpush.msra.mxu0 %v2306
    %2636 = vmatpush.msra.mxu0 %v2303
    %2637 = vmatpush.msra.mxu0 %v2300
    %2638 = vmatpush.msra.mxu0 %v2297
    %2639 = vmatpush.msra.mxu0 %v2294
    %2640 = vmatpush.msra.mxu0 %v2291
    %2641 = vmatpush.msra.mxu0 %v2288
    %2642 = vmatpush.msra.mxu0 %v2285
    %2643 = vmatpush.msra.mxu0 %v2282
    %2644 = vmatpush.msra.mxu0 %v2279
    %2645 = vmatpush.msra.mxu0 %v2276
    %2646 = vmatpush.msra.mxu0 %v2273
    %2647 = vmatmul.f32.gmra.mxu0 %v2267
    %v2648 = vpop.f32.mrf.mxu0
    %v2649 = vadd.f32 %v2467, %v2648
    %2650 = vdwg.mxu0
    %2651 = vmatpush.msra.mxu0 %v2366
    %2652 = vmatpush.msra.mxu0 %v2363
    %2653 = vmatpush.msra.mxu0 %v2360
    %2654 = vmatpush.msra.mxu0 %v2357
    %2655 = vmatpush.msra.mxu0 %v2354
    %2656 = vmatpush.msra.mxu0 %v2351
    %2657 = vmatpush.msra.mxu0 %v2348
    %2658 = vmatpush.msra.mxu0 %v2345
    %2659 = vmatpush.msra.mxu0 %v2342
    %2660 = vmatpush.msra.mxu0 %v2339
    %2661 = vmatpush.msra.mxu0 %v2336
    %2662 = vmatpush.msra.mxu0 %v2333
    %2663 = vmatpush.msra.mxu0 %v2330
    %2664 = vmatpush.msra.mxu0 %v2327
    %2665 = vmatpush.msra.mxu0 %v2324
    %2666 = vmatpush.msra.mxu0 %v2321
    %2667 = vmatmul.f32.gmra.mxu0 %v2268
    %v2668 = vpop.f32.mrf.mxu0
    %v2669 = vadd.f32 %v2649, %v2668
    %2670 = vdwg.mxu0
    %2671 = vmatpush.msra.mxu0 %v2414
    %2672 = vmatpush.msra.mxu0 %v2411
    %2673 = vmatpush.msra.mxu0 %v2408
    %2674 = vmatpush.msra.mxu0 %v2405
    %2675 = vmatpush.msra.mxu0 %v2402
    %2676 = vmatpush.msra.mxu0 %v2399
    %2677 = vmatpush.msra.mxu0 %v2396
    %2678 = vmatpush.msra.mxu0 %v2393
    %2679 = vmatpush.msra.mxu0 %v2390
    %2680 = vmatpush.msra.mxu0 %v2387
    %2681 = vmatpush.msra.mxu0 %v2384
    %2682 = vmatpush.msra.mxu0 %v2381
    %2683 = vmatpush.msra.mxu0 %v2378
    %2684 = vmatpush.msra.mxu0 %v2375
    %2685 = vmatpush.msra.mxu0 %v2372
    %2686 = vmatpush.msra.mxu0 %v2369
    %2687 = vmatmul.f32.gmra.mxu0 %v2269
    %v2688 = vpop.f32.mrf.mxu0
    %v2689 = vadd.f32 %v2669, %v2688
    %2690 = vdwg.mxu0
    %2691 = vmatpush.msra.mxu0 %v2462
    %2692 = vmatpush.msra.mxu0 %v2459
    %2693 = vmatpush.msra.mxu0 %v2456
    %2694 = vmatpush.msra.mxu0 %v2453
    %2695 = vmatpush.msra.mxu0 %v2450
    %2696 = vmatpush.msra.mxu0 %v2447
    %2697 = vmatpush.msra.mxu0 %v2444
    %2698 = vmatpush.msra.mxu0 %v2441
    %2699 = vmatpush.msra.mxu0 %v2438
    %2700 = vmatpush.msra.mxu0 %v2435
    %2701 = vmatpush.msra.mxu0 %v2432
    %2702 = vmatpush.msra.mxu0 %v2429
    %2703 = vmatpush.msra.mxu0 %v2426
    %2704 = vmatpush.msra.mxu0 %v2423
    %2705 = vmatpush.msra.mxu0 %v2420
    %2706 = vmatpush.msra.mxu0 %v2417
    %2707 = vmatmul.f32.gmra.mxu0 %v2270
    %v2708 = vpop.f32.mrf.mxu0
    %v2709 = vadd.f32 %v2689, %v2708
    %2710 = vdwg.mxu0
    %v2711 = vmax.f32 %v2549, %v2629
    %v2712 = vmax.f32 %v2711, %v2709
    %v2713 = vtanh.pop %v2712
    %v2714 = vld [vmem:[%s10] sm:$0xff]
    %v2715 = vld [vmem:[%s10 + $0x8] sm:$0xff]
    %v2716 = vld [vmem:[%s10 + $0x10] sm:$0xff]
    %v2717 = vld [vmem:[%s10 + $0x18] sm:$0xff]
    %v2718 = vld [vmem:[%s10 + $0x20] sm:$0xff]
    %v2719 = vld [vmem:[%s10 + $0x28] sm:$0xff]
    %v2720 = vld [vmem:[%s10 + $0x30] sm:$0xff]
    %v2721 = vld [vmem:[%s10 + $0x38] sm:$0xff]
    %v2722 = vld [vmem:[%s10 + $0x40] sm:$0xff]
    %v2723 = vld [vmem:[%s10 + $0x48] sm:$0xff]
    %v2724 = vld [vmem:[%s10 + $0x50] sm:$0xff]
    %v2725 = vld [vmem:[%s10 + $0x58] sm:$0xff]
    %v2726 = vld [vmem:[%s10 + $0x60] sm:$0xff]
    %v2727 = vld [vmem:[%s10 + $0x68] sm:$0xff]
    %v2728 = vld [vmem:[%s10 + $0x70] sm:$0xff]
    %v2729 = vld [vmem:[%s10 + $0x78] sm:$0xff]
    %v2730 = vld [vmem:[#allocation18] sm:$0x1]
    %v2732 = vperm.slane %v2730, 0
    %2734 = vmatpush.msra.mxu0 %v2729
    %2735 = vmatpush.msra.mxu0 %v2728
    %2736 = vmatpush.msra.mxu0 %v2727
    %2737 = vmatpush.msra.mxu0 %v2726
    %2738 = vmatpush.msra.mxu0 %v2725
    %2739 = vmatpush.msra.mxu0 %v2724
    %2740 = vmatpush.msra.mxu0 %v2723
    %2741 = vmatpush.msra.mxu0 %v2722
    %2742 = vmatpush.msra.mxu0 %v2721
    %2743 = vmatpush.msra.mxu0 %v2720
    %2744 = vmatpush.msra.mxu0 %v2719
    %2745 = vmatpush.msra.mxu0 %v2718
    %2746 = vmatpush.msra.mxu0 %v2717
    %2747 = vmatpush.msra.mxu0 %v2716
    %2748 = vmatpush.msra.mxu0 %v2715
    %2749 = vmatpush.msra.mxu0 %v2714
    %2750 = vmatmul.f32.gmra.mxu0 %v2713
    %v2751 = vpop.f32.mrf.mxu0
    %v2752 = vadd.f32 %v2732, %v2751
    %2753 = vdwg.mxu0
    %2755 = vrot.lane.b32.xlu0 %v2752, 112
    %v2756 = vpop.permute.xlu0 %2755
    %v2758 = vmax.f32 %v2752, %v2756
    %2759 = vrot.lane.b32.xlu0 %v2752, 96
    %v2760 = vpop.permute.xlu0 %2759
    %v2762 = vmax.f32 %v2758, %v2760
    %v2763 = vtanh.pop %v2762
    %v2764 = vld [vmem:[#allocation20] sm:$0xff]
    %v2765 = vld [vmem:[#allocation20 + $0x8] sm:$0xff]
    %v2766 = vld [vmem:[#allocation21] sm:$0x1]
    %v2768 = vperm.slane %v2766, 0
    %vm2770 = vcmask 130048
    %v2772 = vsel %vm2770, %v2763, 0
    %2774 = vmatpush.msra.mxu0 0.0
    %2775 = vmatpush.msra.mxu0 0.0
    %2776 = vmatpush.msra.mxu0 0.0
    %2777 = vmatpush.msra.mxu0 0.0
    %2778 = vmatpush.msra.mxu0 0.0
    %2779 = vmatpush.msra.mxu0 0.0
    %2780 = vmatpush.msra.mxu0 0.0
    %2781 = vmatpush.msra.mxu0 0.0
    %2782 = vmatpush.msra.mxu0 0.0
    %2783 = vmatpush.msra.mxu0 0.0
    %2784 = vmatpush.msra.mxu0 0.0
    %2785 = vmatpush.msra.mxu0 0.0
    %2786 = vmatpush.msra.mxu0 0.0
    %2787 = vmatpush.msra.mxu0 0.0
    %2788 = vmatpush.msra.mxu0 %v2765
    %2789 = vmatpush.msra.mxu0 %v2764
    %2790 = vmatmul.f32.gmra.mxu0 %v2772
    %v2791 = vpop.f32.mrf.mxu0
    %v2792 = vadd.f32 %v2768, %v2791
    %2793 = vdwg.mxu0
    %v2794 = vtanh.pop %v2792
    %v2795 = vld [vmem:[%s14] sm:$0xff]
    %v2796 = vld [vmem:[%s14 + $0x8] sm:$0xff]
    %v2797 = vld [vmem:[%s14 + $0x10] sm:$0xff]
    %v2798 = vld [vmem:[%s14 + $0x18] sm:$0xff]
    %v2799 = vld [vmem:[#allocation3] sm:$0x1]
    %v2801 = vperm.slane %v2799, 0
    %vm2803 = vcmask 261120
    %v2805 = vsel %vm2803, %v2794, 0
    %2807 = vmatpush.msra.mxu0 0.0
    %2808 = vmatpush.msra.mxu0 0.0
    %2809 = vmatpush.msra.mxu0 0.0
    %2810 = vmatpush.msra.mxu0 0.0
    %2811 = vmatpush.msra.mxu0 0.0
    %2812 = vmatpush.msra.mxu0 0.0
    %2813 = vmatpush.msra.mxu0 0.0
    %2814 = vmatpush.msra.mxu0 0.0
    %2815 = vmatpush.msra.mxu0 0.0
    %2816 = vmatpush.msra.mxu0 0.0
    %2817 = vmatpush.msra.mxu0 0.0
    %2818 = vmatpush.msra.mxu0 0.0
    %2819 = vmatpush.msra.mxu0 %v2798
    %2820 = vmatpush.msra.mxu0 %v2797
    %2821 = vmatpush.msra.mxu0 %v2796
    %2822 = vmatpush.msra.mxu0 %v2795
    %2823 = vmatmul.f32.gmra.mxu0 %v2805
    %v2824 = vpop.f32.mrf.mxu0
    %v2825 = vadd.f32 %v2801, %v2824
    %2826 = vdwg.mxu0
    %v2827 = vand.u32 2147483647, %v2825
    %v2828 = vsub.f32 0.0, %v2827
    %v2829 = vmul.f32 %v2828, 1.442695
    %v2830 = vpow.pop %v2829
    %vm2831 = vcmp.ge.f32.partialorder %v2825, 0.0
    %v2832 = vadd.f32 %v2830, 1.0
    %v2833 = vrcp.pop %v2832
    %v2834 = vmul.f32 %v2832, %v2833
    %v2835 = vsub.f32 1.0, %v2834
    %v2836 = vmul.f32 %v2833, %v2835
    %v2837 = vadd.f32 %v2833, %v2836
    %vm2838 = vweird.f32 %v2832
    %vm2839 = vweird.f32 %v2833
    %vm2840 = vmor %vm2838, %vm2839
    %v2841 = vsel %vm2840, %v2833, %v2837
    %v2842 = vand.u32 2147483647, %v2832
    %vm2843 = vcmp.eq.f32.partialorder %v2842, 8.507059e+37
    %v2844 = vand.u32 %v2832, 2147483648
    %v2845 = vor.u32 1.1754944e-38, %v2844
    %v2846 = vsel %vm2843, %v2845, %v2841
    %v2847 = vmul.f32 1.0, %v2846
    %v2848 = vmul.f32 %v2830, %v2846
    %v2849 = vsel %vm2831, %v2847, %v2848
    %vm2850 = vcmask 7168
    %2851 = vst.msk [vmem:[%s16] sm:$0xff] %vm2850, %v2849
    // Predicated region
    $region114: #{model_forward.1} parent=1 // pred_check
      _
    $region115: #{model_forward.1} parent=1 // pred_check_branch
      %2853 = sbr.rel (0) target = $region117
    $region116: #{model_forward.1} parent=1 // pred_region
      _
    $region117: #{model_forward.1} parent=1 // pred_fallthru
      _
    // Predicated region
    $region118: #{model_forward.1} parent=1 // pred_check
      _
    $region119: #{model_forward.1} parent=1 // pred_check_branch
      %2855 = sbr.rel (0) target = $region121
    $region120: #{model_forward.1} parent=1 // pred_region
      _
    $region121: #{model_forward.1} parent=1 // pred_fallthru
      _
    %2856 = vsyncpa [#allocation5], 1
    %2857 = vsyncpa [#allocation7], 1
    %2858 = vsyncpa [#allocation10], 1
    %2859 = vsyncpa [#allocation13], 1
    %2860 = vsyncpa [#allocation16], 1
    %2861 = vsyncpa [#allocation19], 1
    %2862 = vsyncpa [#allocation22], 1

</llo_original>
